<compile_context>
chip_gen: v7x
topology: tpu7x:2x2x1
jax: 0.10.0
libtpu: 0.0.40
codegen_flags: <defaults>
</compile_context>

<pallas_src>
import math
import functools

import jax
import jax.numpy as jnp
from jax.experimental import pallas as pl
from jax.experimental.pallas import tpu as pltpu


_HEAD_PAD = 512  # vocab / class columns padded once at pack time to this multiple


def _round_up(x, m):
    return ((x + m - 1) // m) * m


@functools.lru_cache(maxsize=None)
def _device_kind():
    try:
        return jax.devices()[0].device_kind.lower()
    except Exception:
        return ""


@functools.lru_cache(maxsize=None)
def _wide_mxu():
    # v6e / v7x have 256-wide MXUs; v2..v5 are 128-wide.
    kind = _device_kind()
    return not any(t in kind for t in ("v2", "v3", "v4", "v5"))


@functools.lru_cache(maxsize=None)
def _vmem_limit_bytes():
    # Generation-aware scoped-VMEM limit: never request the full physical VMEM
    # (v7x only has 64 MiB per TensorCore -> leave headroom for Mosaic internal
    # scratch), but raise well above the 16/32 MiB defaults on v5e/v6e.
    try:
        cap = pltpu.get_tpu_info().vmem_capacity_bytes
    except Exception:
        cap = 128 * 1024 * 1024
    if cap <= 64 * 1024 * 1024:
        return max(32 * 1024 * 1024, min(cap - 16 * 1024 * 1024, 48 * 1024 * 1024))
    return 100 * 1024 * 1024


def _compiler_params(dimension_semantics):
    return pltpu.CompilerParams(
        dimension_semantics=dimension_semantics,
        vmem_limit_bytes=_vmem_limit_bytes())


# ---------------------------------------------------------------------------
# Kernel 1: one post-norm TransformerEncoderLayer (batch_first, relu, eval),
#           optionally fused with the embedding prologue (scale + pos-encode).
# ---------------------------------------------------------------------------
def encoder_layer_kernel(*refs, nhead, fuse_embed_pe, d_model):
    if fuse_embed_pe:
        (x_ref, pe_ref,
         wqkv_ref, bqkv_ref, wo_ref, bo_ref,
         w1_ref, b1_ref, w2_ref, b2_ref,
         g1_ref, be1_ref, g2_ref, be2_ref, o_ref) = refs
    else:
        pe_ref = None
        (x_ref,
         wqkv_ref, bqkv_ref, wo_ref, bo_ref,
         w1_ref, b1_ref, w2_ref, b2_ref,
         g1_ref, be1_ref, g2_ref, be2_ref, o_ref) = refs

    x = x_ref[0].astype(jnp.float32)                                   # (S, D)
    if fuse_embed_pe:
        x = x * jnp.float32(math.sqrt(d_model)) + pe_ref[...].astype(jnp.float32)

    S, D = x.shape
    H = nhead
    dh = D // H

    # --- fused QKV projection: single (S,D)x(D,3D) bf16 MXU matmul ---------
    # 1/sqrt(dh) is pre-folded into the Q columns of wqkv_t / bqkv at pack time.
    qkv = jnp.dot(x.astype(jnp.bfloat16), wqkv_ref[...],
                  preferred_element_type=jnp.float32) + bqkv_ref[...]   # (S, 3D) f32
    q = qkv[:, :D].reshape(S, H, dh).astype(jnp.bfloat16)
    k = qkv[:, D:2 * D].reshape(S, H, dh).astype(jnp.bfloat16)
    v = qkv[:, 2 * D:].reshape(S, H, dh).astype(jnp.bfloat16)

    # --- batched-head scaled-dot-product attention (no head loop / concat) -
    # TODO(synk): at production shapes verify with pl.lower_as_mlir that these
    # einsums / (S,H,dh) reshapes introduce no hidden XLU relayouts; if they
    # do, switch to a head-major (H,S,dh) layout (and flash-tile over KV).
    s = jnp.einsum('qhd,khd->hqk', q, k,
                   preferred_element_type=jnp.float32)                  # (H, S, S) f32
    s = s - jnp.max(s, axis=-1, keepdims=True)
    p = jnp.exp(s)
    p = p * pl.reciprocal(jnp.sum(p, axis=-1, keepdims=True), approx=True)
    ctx = jnp.einsum('hqk,khd->qhd', p.astype(jnp.bfloat16), v,
                     preferred_element_type=jnp.float32).reshape(S, D)  # (S, D) f32

    attn = jnp.dot(ctx.astype(jnp.bfloat16), wo_ref[...],
                   preferred_element_type=jnp.float32) + bo_ref[...]

    # --- residual + LayerNorm1 (f32, eps=1e-5, post-norm like PyTorch) -----
    x = x + attn
    mu = jnp.mean(x, axis=-1, keepdims=True)
    var = jnp.mean((x - mu) ** 2, axis=-1, keepdims=True)
    x = (x - mu) * jax.lax.rsqrt(var + 1e-5) * g1_ref[...] + be1_ref[...]

    # --- feed-forward (relu): bf16 MXU matmuls, f32 accumulation ------------
    # TODO(synk): tile over F for production FF widths (v7x 64 MiB VMEM).
    h1 = jnp.dot(x.astype(jnp.bfloat16), w1_ref[...],
                 preferred_element_type=jnp.float32) + b1_ref[...]
    h1 = jnp.maximum(h1, 0.0)
    ff = jnp.dot(h1.astype(jnp.bfloat16), w2_ref[...],
                 preferred_element_type=jnp.float32) + b2_ref[...]

    # --- residual + LayerNorm2 (f32) ----------------------------------------
    x = x + ff
    mu = jnp.mean(x, axis=-1, keepdims=True)
    var = jnp.mean((x - mu) ** 2, axis=-1, keepdims=True)
    x = (x - mu) * jax.lax.rsqrt(var + 1e-5) * g2_ref[...] + be2_ref[...]

    o_ref[0] = x.astype(o_ref.dtype)


def encoder_layer(x, lp, *, nhead, pe=None, out_dtype=jnp.bfloat16):
    """x: (B,S,D). lp holds pre-transposed bf16 weights. pe!=None fuses the
    embedding prologue (first layer only). Output dtype bf16 (residual carry)."""
    B, S, D = x.shape
    F = lp["w1_t"].shape[1]
    fuse = pe is not None

    # Grid-invariant operands (constant index_map over the batch axis):
    # single-buffer them -- double buffering would only double the VMEM
    # footprint with zero overlap benefit.
    inv = lambda shape: pl.BlockSpec(
        shape, lambda b, _s=shape: tuple(0 for _ in _s),
        pipeline_mode=pl.Buffered(1))

    in_specs = [pl.BlockSpec((1, S, D), lambda b: (b, 0, 0))]
    args = [x]
    if fuse:
        in_specs.append(inv((S, D)))
        args.append(pe)
    in_specs += [
        inv((D, 3 * D)), inv((1, 3 * D)),   # wqkv_t, bqkv
        inv((D, D)),     inv((1, D)),       # wo_t,   bo
        inv((D, F)),     inv((1, F)),       # w1_t,   b1
        inv((F, D)),     inv((1, D)),       # w2_t,   b2
        inv((1, D)), inv((1, D)),           # g1, be1
        inv((1, D)), inv((1, D)),           # g2, be2
    ]
    args += [lp["wqkv_t"], lp["bqkv"], lp["wo_t"], lp["bo"],
             lp["w1_t"], lp["b1"], lp["w2_t"], lp["b2"],
             lp["g1"], lp["be1"], lp["g2"], lp["be2"]]

    # TODO(synk): once attention is flash-tiled, add a parallel query-row grid
    # axis alongside B so v7x's two TensorCores both get work even at B=1.
    return pl.pallas_call(
        functools.partial(encoder_layer_kernel, nhead=nhead,
                          fuse_embed_pe=fuse, d_model=D),
        out_shape=jax.ShapeDtypeStruct((B, S, D), out_dtype),
        grid=(B,),
        in_specs=in_specs,
        out_specs=pl.BlockSpec((1, S, D), lambda b: (b, 0, 0)),
        compiler_params=_compiler_params(("parallel",)),
    )(*args)


# ---------------------------------------------------------------------------
# Kernel 2: tiled dense head  y = x @ W_t + b   (W_t pre-transposed + pre-padded
#           to a lane-dense (D, Vp) bf16 slab at pack time)
# ---------------------------------------------------------------------------
def linear_kernel(x_ref, w_ref, b_ref, o_ref):
    x = x_ref[...].astype(jnp.bfloat16)                    # (TM, D)
    o_ref[...] = (jnp.dot(x, w_ref[...], preferred_element_type=jnp.float32)
                  + b_ref[...]).astype(o_ref.dtype)


def linear(x2d, w_t, b2d, out_dim):
    """x2d: (N,D), w_t: (D,Vp) bf16 (Vp pre-padded to a multiple of 512 at pack
    time), b2d: (1,Vp) f32 -> (N,out_dim) f32. Only the small row dim is padded
    per call; the large vocab weight is never re-copied."""
    N, D = x2d.shape
    Vp = w_t.shape[1]

    row_cap = 256 if _wide_mxu() else 128
    Np = _round_up(N, 8)
    TM = Np if Np <= row_cap else row_cap
    Np = _round_up(Np, TM)

    # 256-wide MXU parts (v6e/v7x) take 512-wide output tiles; v5e keeps 256/128.
    if _wide_mxu() and Vp % 512 == 0:
        TN = 512
    elif Vp % 256 == 0:
        TN = 256
    else:
        TN = 128

    xp = jnp.pad(x2d, ((0, Np - N), (0, 0)))

    out = pl.pallas_call(
        linear_kernel,
        out_shape=jax.ShapeDtypeStruct((Np, Vp), jnp.float32),
        grid=(Np // TM, Vp // TN),
        in_specs=[
            pl.BlockSpec((TM, D), lambda i, j: (i, 0)),
            pl.BlockSpec((D, TN), lambda i, j: (0, j)),
            pl.BlockSpec((1, TN), lambda i, j: (0, j)),
        ],
        out_specs=pl.BlockSpec((TM, TN), lambda i, j: (i, j)),
        compiler_params=_compiler_params(("parallel", "parallel")),
    )(xp, w_t, b2d)
    return out[:N, :out_dim]


# ---------------------------------------------------------------------------
# Parameter construction (deterministic, synthetic, PyTorch convention) and
# packing to kernel-ready layout (transposed, bf16 weights, pre-padded heads,
# attention scale folded into Q columns).
# ---------------------------------------------------------------------------
def make_params(key, vocab_size, num_classes, d_model, dim_ff, num_layers):
    ks = jax.random.split(key, 4 + 8 * num_layers)
    u = lambda k, shape, lim: jax.random.uniform(k, shape, jnp.float32, -lim, lim)

    raw = {
        "embedding": u(ks[0], (vocab_size, d_model), 0.1),
        "mlm_w": u(ks[1], (vocab_size, d_model), 0.1),       # (out, in)
        "mlm_b": jnp.zeros((1, vocab_size), jnp.float32),
        "cls_w": u(ks[2], (num_classes, d_model), 0.1),
        "cls_b": jnp.zeros((1, num_classes), jnp.float32),
        "layers": [],
    }
    lim_attn = 1.0 / math.sqrt(d_model)
    lim_ff = 1.0 / math.sqrt(dim_ff)
    for l in range(num_layers):
        kk = ks[4 + 8 * l: 4 + 8 * (l + 1)]
        raw["layers"].append({
            "wqkv": u(kk[0], (3 * d_model, d_model), lim_attn),   # rows [q;k;v]
            "bqkv": jnp.zeros((1, 3 * d_model), jnp.float32),
            "wo": u(kk[1], (d_model, d_model), lim_attn),
            "bo": jnp.zeros((1, d_model), jnp.float32),
            "w1": u(kk[2], (dim_ff, d_model), lim_attn),
            "b1": u(kk[3], (1, dim_ff), lim_attn),
            "w2": u(kk[4], (d_model, dim_ff), lim_ff),
            "b2": u(kk[5], (1, d_model), lim_ff),
            "g1": jnp.ones((1, d_model), jnp.float32),
            "be1": jnp.zeros((1, d_model), jnp.float32),
            "g2": jnp.ones((1, d_model), jnp.float32),
            "be2": jnp.zeros((1, d_model), jnp.float32),
        })
    return raw


def pack_params(raw, *, nhead):
    """Transpose (out,in)->(in,out), cast matmul weights to bf16 (biases / LN
    stay f32), pre-pad the head projections to lane-dense width once, and fold
    the 1/sqrt(dh) attention scale into the Q rows of in_proj."""
    d_model = raw["embedding"].shape[1]
    dh = d_model // nhead
    q_scale = jnp.float32(1.0 / math.sqrt(dh))
    t16 = lambda w: jnp.asarray(w.T, jnp.bfloat16)

    def pad_head(w, b):
        V = w.shape[0]
        Vp = _round_up(max(V, 1), _HEAD_PAD)
        wp = jnp.pad(w, ((0, Vp - V), (0, 0)))
        bp = jnp.pad(b, ((0, 0), (0, Vp - V)))
        return t16(wp), bp

    mlm_w_t, mlm_b = pad_head(raw["mlm_w"], raw["mlm_b"])
    cls_w_t, cls_b = pad_head(raw["cls_w"], raw["cls_b"])

    packed = {
        "embedding": raw["embedding"],
        "mlm_w_t": mlm_w_t, "mlm_b": mlm_b, "mlm_dim": raw["mlm_w"].shape[0],
        "cls_w_t": cls_w_t, "cls_b": cls_b, "cls_dim": raw["cls_w"].shape[0],
        "layers": [],
    }
    for lp in raw["layers"]:
        wqkv = lp["wqkv"].at[:d_model, :].multiply(q_scale)   # fold 1/sqrt(dh) into Q
        bqkv = lp["bqkv"].at[:, :d_model].multiply(q_scale)
        packed["layers"].append({
            "wqkv_t": t16(wqkv),            # (D, 3D) bf16, columns [q|k|v]
            "bqkv": bqkv,
            "wo_t": t16(lp["wo"]),          # (D, D)
            "bo": lp["bo"],
            "w1_t": t16(lp["w1"]),          # (D, F)
            "b1": lp["b1"],
            "w2_t": t16(lp["w2"]),          # (F, D)
            "b2": lp["b2"],
            "g1": lp["g1"], "be1": lp["be1"],
            "g2": lp["g2"], "be2": lp["be2"],
        })
    return packed


def positional_encoding(seq_len, d_model):
    pos = jnp.arange(seq_len, dtype=jnp.float32)[:, None]
    div = jnp.exp(jnp.arange(0, d_model, 2, dtype=jnp.float32)
                  * (-math.log(10000.0) / d_model))
    pe = jnp.zeros((seq_len, d_model), jnp.float32)
    pe = pe.at[:, 0::2].set(jnp.sin(pos * div))
    pe = pe.at[:, 1::2].set(jnp.cos(pos * div))
    return pe


# ---------------------------------------------------------------------------
# Forward pass (mirrors AdvancedTransformer.forward, eval mode)
# ---------------------------------------------------------------------------
def advanced_transformer_forward(params, src, *, nhead, task="mlm"):
    B, S = src.shape
    D = params["embedding"].shape[1]

    emb = jnp.take(params["embedding"], src, axis=0)      # (B, S, D) gather (glue)
    pe = positional_encoding(S, D)

    x = emb
    layers = params["layers"]
    if not layers:                                        # degenerate: no encoder
        x = x * jnp.float32(math.sqrt(D)) + pe[None]
    for li, lp in enumerate(layers):
        # first layer fuses x*sqrt(D) + positional encoding into its input read;
        # the residual stream between layers is carried bf16 (LN output ~O(1)),
        # LayerNorm/softmax/residual math stays f32 inside the kernel.
        x = encoder_layer(x, lp, nhead=nhead, pe=pe if li == 0 else None)

    if task == "mlm":
        logits = linear(x.reshape(B * S, D), params["mlm_w_t"],
                        params["mlm_b"], params["mlm_dim"])
        return logits.reshape(B, S, -1)
    elif task == "classification":
        pooled = jnp.mean(x.astype(jnp.float32), axis=1)  # (B, D) glue reduction
        return linear(pooled, params["cls_w_t"], params["cls_b"],
                      params["cls_dim"])
    else:
        raise ValueError(f"Tâche inconnue: {task}")


# ---------------------------------------------------------------------------
if __name__ == "__main__":
    # small, module-consistent shapes
    VOCAB = 50
    NUM_CLASSES = 4
    D_MODEL = 32
    NHEAD = 4
    NUM_LAYERS = 2
    DIM_FF = 64
    B, S = 2, 8

    key = jax.random.PRNGKey(0)
    kp, kt = jax.random.split(key)
    params = pack_params(
        make_params(kp, VOCAB, NUM_CLASSES, D_MODEL, DIM_FF, NUM_LAYERS),
        nhead=NHEAD)
    src = jax.random.randint(kt, (B, S), 0, VOCAB, dtype=jnp.int32)

    out_mlm = advanced_transformer_forward(params, src, nhead=NHEAD, task="mlm")
    out_cls = advanced_transformer_forward(params, src, nhead=NHEAD, task="classification")
    jax.block_until_ready((out_mlm, out_cls))
    assert out_mlm.shape == (B, S, VOCAB)
    assert out_cls.shape == (B, NUM_CLASSES)
    print("KERNEL_OK")
</pallas_src>

<mosaic_0001>
module attributes {stable_mosaic.version = 11 : i64} {
  func.func @encoder_layer_kernel(%arg0: i32, %arg1: memref<1x8x32xf32, #tpu.memory_space<vmem>>, %arg2: memref<8x32xf32, #tpu.memory_space<vmem>>, %arg3: memref<32x96xbf16, #tpu.memory_space<vmem>>, %arg4: memref<1x96xf32, #tpu.memory_space<vmem>>, %arg5: memref<32x32xbf16, #tpu.memory_space<vmem>>, %arg6: memref<1x32xf32, #tpu.memory_space<vmem>>, %arg7: memref<32x64xbf16, #tpu.memory_space<vmem>>, %arg8: memref<1x64xf32, #tpu.memory_space<vmem>>, %arg9: memref<64x32xbf16, #tpu.memory_space<vmem>>, %arg10: memref<1x32xf32, #tpu.memory_space<vmem>>, %arg11: memref<1x32xf32, #tpu.memory_space<vmem>>, %arg12: memref<1x32xf32, #tpu.memory_space<vmem>>, %arg13: memref<1x32xf32, #tpu.memory_space<vmem>>, %arg14: memref<1x32xf32, #tpu.memory_space<vmem>>, %arg15: memref<1x8x32xbf16, #tpu.memory_space<vmem>>) attributes {dimension_semantics = [#tpu.dimension_semantics<parallel>], iteration_bounds = array<i64: 2>, scalar_prefetch = 0 : i64, scratch_operands = 0 : i64, tpu.core_type = #tpu.core_type<tc>, window_params = [{transform_indices = @transform_0, window_bounds = array<i64: 1, 8, 32>}, {pipeline_mode = #tpu.pipeline_mode<synchronous>, transform_indices = @transform_1, window_bounds = array<i64: 8, 32>}, {pipeline_mode = #tpu.pipeline_mode<synchronous>, transform_indices = @transform_2, window_bounds = array<i64: 32, 96>}, {pipeline_mode = #tpu.pipeline_mode<synchronous>, transform_indices = @transform_3, window_bounds = array<i64: 1, 96>}, {pipeline_mode = #tpu.pipeline_mode<synchronous>, transform_indices = @transform_4, window_bounds = array<i64: 32, 32>}, {pipeline_mode = #tpu.pipeline_mode<synchronous>, transform_indices = @transform_5, window_bounds = array<i64: 1, 32>}, {pipeline_mode = #tpu.pipeline_mode<synchronous>, transform_indices = @transform_6, window_bounds = array<i64: 32, 64>}, {pipeline_mode = #tpu.pipeline_mode<synchronous>, transform_indices = @transform_7, window_bounds = array<i64: 1, 64>}, {pipeline_mode = #tpu.pipeline_mode<synchronous>, transform_indices = @transform_8, window_bounds = array<i64: 64, 32>}, {pipeline_mode = #tpu.pipeline_mode<synchronous>, transform_indices = @transform_9, window_bounds = array<i64: 1, 32>}, {pipeline_mode = #tpu.pipeline_mode<synchronous>, transform_indices = @transform_10, window_bounds = array<i64: 1, 32>}, {pipeline_mode = #tpu.pipeline_mode<synchronous>, transform_indices = @transform_11, window_bounds = array<i64: 1, 32>}, {pipeline_mode = #tpu.pipeline_mode<synchronous>, transform_indices = @transform_12, window_bounds = array<i64: 1, 32>}, {pipeline_mode = #tpu.pipeline_mode<synchronous>, transform_indices = @transform_13, window_bounds = array<i64: 1, 32>}, {transform_indices = @transform_14, window_bounds = array<i64: 1, 8, 32>}]} {
    %c0 = arith.constant 0 : index
    %c0_0 = arith.constant 0 : index
    %c0_1 = arith.constant 0 : index
    %0 = vector.load %arg1[%c0, %c0_0, %c0_1] : memref<1x8x32xf32, #tpu.memory_space<vmem>>, vector<1x8x32xf32>
    %1 = vector.shape_cast %0 : vector<1x8x32xf32> to vector<8x32xf32>
    %cst = arith.constant 5.65685415 : f32
    %2 = vector.broadcast %cst : f32 to vector<8x32xf32>
    %3 = arith.mulf %1, %2 : vector<8x32xf32>
    %c0_2 = arith.constant 0 : index
    %c0_3 = arith.constant 0 : index
    %4 = vector.load %arg2[%c0_2, %c0_3] : memref<8x32xf32, #tpu.memory_space<vmem>>, vector<8x32xf32>
    %5 = arith.addf %3, %4 : vector<8x32xf32>
    %6 = arith.truncf %5 : vector<8x32xf32> to vector<8x32xbf16>
    %c0_4 = arith.constant 0 : index
    %c0_5 = arith.constant 0 : index
    %7 = vector.load %arg3[%c0_4, %c0_5] : memref<32x96xbf16, #tpu.memory_space<vmem>>, vector<32x96xbf16>
    %cst_6 = arith.constant dense<0.000000e+00> : vector<8x96xf32>
    %8 = tpu.matmul %6, %7, %cst_6 {dimension_numbers = #tpu.dot_dimension_numbers<[1], [0], [0], [1], [0, 0, 1, 1], [], []>} : vector<8x32xbf16>, vector<32x96xbf16>, vector<8x96xf32> -> vector<8x96xf32>
    %c0_7 = arith.constant 0 : index
    %c0_8 = arith.constant 0 : index
    %9 = vector.load %arg4[%c0_7, %c0_8] : memref<1x96xf32, #tpu.memory_space<vmem>>, vector<1x96xf32>
    %10 = vector.broadcast %9 : vector<1x96xf32> to vector<8x96xf32>
    %11 = arith.addf %8, %10 : vector<8x96xf32>
    %12 = vector.extract_strided_slice %11 {offsets = [0, 0], sizes = [8, 32], strides = [1, 1]} : vector<8x96xf32> to vector<8x32xf32>
    %13 = vector.shape_cast %12 : vector<8x32xf32> to vector<8x4x8xf32>
    %14 = arith.truncf %13 : vector<8x4x8xf32> to vector<8x4x8xbf16>
    %15 = vector.extract_strided_slice %11 {offsets = [0, 32], sizes = [8, 32], strides = [1, 1]} : vector<8x96xf32> to vector<8x32xf32>
    %16 = vector.shape_cast %15 : vector<8x32xf32> to vector<8x4x8xf32>
    %17 = arith.truncf %16 : vector<8x4x8xf32> to vector<8x4x8xbf16>
    %18 = vector.extract_strided_slice %11 {offsets = [0, 64], sizes = [8, 32], strides = [1, 1]} : vector<8x96xf32> to vector<8x32xf32>
    %19 = vector.shape_cast %18 : vector<8x32xf32> to vector<8x4x8xf32>
    %20 = arith.truncf %19 : vector<8x4x8xf32> to vector<8x4x8xbf16>
    "tpu.trace_start"() <{level = 10 : i32, message = "qhd,khd->hqk"}> : () -> ()
    %cst_9 = arith.constant dense<0.000000e+00> : vector<4x8x8xf32>
    %21 = tpu.matmul %14, %17, %cst_9 {dimension_numbers = #tpu.dot_dimension_numbers<[2], [2], [0], [0], [0, 1, 0, 0, 1, 0], [1], [1]>} : vector<8x4x8xbf16>, vector<8x4x8xbf16>, vector<4x8x8xf32> -> vector<4x8x8xf32>
    "tpu.trace_stop"() : () -> ()
    %cst_10 = arith.constant dense<0xFF800000> : vector<4x8xf32>
    %22 = vector.multi_reduction <maximumf>, %21, %cst_10 [2] : vector<4x8x8xf32> to vector<4x8xf32>
    %23 = vector.shape_cast %22 : vector<4x8xf32> to vector<4x8x1xf32>
    %24 = vector.broadcast %23 : vector<4x8x1xf32> to vector<4x8x8xf32>
    %25 = arith.subf %21, %24 : vector<4x8x8xf32>
    %26 = math.exp %25 : vector<4x8x8xf32>
    %cst_11 = arith.constant dense<0.000000e+00> : vector<4x8xf32>
    %27 = vector.multi_reduction <add>, %26, %cst_11 [2] : vector<4x8x8xf32> to vector<4x8xf32>
    %28 = vector.shape_cast %27 : vector<4x8xf32> to vector<4x8x1xf32>
    %29 = tpu.reciprocal %28 {approx = true} : vector<4x8x1xf32> -> vector<4x8x1xf32>
    %30 = vector.broadcast %29 : vector<4x8x1xf32> to vector<4x8x8xf32>
    %31 = arith.mulf %26, %30 : vector<4x8x8xf32>
    %32 = arith.truncf %31 : vector<4x8x8xf32> to vector<4x8x8xbf16>
    "tpu.trace_start"() <{level = 10 : i32, message = "hqk,khd->qhd"}> : () -> ()
    %cst_12 = arith.constant dense<0.000000e+00> : vector<4x8x8xf32>
    %33 = tpu.matmul %20, %32, %cst_12 {dimension_numbers = #tpu.dot_dimension_numbers<[0], [2], [2], [1], [0, 1, 0, 2, 1, 1], [1], [0]>} : vector<8x4x8xbf16>, vector<4x8x8xbf16>, vector<4x8x8xf32> -> vector<4x8x8xf32>
    %34 = tpu.transpose %33, [2, 0, 1] : vector<4x8x8xf32> -> vector<8x4x8xf32>
    "tpu.trace_stop"() : () -> ()
    %35 = vector.shape_cast %34 : vector<8x4x8xf32> to vector<8x32xf32>
    %36 = arith.truncf %35 : vector<8x32xf32> to vector<8x32xbf16>
    %c0_13 = arith.constant 0 : index
    %c0_14 = arith.constant 0 : index
    %37 = vector.load %arg5[%c0_13, %c0_14] : memref<32x32xbf16, #tpu.memory_space<vmem>>, vector<32x32xbf16>
    %cst_15 = arith.constant dense<0.000000e+00> : vector<8x32xf32>
    %38 = tpu.matmul %36, %37, %cst_15 {dimension_numbers = #tpu.dot_dimension_numbers<[1], [0], [0], [1], [0, 0, 1, 1], [], []>} : vector<8x32xbf16>, vector<32x32xbf16>, vector<8x32xf32> -> vector<8x32xf32>
    %c0_16 = arith.constant 0 : index
    %c0_17 = arith.constant 0 : index
    %39 = vector.load %arg6[%c0_16, %c0_17] : memref<1x32xf32, #tpu.memory_space<vmem>>, vector<1x32xf32>
    %40 = vector.broadcast %39 : vector<1x32xf32> to vector<8x32xf32>
    %41 = arith.addf %38, %40 : vector<8x32xf32>
    %42 = arith.addf %5, %41 : vector<8x32xf32>
    %cst_18 = arith.constant dense<0.000000e+00> : vector<8xf32>
    %43 = vector.multi_reduction <add>, %42, %cst_18 [1] : vector<8x32xf32> to vector<8xf32>
    %44 = vector.shape_cast %43 : vector<8xf32> to vector<8x1xf32>
    %cst_19 = arith.constant 3.200000e+01 : f32
    %45 = vector.broadcast %cst_19 : f32 to vector<8x1xf32>
    %46 = arith.divf %44, %45 : vector<8x1xf32>
    %47 = vector.broadcast %46 : vector<8x1xf32> to vector<8x32xf32>
    %48 = arith.subf %42, %47 : vector<8x32xf32>
    %49 = arith.mulf %48, %48 : vector<8x32xf32>
    %cst_20 = arith.constant dense<0.000000e+00> : vector<8xf32>
    %50 = vector.multi_reduction <add>, %49, %cst_20 [1] : vector<8x32xf32> to vector<8xf32>
    %51 = vector.shape_cast %50 : vector<8xf32> to vector<8x1xf32>
    %cst_21 = arith.constant 3.200000e+01 : f32
    %52 = vector.broadcast %cst_21 : f32 to vector<8x1xf32>
    %53 = arith.divf %51, %52 : vector<8x1xf32>
    %54 = vector.broadcast %46 : vector<8x1xf32> to vector<8x32xf32>
    %55 = arith.subf %42, %54 : vector<8x32xf32>
    %cst_22 = arith.constant 9.99999974E-6 : f32
    %56 = vector.broadcast %cst_22 : f32 to vector<8x1xf32>
    %57 = arith.addf %53, %56 : vector<8x1xf32>
    %58 = math.rsqrt %57 : vector<8x1xf32>
    %59 = vector.broadcast %58 : vector<8x1xf32> to vector<8x32xf32>
    %60 = arith.mulf %55, %59 : vector<8x32xf32>
    %c0_23 = arith.constant 0 : index
    %c0_24 = arith.constant 0 : index
    %61 = vector.load %arg11[%c0_23, %c0_24] : memref<1x32xf32, #tpu.memory_space<vmem>>, vector<1x32xf32>
    %62 = vector.broadcast %61 : vector<1x32xf32> to vector<8x32xf32>
    %63 = arith.mulf %60, %62 : vector<8x32xf32>
    %c0_25 = arith.constant 0 : index
    %c0_26 = arith.constant 0 : index
    %64 = vector.load %arg12[%c0_25, %c0_26] : memref<1x32xf32, #tpu.memory_space<vmem>>, vector<1x32xf32>
    %65 = vector.broadcast %64 : vector<1x32xf32> to vector<8x32xf32>
    %66 = arith.addf %63, %65 : vector<8x32xf32>
    %67 = arith.truncf %66 : vector<8x32xf32> to vector<8x32xbf16>
    %c0_27 = arith.constant 0 : index
    %c0_28 = arith.constant 0 : index
    %68 = vector.load %arg7[%c0_27, %c0_28] : memref<32x64xbf16, #tpu.memory_space<vmem>>, vector<32x64xbf16>
    %cst_29 = arith.constant dense<0.000000e+00> : vector<8x64xf32>
    %69 = tpu.matmul %67, %68, %cst_29 {dimension_numbers = #tpu.dot_dimension_numbers<[1], [0], [0], [1], [0, 0, 1, 1], [], []>} : vector<8x32xbf16>, vector<32x64xbf16>, vector<8x64xf32> -> vector<8x64xf32>
    %c0_30 = arith.constant 0 : index
    %c0_31 = arith.constant 0 : index
    %70 = vector.load %arg8[%c0_30, %c0_31] : memref<1x64xf32, #tpu.memory_space<vmem>>, vector<1x64xf32>
    %71 = vector.broadcast %70 : vector<1x64xf32> to vector<8x64xf32>
    %72 = arith.addf %69, %71 : vector<8x64xf32>
    %cst_32 = arith.constant 0.000000e+00 : f32
    %73 = vector.broadcast %cst_32 : f32 to vector<8x64xf32>
    %74 = arith.maximumf %72, %73 : vector<8x64xf32>
    %75 = arith.truncf %74 : vector<8x64xf32> to vector<8x64xbf16>
    %c0_33 = arith.constant 0 : index
    %c0_34 = arith.constant 0 : index
    %76 = vector.load %arg9[%c0_33, %c0_34] : memref<64x32xbf16, #tpu.memory_space<vmem>>, vector<64x32xbf16>
    %cst_35 = arith.constant dense<0.000000e+00> : vector<8x32xf32>
    %77 = tpu.matmul %75, %76, %cst_35 {dimension_numbers = #tpu.dot_dimension_numbers<[1], [0], [0], [1], [0, 0, 1, 1], [], []>} : vector<8x64xbf16>, vector<64x32xbf16>, vector<8x32xf32> -> vector<8x32xf32>
    %c0_36 = arith.constant 0 : index
    %c0_37 = arith.constant 0 : index
    %78 = vector.load %arg10[%c0_36, %c0_37] : memref<1x32xf32, #tpu.memory_space<vmem>>, vector<1x32xf32>
    %79 = vector.broadcast %78 : vector<1x32xf32> to vector<8x32xf32>
    %80 = arith.addf %77, %79 : vector<8x32xf32>
    %81 = arith.addf %66, %80 : vector<8x32xf32>
    %cst_38 = arith.constant dense<0.000000e+00> : vector<8xf32>
    %82 = vector.multi_reduction <add>, %81, %cst_38 [1] : vector<8x32xf32> to vector<8xf32>
    %83 = vector.shape_cast %82 : vector<8xf32> to vector<8x1xf32>
    %cst_39 = arith.constant 3.200000e+01 : f32
    %84 = vector.broadcast %cst_39 : f32 to vector<8x1xf32>
    %85 = arith.divf %83, %84 : vector<8x1xf32>
    %86 = vector.broadcast %85 : vector<8x1xf32> to vector<8x32xf32>
    %87 = arith.subf %81, %86 : vector<8x32xf32>
    %88 = arith.mulf %87, %87 : vector<8x32xf32>
    %cst_40 = arith.constant dense<0.000000e+00> : vector<8xf32>
    %89 = vector.multi_reduction <add>, %88, %cst_40 [1] : vector<8x32xf32> to vector<8xf32>
    %90 = vector.shape_cast %89 : vector<8xf32> to vector<8x1xf32>
    %cst_41 = arith.constant 3.200000e+01 : f32
    %91 = vector.broadcast %cst_41 : f32 to vector<8x1xf32>
    %92 = arith.divf %90, %91 : vector<8x1xf32>
    %93 = vector.broadcast %85 : vector<8x1xf32> to vector<8x32xf32>
    %94 = arith.subf %81, %93 : vector<8x32xf32>
    %cst_42 = arith.constant 9.99999974E-6 : f32
    %95 = vector.broadcast %cst_42 : f32 to vector<8x1xf32>
    %96 = arith.addf %92, %95 : vector<8x1xf32>
    %97 = math.rsqrt %96 : vector<8x1xf32>
    %98 = vector.broadcast %97 : vector<8x1xf32> to vector<8x32xf32>
    %99 = arith.mulf %94, %98 : vector<8x32xf32>
    %c0_43 = arith.constant 0 : index
    %c0_44 = arith.constant 0 : index
    %100 = vector.load %arg13[%c0_43, %c0_44] : memref<1x32xf32, #tpu.memory_space<vmem>>, vector<1x32xf32>
    %101 = vector.broadcast %100 : vector<1x32xf32> to vector<8x32xf32>
    %102 = arith.mulf %99, %101 : vector<8x32xf32>
    %c0_45 = arith.constant 0 : index
    %c0_46 = arith.constant 0 : index
    %103 = vector.load %arg14[%c0_45, %c0_46] : memref<1x32xf32, #tpu.memory_space<vmem>>, vector<1x32xf32>
    %104 = vector.broadcast %103 : vector<1x32xf32> to vector<8x32xf32>
    %105 = arith.addf %102, %104 : vector<8x32xf32>
    %106 = arith.truncf %105 : vector<8x32xf32> to vector<8x32xbf16>
    %c0_47 = arith.constant 0 : index
    %c0_48 = arith.constant 0 : index
    %c0_49 = arith.constant 0 : index
    %107 = vector.load %arg15[%c0_47, %c0_48, %c0_49] : memref<1x8x32xbf16, #tpu.memory_space<vmem>>, vector<1x8x32xbf16>
    %108 = vector.shape_cast %107 : vector<1x8x32xbf16> to vector<8x32xbf16>
    %109 = vector.shape_cast %106 : vector<8x32xbf16> to vector<1x8x32xbf16>
    tpu.vector_store %arg15[%c0_47, %c0_48, %c0_49], %109 {strides = array<i32>} : memref<1x8x32xbf16, #tpu.memory_space<vmem>>, vector<1x8x32xbf16>,
    return
  }
  func.func @transform_0(%arg0: i32) -> (i32, i32, i32) {
    %c0_i32 = arith.constant 0 : i32
    %c0_i32_0 = arith.constant 0 : i32
    %c0_i32_1 = arith.constant 0 : i32
    return %arg0, %c0_i32, %c0_i32_0 : i32, i32, i32
  }
  func.func @transform_1(%arg0: i32) -> (i32, i32) {
    %c0_i32 = arith.constant 0 : i32
    %c0_i32_0 = arith.constant 0 : i32
    %c0_i32_1 = arith.constant 0 : i32
    return %c0_i32, %c0_i32_0 : i32, i32
  }
  func.func @transform_2(%arg0: i32) -> (i32, i32) {
    %c0_i32 = arith.constant 0 : i32
    %c0_i32_0 = arith.constant 0 : i32
    %c0_i32_1 = arith.constant 0 : i32
    return %c0_i32, %c0_i32_0 : i32, i32
  }
  func.func @transform_3(%arg0: i32) -> (i32, i32) {
    %c0_i32 = arith.constant 0 : i32
    %c0_i32_0 = arith.constant 0 : i32
    %c0_i32_1 = arith.constant 0 : i32
    return %c0_i32, %c0_i32_0 : i32, i32
  }
  func.func @transform_4(%arg0: i32) -> (i32, i32) {
    %c0_i32 = arith.constant 0 : i32
    %c0_i32_0 = arith.constant 0 : i32
    %c0_i32_1 = arith.constant 0 : i32
    return %c0_i32, %c0_i32_0 : i32, i32
  }
  func.func @transform_5(%arg0: i32) -> (i32, i32) {
    %c0_i32 = arith.constant 0 : i32
    %c0_i32_0 = arith.constant 0 : i32
    %c0_i32_1 = arith.constant 0 : i32
    return %c0_i32, %c0_i32_0 : i32, i32
  }
  func.func @transform_6(%arg0: i32) -> (i32, i32) {
    %c0_i32 = arith.constant 0 : i32
    %c0_i32_0 = arith.constant 0 : i32
    %c0_i32_1 = arith.constant 0 : i32
    return %c0_i32, %c0_i32_0 : i32, i32
  }
  func.func @transform_7(%arg0: i32) -> (i32, i32) {
    %c0_i32 = arith.constant 0 : i32
    %c0_i32_0 = arith.constant 0 : i32
    %c0_i32_1 = arith.constant 0 : i32
    return %c0_i32, %c0_i32_0 : i32, i32
  }
  func.func @transform_8(%arg0: i32) -> (i32, i32) {
    %c0_i32 = arith.constant 0 : i32
    %c0_i32_0 = arith.constant 0 : i32
    %c0_i32_1 = arith.constant 0 : i32
    return %c0_i32, %c0_i32_0 : i32, i32
  }
  func.func @transform_9(%arg0: i32) -> (i32, i32) {
    %c0_i32 = arith.constant 0 : i32
    %c0_i32_0 = arith.constant 0 : i32
    %c0_i32_1 = arith.constant 0 : i32
    return %c0_i32, %c0_i32_0 : i32, i32
  }
  func.func @transform_10(%arg0: i32) -> (i32, i32) {
    %c0_i32 = arith.constant 0 : i32
    %c0_i32_0 = arith.constant 0 : i32
    %c0_i32_1 = arith.constant 0 : i32
    return %c0_i32, %c0_i32_0 : i32, i32
  }
  func.func @transform_11(%arg0: i32) -> (i32, i32) {
    %c0_i32 = arith.constant 0 : i32
    %c0_i32_0 = arith.constant 0 : i32
    %c0_i32_1 = arith.constant 0 : i32
    return %c0_i32, %c0_i32_0 : i32, i32
  }
  func.func @transform_12(%arg0: i32) -> (i32, i32) {
    %c0_i32 = arith.constant 0 : i32
    %c0_i32_0 = arith.constant 0 : i32
    %c0_i32_1 = arith.constant 0 : i32
    return %c0_i32, %c0_i32_0 : i32, i32
  }
  func.func @transform_13(%arg0: i32) -> (i32, i32) {
    %c0_i32 = arith.constant 0 : i32
    %c0_i32_0 = arith.constant 0 : i32
    %c0_i32_1 = arith.constant 0 : i32
    return %c0_i32, %c0_i32_0 : i32, i32
  }
  func.func @transform_14(%arg0: i32) -> (i32, i32, i32) {
    %c0_i32 = arith.constant 0 : i32
    %c0_i32_0 = arith.constant 0 : i32
    %c0_i32_1 = arith.constant 0 : i32
    return %arg0, %c0_i32, %c0_i32_0 : i32, i32, i32
  }
}

</mosaic_0001>

<llo_original>
// kernel: tpu_custom_call.1
$region0: #{tpu_custom_call.1}
  #allocation0 [shape = 'u32[]', space=smem, size = 0x4, offset = 0x4, fixed_abs, tag = 'smem constant byte address 0x4 - core index']
  #allocation1 [shape = 'u32[144,128]{1,0:T(1,128)}', space=vmem, size = 0x12000, scoped, tag = 'internal scratch']
  %s0 = inlined_call_operand.hbm [shape: f32[2,8,32], index: 0, kind: input, shape index: {}]
  %s1 = inlined_call_operand.hbm [shape: f32[8,32], index: 1, kind: input, shape index: {}]
  %s2 = inlined_call_operand.hbm [shape: bf16[32,96], index: 2, kind: input, shape index: {}]
  %s3 = inlined_call_operand.hbm [shape: f32[1,96], index: 3, kind: input, shape index: {}]
  %s4 = inlined_call_operand.hbm [shape: bf16[32,32], index: 4, kind: input, shape index: {}]
  %s5 = inlined_call_operand.hbm [shape: f32[1,32], index: 5, kind: input, shape index: {}]
  %s6 = inlined_call_operand.hbm [shape: bf16[32,64], index: 6, kind: input, shape index: {}]
  %s7 = inlined_call_operand.hbm [shape: f32[1,64], index: 7, kind: input, shape index: {}]
  %s8 = inlined_call_operand.hbm [shape: bf16[64,32], index: 8, kind: input, shape index: {}]
  %s9 = inlined_call_operand.hbm [shape: f32[1,32], index: 9, kind: input, shape index: {}]
  %s10 = inlined_call_operand.hbm [shape: f32[1,32], index: 10, kind: input, shape index: {}]
  %s11 = inlined_call_operand.hbm [shape: f32[1,32], index: 11, kind: input, shape index: {}]
  %s12 = inlined_call_operand.hbm [shape: f32[1,32], index: 12, kind: input, shape index: {}]
  %s13 = inlined_call_operand.hbm [shape: f32[1,32], index: 13, kind: input, shape index: {}]
  %s14 = inlined_call_operand.hbm [shape: bf16[2,8,32], index: 14, kind: output, shape index: {}]
  %s15 = sld [smem:[#allocation0]]
  $region145: #{tpu_custom_call.1} parent=0
    _
  %s17 = ssub.s32 1, %s15
  %s18 = scalar_select 0, %s17, %s15
  $region1: #{tpu_custom_call.1} parent=0
    #allocation2 [shape = 'u8[8192]{0}', space=vmem, size = 0x2000, scoped, tag = 'input window, operand 0']
    #allocation3 [shape = 's32[2]{0}', space=sflag, size = 0x8, scoped, tag = 'scoped memory for tpu_custom_call.1']
    #allocation4 [shape = 's32[2]{0}', space=sflag, size = 0x8, scoped, tag = 'scoped memory for tpu_custom_call.1']
    #allocation5 [shape = 'u8[4096]{0}', space=vmem, size = 0x1000, scoped, tag = 'input window, operand 1, single buffered']
    #allocation6 [shape = 's32[1]{0}', space=sflag, size = 0x4, scoped, tag = 'scoped memory for tpu_custom_call.1']
    #allocation7 [shape = 'u8[8192]{0}', space=vmem, size = 0x2000, scoped, tag = 'input window, operand 2, single buffered']
    #allocation8 [shape = 'u8[512]{0}', space=vmem, size = 0x400, scoped, tag = 'input window, operand 3, single buffered']
    #allocation9 [shape = 's32[1]{0}', space=sflag, size = 0x4, scoped, tag = 'scoped memory for tpu_custom_call.1']
    #allocation10 [shape = 'u8[8192]{0}', space=vmem, size = 0x2000, scoped, tag = 'input window, operand 4, single buffered']
    #allocation11 [shape = 'u8[512]{0}', space=vmem, size = 0x400, scoped, tag = 'input window, operand 5, single buffered']
    #allocation12 [shape = 's32[1]{0}', space=sflag, size = 0x4, scoped, tag = 'scoped memory for tpu_custom_call.1']
    #allocation13 [shape = 'u8[8192]{0}', space=vmem, size = 0x2000, scoped, tag = 'input window, operand 6, single buffered']
    #allocation14 [shape = 'u8[512]{0}', space=vmem, size = 0x400, scoped, tag = 'input window, operand 7, single buffered']
    #allocation15 [shape = 's32[1]{0}', space=sflag, size = 0x4, scoped, tag = 'scoped memory for tpu_custom_call.1']
    #allocation16 [shape = 'u8[16384]{0}', space=vmem, size = 0x4000, scoped, tag = 'input window, operand 8, single buffered']
    #allocation17 [shape = 'u8[512]{0}', space=vmem, size = 0x400, scoped, tag = 'input window, operand 9, single buffered']
    #allocation18 [shape = 's32[1]{0}', space=sflag, size = 0x4, scoped, tag = 'scoped memory for tpu_custom_call.1']
    #allocation19 [shape = 'u8[512]{0}', space=vmem, size = 0x400, scoped, tag = 'input window, operand 10, single buffered']
    #allocation20 [shape = 'u8[512]{0}', space=vmem, size = 0x400, scoped, tag = 'input window, operand 11, single buffered']
    #allocation21 [shape = 's32[1]{0}', space=sflag, size = 0x4, scoped, tag = 'scoped memory for tpu_custom_call.1']
    #allocation22 [shape = 'u8[512]{0}', space=vmem, size = 0x400, scoped, tag = 'input window, operand 12, single buffered']
    #allocation23 [shape = 'u8[512]{0}', space=vmem, size = 0x400, scoped, tag = 'input window, operand 13, single buffered']
    #allocation24 [shape = 's32[1]{0}', space=sflag, size = 0x4, scoped, tag = 'scoped memory for tpu_custom_call.1']
    #allocation25 [shape = 'u8[4096]{0}', space=vmem, size = 0x1000, scoped, tag = 'output window, operand 0']
    %19 = vsyncpa [#allocation3], 0
    %s20 = scalar_lea.sflag [#allocation3], 1
    %21 = vsyncpa %s20, 0
    %22 = vsyncpa [#allocation6], 0
    %23 = vsyncpa [#allocation9], 0
    %24 = vsyncpa [#allocation12], 0
    %25 = vsyncpa [#allocation15], 0
    %26 = vsyncpa [#allocation18], 0
    %27 = vsyncpa [#allocation21], 0
    %28 = vsyncpa [#allocation24], 0
    %29 = vsyncpa [#allocation4], 0
    %s30 = scalar_lea.sflag [#allocation4], 1
    %31 = vsyncpa %s30, 0
    loop: start=0, step=1, limit=4
    $region2: #{tpu_custom_call.1} parent=1 // loop_pre_header
      _
    $region3: #{tpu_custom_call.1} parent=1 // loop_header
      %s33 = sphi 0, %s37
      %p34 = scmp.ge.s32.totalorder %s33, 4
      %s43 = sphi 0, %s45
      %s46 = sphi 0, %s43
      %s47 = sphi 0, %s46
      %s63 = sphi 0, %s47
      %s67 = sphi 0, %s67
      %s69 = sphi 0, %s67
      %s70 = sphi 0, %s69
      %s84 = sphi 0, %s70
      %s88 = sphi 0, %s88
      %s90 = sphi 0, %s88
      %s91 = sphi 0, %s90
      %s105 = sphi 0, %s91
      %s109 = sphi 0, %s109
      %s111 = sphi 0, %s109
      %s112 = sphi 0, %s111
      %s126 = sphi 0, %s112
      %s130 = sphi 0, %s130
      %s132 = sphi 0, %s130
      %s133 = sphi 0, %s132
      %s147 = sphi 0, %s133
      %s151 = sphi 0, %s151
      %s153 = sphi 0, %s151
      %s154 = sphi 0, %s153
      %s168 = sphi 0, %s154
      %s172 = sphi 0, %s172
      %s174 = sphi 0, %s172
      %s175 = sphi 0, %s174
      %s189 = sphi 0, %s175
      %s193 = sphi 0, %s193
      %s195 = sphi 0, %s193
      %s196 = sphi 0, %s195
      %s210 = sphi 0, %s196
      %s214 = sphi 0, %s214
      %s216 = sphi 0, %s214
      %s217 = sphi 0, %s216
      %s231 = sphi 0, %s217
      %s235 = sphi 0, %s235
      %s237 = sphi 0, %s235
      %s238 = sphi 0, %s237
      %s252 = sphi 0, %s238
      %s256 = sphi 0, %s256
      %s258 = sphi 0, %s256
      %s259 = sphi 0, %s258
      %s273 = sphi 0, %s259
      %s277 = sphi 0, %s277
      %s279 = sphi 0, %s277
      %s280 = sphi 0, %s279
      %s294 = sphi 0, %s280
      %s298 = sphi 0, %s298
      %s300 = sphi 0, %s298
      %s301 = sphi 0, %s300
      %s315 = sphi 0, %s301
      %s319 = sphi 0, %s319
      %s321 = sphi 0, %s319
      %s322 = sphi 0, %s321
      %s336 = sphi 0, %s322
      %s342 = sphi 0, %s344
      %s345 = sphi 0, %s342
      %s346 = sphi 0, %s345
      %s362 = sphi 0, %s346
    $region4: #{tpu_custom_call.1} parent=1 // loop_header_branch
      %36 = sbr.rel (%p34) target = $region8
    $region5: #{tpu_custom_call.1} parent=1 // loop_body
      %s38 = ssub.s32 %s33, 1
      %s39 = ssub.s32 %s33, 2
      %s40 = sadd.s32 %s33, 1
      %s41 = ssub.s32 %s33, %s40
      %p42 = scmp.eq.s32.totalorder %s41, 0
      %s44 = sadd.s32 %s43, 1
      %s45 = scalar_select %p42, %s43, %s44
      %p48 = pneg %p42
      %p49 = scmp.eq.s32.totalorder %s33, 1
      %p50 = por %p48, %p49
      %p51 = scmp.ne.s32.totalorder %s43, %s46
      %p52 = scmp.eq.s32.totalorder %s33, 0
      %p53 = por %p51, %p52
      %p54 = scmp.ne.s32.totalorder %s43, %s46
      %p55 = scmp.eq.s32.totalorder %s38, 1
      %p56 = por %p54, %p55
      %p57 = scmp.ne.s32.totalorder %s46, %s47
      %p58 = scmp.eq.s32.totalorder %s38, 0
      %p59 = por %p57, %p58
      %p60 = scmp.ne.s32.totalorder %s46, %s47
      %p61 = scmp.eq.s32.totalorder %s39, 1
      %p62 = por %p60, %p61
      %p64 = scmp.ne.s32.totalorder %s47, %s63
      %p65 = scmp.eq.s32.totalorder %s39, 0
      %p66 = por %p64, %p65
      %s68 = sadd.s32 %s67, 1
      %p71 = scmp.eq.s32.totalorder %s33, 1
      %p72 = scmp.ne.s32.totalorder %s67, %s69
      %p73 = scmp.eq.s32.totalorder %s33, 0
      %p74 = por %p72, %p73
      %p75 = scmp.ne.s32.totalorder %s67, %s69
      %p76 = scmp.eq.s32.totalorder %s38, 1
      %p77 = por %p75, %p76
      %p78 = scmp.ne.s32.totalorder %s69, %s70
      %p79 = scmp.eq.s32.totalorder %s38, 0
      %p80 = por %p78, %p79
      %p81 = scmp.ne.s32.totalorder %s69, %s70
      %p82 = scmp.eq.s32.totalorder %s39, 1
      %p83 = por %p81, %p82
      %p85 = scmp.ne.s32.totalorder %s70, %s84
      %p86 = scmp.eq.s32.totalorder %s39, 0
      %p87 = por %p85, %p86
      %s89 = sadd.s32 %s88, 1
      %p92 = scmp.eq.s32.totalorder %s33, 1
      %p93 = scmp.ne.s32.totalorder %s88, %s90
      %p94 = scmp.eq.s32.totalorder %s33, 0
      %p95 = por %p93, %p94
      %p96 = scmp.ne.s32.totalorder %s88, %s90
      %p97 = scmp.eq.s32.totalorder %s38, 1
      %p98 = por %p96, %p97
      %p99 = scmp.ne.s32.totalorder %s90, %s91
      %p100 = scmp.eq.s32.totalorder %s38, 0
      %p101 = por %p99, %p100
      %p102 = scmp.ne.s32.totalorder %s90, %s91
      %p103 = scmp.eq.s32.totalorder %s39, 1
      %p104 = por %p102, %p103
      %p106 = scmp.ne.s32.totalorder %s91, %s105
      %p107 = scmp.eq.s32.totalorder %s39, 0
      %p108 = por %p106, %p107
      %s110 = sadd.s32 %s109, 1
      %p113 = scmp.eq.s32.totalorder %s33, 1
      %p114 = scmp.ne.s32.totalorder %s109, %s111
      %p115 = scmp.eq.s32.totalorder %s33, 0
      %p116 = por %p114, %p115
      %p117 = scmp.ne.s32.totalorder %s109, %s111
      %p118 = scmp.eq.s32.totalorder %s38, 1
      %p119 = por %p117, %p118
      %p120 = scmp.ne.s32.totalorder %s111, %s112
      %p121 = scmp.eq.s32.totalorder %s38, 0
      %p122 = por %p120, %p121
      %p123 = scmp.ne.s32.totalorder %s111, %s112
      %p124 = scmp.eq.s32.totalorder %s39, 1
      %p125 = por %p123, %p124
      %p127 = scmp.ne.s32.totalorder %s112, %s126
      %p128 = scmp.eq.s32.totalorder %s39, 0
      %p129 = por %p127, %p128
      %s131 = sadd.s32 %s130, 1
      %p134 = scmp.eq.s32.totalorder %s33, 1
      %p135 = scmp.ne.s32.totalorder %s130, %s132
      %p136 = scmp.eq.s32.totalorder %s33, 0
      %p137 = por %p135, %p136
      %p138 = scmp.ne.s32.totalorder %s130, %s132
      %p139 = scmp.eq.s32.totalorder %s38, 1
      %p140 = por %p138, %p139
      %p141 = scmp.ne.s32.totalorder %s132, %s133
      %p142 = scmp.eq.s32.totalorder %s38, 0
      %p143 = por %p141, %p142
      %p144 = scmp.ne.s32.totalorder %s132, %s133
      %p145 = scmp.eq.s32.totalorder %s39, 1
      %p146 = por %p144, %p145
      %p148 = scmp.ne.s32.totalorder %s133, %s147
      %p149 = scmp.eq.s32.totalorder %s39, 0
      %p150 = por %p148, %p149
      %s152 = sadd.s32 %s151, 1
      %p155 = scmp.eq.s32.totalorder %s33, 1
      %p156 = scmp.ne.s32.totalorder %s151, %s153
      %p157 = scmp.eq.s32.totalorder %s33, 0
      %p158 = por %p156, %p157
      %p159 = scmp.ne.s32.totalorder %s151, %s153
      %p160 = scmp.eq.s32.totalorder %s38, 1
      %p161 = por %p159, %p160
      %p162 = scmp.ne.s32.totalorder %s153, %s154
      %p163 = scmp.eq.s32.totalorder %s38, 0
      %p164 = por %p162, %p163
      %p165 = scmp.ne.s32.totalorder %s153, %s154
      %p166 = scmp.eq.s32.totalorder %s39, 1
      %p167 = por %p165, %p166
      %p169 = scmp.ne.s32.totalorder %s154, %s168
      %p170 = scmp.eq.s32.totalorder %s39, 0
      %p171 = por %p169, %p170
      %s173 = sadd.s32 %s172, 1
      %p176 = scmp.eq.s32.totalorder %s33, 1
      %p177 = scmp.ne.s32.totalorder %s172, %s174
      %p178 = scmp.eq.s32.totalorder %s33, 0
      %p179 = por %p177, %p178
      %p180 = scmp.ne.s32.totalorder %s172, %s174
      %p181 = scmp.eq.s32.totalorder %s38, 1
      %p182 = por %p180, %p181
      %p183 = scmp.ne.s32.totalorder %s174, %s175
      %p184 = scmp.eq.s32.totalorder %s38, 0
      %p185 = por %p183, %p184
      %p186 = scmp.ne.s32.totalorder %s174, %s175
      %p187 = scmp.eq.s32.totalorder %s39, 1
      %p188 = por %p186, %p187
      %p190 = scmp.ne.s32.totalorder %s175, %s189
      %p191 = scmp.eq.s32.totalorder %s39, 0
      %p192 = por %p190, %p191
      %s194 = sadd.s32 %s193, 1
      %p197 = scmp.eq.s32.totalorder %s33, 1
      %p198 = scmp.ne.s32.totalorder %s193, %s195
      %p199 = scmp.eq.s32.totalorder %s33, 0
      %p200 = por %p198, %p199
      %p201 = scmp.ne.s32.totalorder %s193, %s195
      %p202 = scmp.eq.s32.totalorder %s38, 1
      %p203 = por %p201, %p202
      %p204 = scmp.ne.s32.totalorder %s195, %s196
      %p205 = scmp.eq.s32.totalorder %s38, 0
      %p206 = por %p204, %p205
      %p207 = scmp.ne.s32.totalorder %s195, %s196
      %p208 = scmp.eq.s32.totalorder %s39, 1
      %p209 = por %p207, %p208
      %p211 = scmp.ne.s32.totalorder %s196, %s210
      %p212 = scmp.eq.s32.totalorder %s39, 0
      %p213 = por %p211, %p212
      %s215 = sadd.s32 %s214, 1
      %p218 = scmp.eq.s32.totalorder %s33, 1
      %p219 = scmp.ne.s32.totalorder %s214, %s216
      %p220 = scmp.eq.s32.totalorder %s33, 0
      %p221 = por %p219, %p220
      %p222 = scmp.ne.s32.totalorder %s214, %s216
      %p223 = scmp.eq.s32.totalorder %s38, 1
      %p224 = por %p222, %p223
      %p225 = scmp.ne.s32.totalorder %s216, %s217
      %p226 = scmp.eq.s32.totalorder %s38, 0
      %p227 = por %p225, %p226
      %p228 = scmp.ne.s32.totalorder %s216, %s217
      %p229 = scmp.eq.s32.totalorder %s39, 1
      %p230 = por %p228, %p229
      %p232 = scmp.ne.s32.totalorder %s217, %s231
      %p233 = scmp.eq.s32.totalorder %s39, 0
      %p234 = por %p232, %p233
      %s236 = sadd.s32 %s235, 1
      %p239 = scmp.eq.s32.totalorder %s33, 1
      %p240 = scmp.ne.s32.totalorder %s235, %s237
      %p241 = scmp.eq.s32.totalorder %s33, 0
      %p242 = por %p240, %p241
      %p243 = scmp.ne.s32.totalorder %s235, %s237
      %p244 = scmp.eq.s32.totalorder %s38, 1
      %p245 = por %p243, %p244
      %p246 = scmp.ne.s32.totalorder %s237, %s238
      %p247 = scmp.eq.s32.totalorder %s38, 0
      %p248 = por %p246, %p247
      %p249 = scmp.ne.s32.totalorder %s237, %s238
      %p250 = scmp.eq.s32.totalorder %s39, 1
      %p251 = por %p249, %p250
      %p253 = scmp.ne.s32.totalorder %s238, %s252
      %p254 = scmp.eq.s32.totalorder %s39, 0
      %p255 = por %p253, %p254
      %s257 = sadd.s32 %s256, 1
      %p260 = scmp.eq.s32.totalorder %s33, 1
      %p261 = scmp.ne.s32.totalorder %s256, %s258
      %p262 = scmp.eq.s32.totalorder %s33, 0
      %p263 = por %p261, %p262
      %p264 = scmp.ne.s32.totalorder %s256, %s258
      %p265 = scmp.eq.s32.totalorder %s38, 1
      %p266 = por %p264, %p265
      %p267 = scmp.ne.s32.totalorder %s258, %s259
      %p268 = scmp.eq.s32.totalorder %s38, 0
      %p269 = por %p267, %p268
      %p270 = scmp.ne.s32.totalorder %s258, %s259
      %p271 = scmp.eq.s32.totalorder %s39, 1
      %p272 = por %p270, %p271
      %p274 = scmp.ne.s32.totalorder %s259, %s273
      %p275 = scmp.eq.s32.totalorder %s39, 0
      %p276 = por %p274, %p275
      %s278 = sadd.s32 %s277, 1
      %p281 = scmp.eq.s32.totalorder %s33, 1
      %p282 = scmp.ne.s32.totalorder %s277, %s279
      %p283 = scmp.eq.s32.totalorder %s33, 0
      %p284 = por %p282, %p283
      %p285 = scmp.ne.s32.totalorder %s277, %s279
      %p286 = scmp.eq.s32.totalorder %s38, 1
      %p287 = por %p285, %p286
      %p288 = scmp.ne.s32.totalorder %s279, %s280
      %p289 = scmp.eq.s32.totalorder %s38, 0
      %p290 = por %p288, %p289
      %p291 = scmp.ne.s32.totalorder %s279, %s280
      %p292 = scmp.eq.s32.totalorder %s39, 1
      %p293 = por %p291, %p292
      %p295 = scmp.ne.s32.totalorder %s280, %s294
      %p296 = scmp.eq.s32.totalorder %s39, 0
      %p297 = por %p295, %p296
      %s299 = sadd.s32 %s298, 1
      %p302 = scmp.eq.s32.totalorder %s33, 1
      %p303 = scmp.ne.s32.totalorder %s298, %s300
      %p304 = scmp.eq.s32.totalorder %s33, 0
      %p305 = por %p303, %p304
      %p306 = scmp.ne.s32.totalorder %s298, %s300
      %p307 = scmp.eq.s32.totalorder %s38, 1
      %p308 = por %p306, %p307
      %p309 = scmp.ne.s32.totalorder %s300, %s301
      %p310 = scmp.eq.s32.totalorder %s38, 0
      %p311 = por %p309, %p310
      %p312 = scmp.ne.s32.totalorder %s300, %s301
      %p313 = scmp.eq.s32.totalorder %s39, 1
      %p314 = por %p312, %p313
      %p316 = scmp.ne.s32.totalorder %s301, %s315
      %p317 = scmp.eq.s32.totalorder %s39, 0
      %p318 = por %p316, %p317
      %s320 = sadd.s32 %s319, 1
      %p323 = scmp.eq.s32.totalorder %s33, 1
      %p324 = scmp.ne.s32.totalorder %s319, %s321
      %p325 = scmp.eq.s32.totalorder %s33, 0
      %p326 = por %p324, %p325
      %p327 = scmp.ne.s32.totalorder %s319, %s321
      %p328 = scmp.eq.s32.totalorder %s38, 1
      %p329 = por %p327, %p328
      %p330 = scmp.ne.s32.totalorder %s321, %s322
      %p331 = scmp.eq.s32.totalorder %s38, 0
      %p332 = por %p330, %p331
      %p333 = scmp.ne.s32.totalorder %s321, %s322
      %p334 = scmp.eq.s32.totalorder %s39, 1
      %p335 = por %p333, %p334
      %p337 = scmp.ne.s32.totalorder %s322, %s336
      %p338 = scmp.eq.s32.totalorder %s39, 0
      %p339 = por %p337, %p338
      %s340 = ssub.s32 %s33, %s40
      %p341 = scmp.eq.s32.totalorder %s340, 0
      %s343 = sadd.s32 %s342, 1
      %s344 = scalar_select %p341, %s342, %s343
      %p347 = pneg %p341
      %p348 = scmp.eq.s32.totalorder %s33, 1
      %p349 = por %p347, %p348
      %p350 = scmp.ne.s32.totalorder %s342, %s345
      %p351 = scmp.eq.s32.totalorder %s33, 0
      %p352 = por %p350, %p351
      %p353 = scmp.ne.s32.totalorder %s342, %s345
      %p354 = scmp.eq.s32.totalorder %s38, 1
      %p355 = por %p353, %p354
      %p356 = scmp.ne.s32.totalorder %s345, %s346
      %p357 = scmp.eq.s32.totalorder %s38, 0
      %p358 = por %p356, %p357
      %p359 = scmp.ne.s32.totalorder %s345, %s346
      %p360 = scmp.eq.s32.totalorder %s39, 1
      %p361 = por %p359, %p360
      %p363 = scmp.ne.s32.totalorder %s346, %s362
      %p364 = scmp.eq.s32.totalorder %s39, 0
      %p365 = por %p363, %p364
      %p366 = scmp.le.s32.totalorder 1, %s33
      %p367 = scmp.lt.s32.totalorder %s33, 3
      %p368 = pnand %p366, %p367
      %p369 = pneg %p368
      // Predicated region
      $region9: #{tpu_custom_call.1} parent=5 // pred_check
        _
      $region10: #{tpu_custom_call.1} parent=5 // pred_check_branch
        %371 = sbr.rel (%p368) target = $region12
      $region11: #{tpu_custom_call.1} parent=5 // pred_region
        %s372 = ssub.s32 %s33, 1
        // Predicated region
        $region13: #{tpu_custom_call.1} parent=11 // pred_check
          %p373 = pneg %p80
        $region14: #{tpu_custom_call.1} parent=11 // pred_check_branch
          %375 = sbr.rel (%p373) target = $region16
        $region15: #{tpu_custom_call.1} parent=11 // pred_region
          %s377 = ssub.s32 128, 128
          %378 = vsyncadd [#allocation6], %s377
          %s380 = sshll.u32 [#allocation5], 4
          %s381 = int_to_ptr.vmem [resolvable:$true] %s380
          %383 = dma.hbm_to_vmem [thread:$0]  %s1, 128, %s381, [#allocation6]
        $region16: #{tpu_custom_call.1} parent=11 // pred_fallthru
          _
        // Predicated region
        $region17: #{tpu_custom_call.1} parent=11 // pred_check
          %p384 = pneg %p101
        $region18: #{tpu_custom_call.1} parent=11 // pred_check_branch
          %386 = sbr.rel (%p384) target = $region20
        $region19: #{tpu_custom_call.1} parent=11 // pred_region
          %s388 = ssub.s32 256, 256
          %389 = vsyncadd [#allocation6], %s388
          %s390 = sshll.u32 [#allocation7], 4
          %s391 = int_to_ptr.vmem [resolvable:$true] %s390
          %396 = dma.hbm_to_vmem [thread:$0]  %s2, 256, %s391, [#allocation6], 64, 64, 4
        $region20: #{tpu_custom_call.1} parent=11 // pred_fallthru
          _
        // Predicated region
        $region21: #{tpu_custom_call.1} parent=11 // pred_check
          %p397 = pneg %p122
        $region22: #{tpu_custom_call.1} parent=11 // pred_check_branch
          %399 = sbr.rel (%p397) target = $region24
        $region23: #{tpu_custom_call.1} parent=11 // pred_region
          %s401 = ssub.s32 16, 16
          %402 = vsyncadd [#allocation9], %s401
          %s404 = sshll.u32 [#allocation8], 4
          %s405 = int_to_ptr.vmem [resolvable:$true] %s404
          %407 = dma.hbm_to_vmem [thread:$0]  %s3, 16, %s405, [#allocation9]
        $region24: #{tpu_custom_call.1} parent=11 // pred_fallthru
          _
        // Predicated region
        $region25: #{tpu_custom_call.1} parent=11 // pred_check
          %p408 = pneg %p143
        $region26: #{tpu_custom_call.1} parent=11 // pred_check_branch
          %410 = sbr.rel (%p408) target = $region28
        $region27: #{tpu_custom_call.1} parent=11 // pred_region
          %s412 = ssub.s32 256, 256
          %413 = vsyncadd [#allocation9], %s412
          %s414 = sshll.u32 [#allocation10], 4
          %s415 = int_to_ptr.vmem [resolvable:$true] %s414
          %420 = dma.hbm_to_vmem [thread:$0]  %s4, 256, %s415, [#allocation9], 64, 64, 4
        $region28: #{tpu_custom_call.1} parent=11 // pred_fallthru
          _
        // Predicated region
        $region29: #{tpu_custom_call.1} parent=11 // pred_check
          %p421 = pneg %p164
        $region30: #{tpu_custom_call.1} parent=11 // pred_check_branch
          %423 = sbr.rel (%p421) target = $region32
        $region31: #{tpu_custom_call.1} parent=11 // pred_region
          %s425 = ssub.s32 16, 16
          %426 = vsyncadd [#allocation12], %s425
          %s428 = sshll.u32 [#allocation11], 4
          %s429 = int_to_ptr.vmem [resolvable:$true] %s428
          %431 = dma.hbm_to_vmem [thread:$0]  %s5, 16, %s429, [#allocation12]
        $region32: #{tpu_custom_call.1} parent=11 // pred_fallthru
          _
        // Predicated region
        $region33: #{tpu_custom_call.1} parent=11 // pred_check
          %p432 = pneg %p185
        $region34: #{tpu_custom_call.1} parent=11 // pred_check_branch
          %434 = sbr.rel (%p432) target = $region36
        $region35: #{tpu_custom_call.1} parent=11 // pred_region
          %s436 = ssub.s32 256, 256
          %437 = vsyncadd [#allocation12], %s436
          %s438 = sshll.u32 [#allocation13], 4
          %s439 = int_to_ptr.vmem [resolvable:$true] %s438
          %444 = dma.hbm_to_vmem [thread:$0]  %s6, 256, %s439, [#allocation12], 64, 64, 4
        $region36: #{tpu_custom_call.1} parent=11 // pred_fallthru
          _
        // Predicated region
        $region37: #{tpu_custom_call.1} parent=11 // pred_check
          %p445 = pneg %p206
        $region38: #{tpu_custom_call.1} parent=11 // pred_check_branch
          %447 = sbr.rel (%p445) target = $region40
        $region39: #{tpu_custom_call.1} parent=11 // pred_region
          %s449 = ssub.s32 16, 16
          %450 = vsyncadd [#allocation15], %s449
          %s452 = sshll.u32 [#allocation14], 4
          %s453 = int_to_ptr.vmem [resolvable:$true] %s452
          %455 = dma.hbm_to_vmem [thread:$0]  %s7, 16, %s453, [#allocation15]
        $region40: #{tpu_custom_call.1} parent=11 // pred_fallthru
          _
        // Predicated region
        $region41: #{tpu_custom_call.1} parent=11 // pred_check
          %p456 = pneg %p227
        $region42: #{tpu_custom_call.1} parent=11 // pred_check_branch
          %458 = sbr.rel (%p456) target = $region44
        $region43: #{tpu_custom_call.1} parent=11 // pred_region
          %s460 = ssub.s32 512, 512
          %461 = vsyncadd [#allocation15], %s460
          %s462 = sshll.u32 [#allocation16], 4
          %s463 = int_to_ptr.vmem [resolvable:$true] %s462
          %468 = dma.hbm_to_vmem [thread:$0]  %s8, 512, %s463, [#allocation15], 64, 64, 4
        $region44: #{tpu_custom_call.1} parent=11 // pred_fallthru
          _
        // Predicated region
        $region45: #{tpu_custom_call.1} parent=11 // pred_check
          %p469 = pneg %p248
        $region46: #{tpu_custom_call.1} parent=11 // pred_check_branch
          %471 = sbr.rel (%p469) target = $region48
        $region47: #{tpu_custom_call.1} parent=11 // pred_region
          %s473 = ssub.s32 16, 16
          %474 = vsyncadd [#allocation18], %s473
          %s476 = sshll.u32 [#allocation17], 4
          %s477 = int_to_ptr.vmem [resolvable:$true] %s476
          %479 = dma.hbm_to_vmem [thread:$0]  %s9, 16, %s477, [#allocation18]
        $region48: #{tpu_custom_call.1} parent=11 // pred_fallthru
          _
        // Predicated region
        $region49: #{tpu_custom_call.1} parent=11 // pred_check
          %p480 = pneg %p269
        $region50: #{tpu_custom_call.1} parent=11 // pred_check_branch
          %482 = sbr.rel (%p480) target = $region52
        $region51: #{tpu_custom_call.1} parent=11 // pred_region
          %s484 = ssub.s32 16, 16
          %485 = vsyncadd [#allocation18], %s484
          %s487 = sshll.u32 [#allocation19], 4
          %s488 = int_to_ptr.vmem [resolvable:$true] %s487
          %490 = dma.hbm_to_vmem [thread:$0]  %s10, 16, %s488, [#allocation18]
        $region52: #{tpu_custom_call.1} parent=11 // pred_fallthru
          _
        // Predicated region
        $region53: #{tpu_custom_call.1} parent=11 // pred_check
          %p491 = pneg %p290
        $region54: #{tpu_custom_call.1} parent=11 // pred_check_branch
          %493 = sbr.rel (%p491) target = $region56
        $region55: #{tpu_custom_call.1} parent=11 // pred_region
          %s495 = ssub.s32 16, 16
          %496 = vsyncadd [#allocation21], %s495
          %s498 = sshll.u32 [#allocation20], 4
          %s499 = int_to_ptr.vmem [resolvable:$true] %s498
          %501 = dma.hbm_to_vmem [thread:$0]  %s11, 16, %s499, [#allocation21]
        $region56: #{tpu_custom_call.1} parent=11 // pred_fallthru
          _
        // Predicated region
        $region57: #{tpu_custom_call.1} parent=11 // pred_check
          %p502 = pneg %p311
        $region58: #{tpu_custom_call.1} parent=11 // pred_check_branch
          %504 = sbr.rel (%p502) target = $region60
        $region59: #{tpu_custom_call.1} parent=11 // pred_region
          %s506 = ssub.s32 16, 16
          %507 = vsyncadd [#allocation21], %s506
          %s509 = sshll.u32 [#allocation22], 4
          %s510 = int_to_ptr.vmem [resolvable:$true] %s509
          %512 = dma.hbm_to_vmem [thread:$0]  %s12, 16, %s510, [#allocation21]
        $region60: #{tpu_custom_call.1} parent=11 // pred_fallthru
          _
        // Predicated region
        $region61: #{tpu_custom_call.1} parent=11 // pred_check
          %p513 = pneg %p332
        $region62: #{tpu_custom_call.1} parent=11 // pred_check_branch
          %515 = sbr.rel (%p513) target = $region64
        $region63: #{tpu_custom_call.1} parent=11 // pred_region
          %s517 = ssub.s32 16, 16
          %518 = vsyncadd [#allocation24], %s517
          %s520 = sshll.u32 [#allocation23], 4
          %s521 = int_to_ptr.vmem [resolvable:$true] %s520
          %523 = dma.hbm_to_vmem [thread:$0]  %s13, 16, %s521, [#allocation24]
        $region64: #{tpu_custom_call.1} parent=11 // pred_fallthru
          _
      $region12: #{tpu_custom_call.1} parent=5 // pred_fallthru
        _
      %p524 = scmp.lt.s32.totalorder %s33, 2
      // Predicated region
      $region65: #{tpu_custom_call.1} parent=5 // pred_check
        %p525 = pneg %p524
      $region66: #{tpu_custom_call.1} parent=5 // pred_check_branch
        %527 = sbr.rel (%p525) target = $region68
      $region67: #{tpu_custom_call.1} parent=5 // pred_region
        // Predicated region
        $region69: #{tpu_custom_call.1} parent=67 // pred_check
          %p528 = pneg %p53
        $region70: #{tpu_custom_call.1} parent=67 // pred_check_branch
          %530 = sbr.rel (%p528) target = $region72
        $region71: #{tpu_custom_call.1} parent=67 // pred_region
          %s531 = sand.u32 %s43, 1
          %s532 = scalar_lea.sflag [#allocation3], %s531
          %s533 = sand.u32 %s43, 1
          %s534 = smul.addr %s533, 8
          %s535 = scalar_lea.vmem [#allocation2], %s534
          %s537 = ssub.s32 128, 128
          %538 = vsyncadd %s532, %s537
          %s539 = smul.addr %s33, 128
          %s540 = scalar_lea.hbm %s0, %s539
          %s542 = sshll.u32 %s535, 4
          %s543 = int_to_ptr.vmem [resolvable:$true] %s542
          %545 = dma.hbm_to_vmem [thread:$0]  %s540, 128, %s543, %s532
        $region72: #{tpu_custom_call.1} parent=67 // pred_fallthru
          _
      $region68: #{tpu_custom_call.1} parent=5 // pred_fallthru
        _
      %p546 = scmp.le.s32.totalorder 1, %s33
      %p547 = scmp.lt.s32.totalorder %s33, 3
      %p548 = pnand %p546, %p547
      %p549 = pneg %p548
      // Predicated region
      $region73: #{tpu_custom_call.1} parent=5 // pred_check
        _
      $region74: #{tpu_custom_call.1} parent=5 // pred_check_branch
        %551 = sbr.rel (%p548) target = $region76
      $region75: #{tpu_custom_call.1} parent=5 // pred_region
        %s552 = ssub.s32 %s33, 1
        %s553 = sand.u32 %s46, 1
        %s554 = scalar_lea.sflag [#allocation3], %s553
        %s555 = sand.u32 %s46, 1
        %s556 = smul.addr %s555, 8
        %s557 = scalar_lea.vmem [#allocation2], %s556
        // Predicated region
        $region77: #{tpu_custom_call.1} parent=75 // pred_check
          %p558 = pneg %p59
        $region78: #{tpu_custom_call.1} parent=75 // pred_check_branch
          %560 = sbr.rel (%p558) target = $region80
        $region79: #{tpu_custom_call.1} parent=75 // pred_region
          %561 = dma.done %s554, 128
        $region80: #{tpu_custom_call.1} parent=75 // pred_fallthru
          _
        // Predicated region
        $region81: #{tpu_custom_call.1} parent=75 // pred_check
          %p562 = pneg %p80
        $region82: #{tpu_custom_call.1} parent=75 // pred_check_branch
          %564 = sbr.rel (%p562) target = $region84
        $region83: #{tpu_custom_call.1} parent=75 // pred_region
          %565 = dma.done [#allocation6], 128
        $region84: #{tpu_custom_call.1} parent=75 // pred_fallthru
          _
        // Predicated region
        $region85: #{tpu_custom_call.1} parent=75 // pred_check
          %p566 = pneg %p101
        $region86: #{tpu_custom_call.1} parent=75 // pred_check_branch
          %568 = sbr.rel (%p566) target = $region88
        $region87: #{tpu_custom_call.1} parent=75 // pred_region
          %569 = dma.done [#allocation6], 256
        $region88: #{tpu_custom_call.1} parent=75 // pred_fallthru
          _
        // Predicated region
        $region89: #{tpu_custom_call.1} parent=75 // pred_check
          %p570 = pneg %p122
        $region90: #{tpu_custom_call.1} parent=75 // pred_check_branch
          %572 = sbr.rel (%p570) target = $region92
        $region91: #{tpu_custom_call.1} parent=75 // pred_region
          %573 = dma.done [#allocation9], 16
        $region92: #{tpu_custom_call.1} parent=75 // pred_fallthru
          _
        // Predicated region
        $region93: #{tpu_custom_call.1} parent=75 // pred_check
          %p574 = pneg %p143
        $region94: #{tpu_custom_call.1} parent=75 // pred_check_branch
          %576 = sbr.rel (%p574) target = $region96
        $region95: #{tpu_custom_call.1} parent=75 // pred_region
          %577 = dma.done [#allocation9], 256
        $region96: #{tpu_custom_call.1} parent=75 // pred_fallthru
          _
        // Predicated region
        $region97: #{tpu_custom_call.1} parent=75 // pred_check
          %p578 = pneg %p164
        $region98: #{tpu_custom_call.1} parent=75 // pred_check_branch
          %580 = sbr.rel (%p578) target = $region100
        $region99: #{tpu_custom_call.1} parent=75 // pred_region
          %581 = dma.done [#allocation12], 16
        $region100: #{tpu_custom_call.1} parent=75 // pred_fallthru
          _
        // Predicated region
        $region101: #{tpu_custom_call.1} parent=75 // pred_check
          %p582 = pneg %p185
        $region102: #{tpu_custom_call.1} parent=75 // pred_check_branch
          %584 = sbr.rel (%p582) target = $region104
        $region103: #{tpu_custom_call.1} parent=75 // pred_region
          %585 = dma.done [#allocation12], 256
        $region104: #{tpu_custom_call.1} parent=75 // pred_fallthru
          _
        // Predicated region
        $region105: #{tpu_custom_call.1} parent=75 // pred_check
          %p586 = pneg %p206
        $region106: #{tpu_custom_call.1} parent=75 // pred_check_branch
          %588 = sbr.rel (%p586) target = $region108
        $region107: #{tpu_custom_call.1} parent=75 // pred_region
          %589 = dma.done [#allocation15], 16
        $region108: #{tpu_custom_call.1} parent=75 // pred_fallthru
          _
        // Predicated region
        $region109: #{tpu_custom_call.1} parent=75 // pred_check
          %p590 = pneg %p227
        $region110: #{tpu_custom_call.1} parent=75 // pred_check_branch
          %592 = sbr.rel (%p590) target = $region112
        $region111: #{tpu_custom_call.1} parent=75 // pred_region
          %593 = dma.done [#allocation15], 512
        $region112: #{tpu_custom_call.1} parent=75 // pred_fallthru
          _
        // Predicated region
        $region113: #{tpu_custom_call.1} parent=75 // pred_check
          %p594 = pneg %p248
        $region114: #{tpu_custom_call.1} parent=75 // pred_check_branch
          %596 = sbr.rel (%p594) target = $region116
        $region115: #{tpu_custom_call.1} parent=75 // pred_region
          %597 = dma.done [#allocation18], 16
        $region116: #{tpu_custom_call.1} parent=75 // pred_fallthru
          _
        // Predicated region
        $region117: #{tpu_custom_call.1} parent=75 // pred_check
          %p598 = pneg %p269
        $region118: #{tpu_custom_call.1} parent=75 // pred_check_branch
          %600 = sbr.rel (%p598) target = $region120
        $region119: #{tpu_custom_call.1} parent=75 // pred_region
          %601 = dma.done [#allocation18], 16
        $region120: #{tpu_custom_call.1} parent=75 // pred_fallthru
          _
        // Predicated region
        $region121: #{tpu_custom_call.1} parent=75 // pred_check
          %p602 = pneg %p290
        $region122: #{tpu_custom_call.1} parent=75 // pred_check_branch
          %604 = sbr.rel (%p602) target = $region124
        $region123: #{tpu_custom_call.1} parent=75 // pred_region
          %605 = dma.done [#allocation21], 16
        $region124: #{tpu_custom_call.1} parent=75 // pred_fallthru
          _
        // Predicated region
        $region125: #{tpu_custom_call.1} parent=75 // pred_check
          %p606 = pneg %p311
        $region126: #{tpu_custom_call.1} parent=75 // pred_check_branch
          %608 = sbr.rel (%p606) target = $region128
        $region127: #{tpu_custom_call.1} parent=75 // pred_region
          %609 = dma.done [#allocation21], 16
        $region128: #{tpu_custom_call.1} parent=75 // pred_fallthru
          _
        // Predicated region
        $region129: #{tpu_custom_call.1} parent=75 // pred_check
          %p610 = pneg %p332
        $region130: #{tpu_custom_call.1} parent=75 // pred_check_branch
          %612 = sbr.rel (%p610) target = $region132
        $region131: #{tpu_custom_call.1} parent=75 // pred_region
          %613 = dma.done [#allocation24], 16
        $region132: #{tpu_custom_call.1} parent=75 // pred_fallthru
          _
        %s614 = sand.u32 %s46, 1
        %s615 = scalar_lea.sflag [#allocation3], %s614
        %s616 = sand.u32 %s46, 1
        %s617 = smul.addr %s616, 8
        %s618 = scalar_lea.vmem [#allocation2], %s617
        %p619 = pneg %p59
        %p620 = pneg %p56
        %p621 = pneg %p80
        %p622 = pneg %p77
        %p623 = pneg %p101
        %p624 = pneg %p98
        %p625 = pneg %p122
        %p626 = pneg %p119
        %p627 = pneg %p143
        %p628 = pneg %p140
        %p629 = pneg %p164
        %p630 = pneg %p161
        %p631 = pneg %p185
        %p632 = pneg %p182
        %p633 = pneg %p206
        %p634 = pneg %p203
        %p635 = pneg %p227
        %p636 = pneg %p224
        %p637 = pneg %p248
        %p638 = pneg %p245
        %p639 = pneg %p269
        %p640 = pneg %p266
        %p641 = pneg %p290
        %p642 = pneg %p287
        %p643 = pneg %p311
        %p644 = pneg %p308
        %p645 = pneg %p332
        %p646 = pneg %p329
        %p647 = pneg %p358
        %p648 = pneg %p355
        %s649 = sand.u32 %s345, 1
        %s650 = scalar_lea.sflag [#allocation4], %s649
        %s651 = sand.u32 %s345, 1
        %s652 = smul.addr %s651, 4
        %s653 = scalar_lea.vmem [#allocation25], %s652
        %v655 = vld [vmem:[%s557] sm:$0xff]
        %v656 = vmul.f32 %v655, 5.656854
        %v657 = vld [vmem:[#allocation5] sm:$0xff]
        %v658 = vadd.f32 %v656, %v657
        %v659 = vpack.c.bf16 %v658, %v658
        %v660 = vld [vmem:[#allocation7] sm:$0xf]
        %v661 = vld [vmem:[#allocation7 + $0x4] sm:$0xf]
        %v662 = vld [vmem:[#allocation7 + $0x8] sm:$0xf]
        %v663 = vld [vmem:[#allocation7 + $0xc] sm:$0xf]
        %v664 = vld [vmem:[#allocation8] sm:$0x1]
        %v666 = vlaneseq
        %v667 = vshrl.u32 %v666, 7
        %v668 = vsub.s32 0, %v667
        %v669 = vrot.slane %v664, %v668
        %v675 = vunpack.c.l.b16 %v660
        %v676 = vunpack.c.l.b16 %v661
        %v677 = vunpack.c.l.b16 %v662
        %v678 = vunpack.c.l.b16 %v663
        %v679 = vpack.c.b16 %v676, %v675
        %v680 = vpack.c.b16 %v678, %v677
        %vm683 = vcmask 261120
        %v685 = vsel %vm683, %v659, 0
        %687 = vmatprep.subr.bf16.mxu0 0
        %688 = vmatpush1.bf16.msra.mxu0 %v679
        %689 = vmatprep.subr.bf16.mxu0 0
        %690 = vmatpush1.bf16.msra.mxu0 %v680
        %691 = vmatprep.subr.bf16.mxu0 0
        %692 = vmatpush1.bf16.msra.mxu0 0
        %693 = vmatprep.subr.bf16.mxu0 0
        %694 = vmatpush1.bf16.msra.mxu0 0
        %695 = vmatprep.subr.bf16.mxu0 0
        %696 = vmatpush1.bf16.msra.mxu0 0
        %697 = vmatprep.subr.bf16.mxu0 0
        %698 = vmatpush1.bf16.msra.mxu0 0
        %699 = vmatprep.subr.bf16.mxu0 0
        %700 = vmatpush1.bf16.msra.mxu0 0
        %701 = vmatprep.subr.bf16.mxu0 0
        %702 = vmatpush1.bf16.msra.mxu0 0
        %703 = vmatprep.subr.bf16.mxu0 0
        %704 = vmatpush1.bf16.msra.mxu0 0
        %705 = vmatprep.subr.bf16.mxu0 0
        %706 = vmatpush1.bf16.msra.mxu0 0
        %707 = vmatprep.subr.bf16.mxu0 0
        %708 = vmatpush1.bf16.msra.mxu0 0
        %709 = vmatprep.subr.bf16.mxu0 0
        %710 = vmatpush1.bf16.msra.mxu0 0
        %711 = vmatprep.subr.bf16.mxu0 0
        %712 = vmatpush1.bf16.msra.mxu0 0
        %713 = vmatprep.subr.bf16.mxu0 0
        %714 = vmatpush1.bf16.msra.mxu0 0
        %715 = vmatprep.subr.bf16.mxu0 0
        %716 = vmatpush1.bf16.msra.mxu0 0
        %717 = vmatprep.subr.bf16.mxu0 0
        %718 = vmatpush1.bf16.msra.mxu0 0
        %719 = vmatprep.mubr.bf16.mxu0 0
        %720 = vmatmul.mubr.bf16.gmra.mrb[0].mxu0 %v685
        %v721 = vpop.f32.mrb[0].mxu0
        %v722 = vadd.f32 %v669, %v721
        %v723 = vpop.f32.mrb[0].mxu0
        %v724 = vpop.f32.mrb[0].mxu0
        %v725 = vpop.f32.mrb[0].mxu0
        %726 = vdwg.mxu0
        %728 = vrot.lane.b32.xlu0 %v722, 120
        %v729 = vpop.permute.xlu0 %728
        %731 = vrot.lane.b32.xlu0 %v722, 112
        %v732 = vpop.permute.xlu0 %731
        %734 = vrot.lane.b32.xlu0 %v722, 104
        %v735 = vpop.permute.xlu0 %734
        %v737 = vcombine.low %v722, %v732
        %v738 = vcombine.high %v722, %v732
        %v740 = vunpack.c.l.s4 1983009808
        %v741 = vunpack.c.0.s8 %v740
        %v742 = vlaneseq
        %v743 = vshrl.u32 %v742, 7
        %v744 = vsub.s32 %v741, %v743
        %v745 = vrot.slane %v737, %v744
        %v747 = vunpack.c.l.s4 1983009808
        %v748 = vunpack.c.0.s8 %v747
        %v749 = vlaneseq
        %v750 = vshrl.u32 %v749, 7
        %v751 = vsub.s32 %v748, %v750
        %v752 = vrot.slane %v738, %v751
        %v753 = vcombine.low %v729, %v735
        %v754 = vcombine.high %v729, %v735
        %v756 = vunpack.c.l.s4 1983009808
        %v757 = vunpack.c.0.s8 %v756
        %v758 = vlaneseq
        %v759 = vshrl.u32 %v758, 7
        %v760 = vsub.s32 %v757, %v759
        %v761 = vrot.slane %v753, %v760
        %v763 = vunpack.c.l.s4 1983009808
        %v764 = vunpack.c.0.s8 %v763
        %v765 = vlaneseq
        %v766 = vshrl.u32 %v765, 7
        %v767 = vsub.s32 %v764, %v766
        %v768 = vrot.slane %v754, %v767
        %v769 = vcombine.low %v745, %v761
        %v770 = vcombine.high %v745, %v761
        %v772 = vunpack.c.l.s4 1934713408
        %v773 = vunpack.c.0.s8 %v772
        %v774 = vlaneseq
        %v775 = vshrl.u32 %v774, 7
        %v776 = vsub.s32 %v773, %v775
        %v777 = vrot.slane %v769, %v776
        %v779 = vunpack.c.l.s4 1934713408
        %v780 = vunpack.c.0.s8 %v779
        %v781 = vlaneseq
        %v782 = vshrl.u32 %v781, 7
        %v783 = vsub.s32 %v780, %v782
        %v784 = vrot.slane %v770, %v783
        %v785 = vcombine.low %v752, %v768
        %v786 = vcombine.high %v752, %v768
        %v788 = vunpack.c.l.s4 1934713408
        %v789 = vunpack.c.0.s8 %v788
        %v790 = vlaneseq
        %v791 = vshrl.u32 %v790, 7
        %v792 = vsub.s32 %v789, %v791
        %v793 = vrot.slane %v785, %v792
        %v795 = vunpack.c.l.s4 1934713408
        %v796 = vunpack.c.0.s8 %v795
        %v797 = vlaneseq
        %v798 = vshrl.u32 %v797, 7
        %v799 = vsub.s32 %v796, %v798
        %v800 = vrot.slane %v786, %v799
        %v801 = vcombine.high %v777, 0.0
        %v802 = vcombine.high %v784, 0.0
        %v803 = vcombine.high %v793, 0.0
        %v804 = vcombine.high %v800, 0.0
        %v805 = vpack.c.bf16 %v777, %v777
        %v806 = vpack.c.bf16 %v801, %v801
        %v807 = vpack.c.bf16 %v784, %v784
        %v808 = vpack.c.bf16 %v802, %v802
        %v809 = vpack.c.bf16 %v793, %v793
        %v810 = vpack.c.bf16 %v803, %v803
        %v811 = vpack.c.bf16 %v800, %v800
        %v812 = vpack.c.bf16 %v804, %v804
        %813 = vrot.lane.b32.xlu0 %v722, 96
        %v814 = vpop.permute.xlu0 %813
        %815 = vrot.lane.b32.xlu0 %v729, 96
        %v816 = vpop.permute.xlu0 %815
        %817 = vrot.lane.b32.xlu0 %v732, 96
        %v818 = vpop.permute.xlu0 %817
        %819 = vrot.lane.b32.xlu0 %v735, 96
        %v820 = vpop.permute.xlu0 %819
        %v825 = vcombine.low %v814, %v818
        %v826 = vcombine.high %v814, %v818
        %v828 = vunpack.c.l.s4 1983009808
        %v829 = vunpack.c.0.s8 %v828
        %v830 = vlaneseq
        %v831 = vshrl.u32 %v830, 7
        %v832 = vsub.s32 %v829, %v831
        %v833 = vrot.slane %v825, %v832
        %v835 = vunpack.c.l.s4 1983009808
        %v836 = vunpack.c.0.s8 %v835
        %v837 = vlaneseq
        %v838 = vshrl.u32 %v837, 7
        %v839 = vsub.s32 %v836, %v838
        %v840 = vrot.slane %v826, %v839
        %v841 = vcombine.low %v816, %v820
        %v842 = vcombine.high %v816, %v820
        %v844 = vunpack.c.l.s4 1983009808
        %v845 = vunpack.c.0.s8 %v844
        %v846 = vlaneseq
        %v847 = vshrl.u32 %v846, 7
        %v848 = vsub.s32 %v845, %v847
        %v849 = vrot.slane %v841, %v848
        %v851 = vunpack.c.l.s4 1983009808
        %v852 = vunpack.c.0.s8 %v851
        %v853 = vlaneseq
        %v854 = vshrl.u32 %v853, 7
        %v855 = vsub.s32 %v852, %v854
        %v856 = vrot.slane %v842, %v855
        %v857 = vcombine.low %v833, %v849
        %v858 = vcombine.high %v833, %v849
        %v860 = vunpack.c.l.s4 1934713408
        %v861 = vunpack.c.0.s8 %v860
        %v862 = vlaneseq
        %v863 = vshrl.u32 %v862, 7
        %v864 = vsub.s32 %v861, %v863
        %v865 = vrot.slane %v857, %v864
        %v867 = vunpack.c.l.s4 1934713408
        %v868 = vunpack.c.0.s8 %v867
        %v869 = vlaneseq
        %v870 = vshrl.u32 %v869, 7
        %v871 = vsub.s32 %v868, %v870
        %v872 = vrot.slane %v858, %v871
        %v873 = vcombine.low %v840, %v856
        %v874 = vcombine.high %v840, %v856
        %v876 = vunpack.c.l.s4 1934713408
        %v877 = vunpack.c.0.s8 %v876
        %v878 = vlaneseq
        %v879 = vshrl.u32 %v878, 7
        %v880 = vsub.s32 %v877, %v879
        %v881 = vrot.slane %v873, %v880
        %v883 = vunpack.c.l.s4 1934713408
        %v884 = vunpack.c.0.s8 %v883
        %v885 = vlaneseq
        %v886 = vshrl.u32 %v885, 7
        %v887 = vsub.s32 %v884, %v886
        %v888 = vrot.slane %v874, %v887
        %v889 = vcombine.high %v865, 0.0
        %v890 = vcombine.high %v872, 0.0
        %v891 = vcombine.high %v881, 0.0
        %v892 = vcombine.high %v888, 0.0
        %v893 = vpack.c.bf16 %v865, %v865
        %v894 = vpack.c.bf16 %v889, %v889
        %v895 = vpack.c.bf16 %v872, %v872
        %v896 = vpack.c.bf16 %v890, %v890
        %v897 = vpack.c.bf16 %v881, %v881
        %v898 = vpack.c.bf16 %v891, %v891
        %v899 = vpack.c.bf16 %v888, %v888
        %v900 = vpack.c.bf16 %v892, %v892
        %901 = vrot.lane.b32.xlu0 %v722, 64
        %v902 = vpop.permute.xlu0 %901
        %903 = vrot.lane.b32.xlu0 %v729, 64
        %v904 = vpop.permute.xlu0 %903
        %905 = vrot.lane.b32.xlu0 %v732, 64
        %v906 = vpop.permute.xlu0 %905
        %907 = vrot.lane.b32.xlu0 %v735, 64
        %v908 = vpop.permute.xlu0 %907
        %v913 = vcombine.low %v902, %v906
        %v914 = vcombine.high %v902, %v906
        %v916 = vunpack.c.l.s4 1983009808
        %v917 = vunpack.c.0.s8 %v916
        %v918 = vlaneseq
        %v919 = vshrl.u32 %v918, 7
        %v920 = vsub.s32 %v917, %v919
        %v921 = vrot.slane %v913, %v920
        %v923 = vunpack.c.l.s4 1983009808
        %v924 = vunpack.c.0.s8 %v923
        %v925 = vlaneseq
        %v926 = vshrl.u32 %v925, 7
        %v927 = vsub.s32 %v924, %v926
        %v928 = vrot.slane %v914, %v927
        %v929 = vcombine.low %v904, %v908
        %v930 = vcombine.high %v904, %v908
        %v932 = vunpack.c.l.s4 1983009808
        %v933 = vunpack.c.0.s8 %v932
        %v934 = vlaneseq
        %v935 = vshrl.u32 %v934, 7
        %v936 = vsub.s32 %v933, %v935
        %v937 = vrot.slane %v929, %v936
        %v939 = vunpack.c.l.s4 1983009808
        %v940 = vunpack.c.0.s8 %v939
        %v941 = vlaneseq
        %v942 = vshrl.u32 %v941, 7
        %v943 = vsub.s32 %v940, %v942
        %v944 = vrot.slane %v930, %v943
        %v945 = vcombine.low %v921, %v937
        %v946 = vcombine.high %v921, %v937
        %v948 = vunpack.c.l.s4 1934713408
        %v949 = vunpack.c.0.s8 %v948
        %v950 = vlaneseq
        %v951 = vshrl.u32 %v950, 7
        %v952 = vsub.s32 %v949, %v951
        %v953 = vrot.slane %v945, %v952
        %v955 = vunpack.c.l.s4 1934713408
        %v956 = vunpack.c.0.s8 %v955
        %v957 = vlaneseq
        %v958 = vshrl.u32 %v957, 7
        %v959 = vsub.s32 %v956, %v958
        %v960 = vrot.slane %v946, %v959
        %v961 = vcombine.low %v928, %v944
        %v962 = vcombine.high %v928, %v944
        %v964 = vunpack.c.l.s4 1934713408
        %v965 = vunpack.c.0.s8 %v964
        %v966 = vlaneseq
        %v967 = vshrl.u32 %v966, 7
        %v968 = vsub.s32 %v965, %v967
        %v969 = vrot.slane %v961, %v968
        %v971 = vunpack.c.l.s4 1934713408
        %v972 = vunpack.c.0.s8 %v971
        %v973 = vlaneseq
        %v974 = vshrl.u32 %v973, 7
        %v975 = vsub.s32 %v972, %v974
        %v976 = vrot.slane %v962, %v975
        %v977 = vcombine.high %v953, 0.0
        %v978 = vcombine.high %v960, 0.0
        %v979 = vcombine.high %v969, 0.0
        %v980 = vcombine.high %v976, 0.0
        %v981 = vpack.c.bf16 %v953, %v953
        %v982 = vpack.c.bf16 %v977, %v977
        %v983 = vpack.c.bf16 %v960, %v960
        %v984 = vpack.c.bf16 %v978, %v978
        %v985 = vpack.c.bf16 %v969, %v969
        %v986 = vpack.c.bf16 %v979, %v979
        %v987 = vpack.c.bf16 %v976, %v976
        %v988 = vpack.c.bf16 %v980, %v980
        %v989 = vcombine.low %v805, %v809
        %v991 = vunpack.c.l.s4 1983009808
        %v992 = vunpack.c.0.s8 %v991
        %v993 = vlaneseq
        %v994 = vshrl.u32 %v993, 7
        %v995 = vsub.s32 %v992, %v994
        %v996 = vrot.slane %v989, %v995
        %v997 = vcombine.low %v807, %v811
        %v999 = vunpack.c.l.s4 1983009808
        %v1000 = vunpack.c.0.s8 %v999
        %v1001 = vlaneseq
        %v1002 = vshrl.u32 %v1001, 7
        %v1003 = vsub.s32 %v1000, %v1002
        %v1004 = vrot.slane %v997, %v1003
        %v1005 = vcombine.low %v996, %v1004
        %v1007 = vunpack.c.l.s4 1934713408
        %v1008 = vunpack.c.0.s8 %v1007
        %v1009 = vlaneseq
        %v1010 = vshrl.u32 %v1009, 7
        %v1011 = vsub.s32 %v1008, %v1010
        %v1012 = vrot.slane %v1005, %v1011
        %v1013 = vcombine.high %v1012, 0
        %v1014 = vcombine.low %v806, %v810
        %v1016 = vunpack.c.l.s4 1983009808
        %v1017 = vunpack.c.0.s8 %v1016
        %v1018 = vlaneseq
        %v1019 = vshrl.u32 %v1018, 7
        %v1020 = vsub.s32 %v1017, %v1019
        %v1021 = vrot.slane %v1014, %v1020
        %v1022 = vcombine.low %v808, %v812
        %v1024 = vunpack.c.l.s4 1983009808
        %v1025 = vunpack.c.0.s8 %v1024
        %v1026 = vlaneseq
        %v1027 = vshrl.u32 %v1026, 7
        %v1028 = vsub.s32 %v1025, %v1027
        %v1029 = vrot.slane %v1022, %v1028
        %v1030 = vcombine.low %v1021, %v1029
        %v1032 = vunpack.c.l.s4 1934713408
        %v1033 = vunpack.c.0.s8 %v1032
        %v1034 = vlaneseq
        %v1035 = vshrl.u32 %v1034, 7
        %v1036 = vsub.s32 %v1033, %v1035
        %v1037 = vrot.slane %v1030, %v1036
        %v1038 = vcombine.high %v1037, 0
        %v1041 = vpack.i.b16 %v1037, %v1012
        %v1042 = vshrl.u32 %v1012, 16
        %v1043 = vshrl.u32 %v1037, 16
        %v1044 = vpack.i.b16 %v1043, %v1042
        %v1047 = vpack.i.b16 %v1038, %v1013
        %v1048 = vshrl.u32 %v1013, 16
        %v1049 = vshrl.u32 %v1038, 16
        %v1050 = vpack.i.b16 %v1049, %v1048
        %1051 = vxpose.xlu0.c.b16.start [1/8] %v893, 128
        %1052 = vxpose.xlu0.c.b16.cont [2/8] 0, 128
        %1053 = vxpose.xlu0.c.b16.cont [3/8] 0, 128
        %1054 = vxpose.xlu0.c.b16.cont [4/8] 0, 128
        %1055 = vxpose.xlu0.c.b16.cont [5/8] 0, 128
        %1056 = vxpose.xlu0.c.b16.cont [6/8] 0, 128
        %1057 = vxpose.xlu0.c.b16.cont [7/8] 0, 128
        %1058 = vxpose.xlu0.c.b16.end [8/8] 0, 128
        %v1059 = vpop.trf.xlu0
        %v1060 = vpop.trf.xlu0
        %v1061 = vpop.trf.xlu0
        %v1062 = vpop.trf.xlu0
        %v1063 = vpop.trf.xlu0
        %v1064 = vpop.trf.xlu0
        %v1065 = vpop.trf.xlu0
        %v1066 = vpop.trf.xlu0
        %1067 = vxpose.xlu0.c.b16.start [1/8] %v894, 128
        %1068 = vxpose.xlu0.c.b16.cont [2/8] 0, 128
        %1069 = vxpose.xlu0.c.b16.cont [3/8] 0, 128
        %1070 = vxpose.xlu0.c.b16.cont [4/8] 0, 128
        %1071 = vxpose.xlu0.c.b16.cont [5/8] 0, 128
        %1072 = vxpose.xlu0.c.b16.cont [6/8] 0, 128
        %1073 = vxpose.xlu0.c.b16.cont [7/8] 0, 128
        %1074 = vxpose.xlu0.c.b16.end [8/8] 0, 128
        %v1075 = vpop.trf.xlu0
        %v1076 = vpop.trf.xlu0
        %v1077 = vpop.trf.xlu0
        %v1078 = vpop.trf.xlu0
        %v1079 = vpop.trf.xlu0
        %v1080 = vpop.trf.xlu0
        %v1081 = vpop.trf.xlu0
        %v1082 = vpop.trf.xlu0
        %1083 = vxpose.xlu0.c.b16.start [1/8] %v895, 128
        %1084 = vxpose.xlu0.c.b16.cont [2/8] 0, 128
        %1085 = vxpose.xlu0.c.b16.cont [3/8] 0, 128
        %1086 = vxpose.xlu0.c.b16.cont [4/8] 0, 128
        %1087 = vxpose.xlu0.c.b16.cont [5/8] 0, 128
        %1088 = vxpose.xlu0.c.b16.cont [6/8] 0, 128
        %1089 = vxpose.xlu0.c.b16.cont [7/8] 0, 128
        %1090 = vxpose.xlu0.c.b16.end [8/8] 0, 128
        %v1091 = vpop.trf.xlu0
        %v1092 = vpop.trf.xlu0
        %v1093 = vpop.trf.xlu0
        %v1094 = vpop.trf.xlu0
        %v1095 = vpop.trf.xlu0
        %v1096 = vpop.trf.xlu0
        %v1097 = vpop.trf.xlu0
        %v1098 = vpop.trf.xlu0
        %1099 = vxpose.xlu0.c.b16.start [1/8] %v896, 128
        %1100 = vxpose.xlu0.c.b16.cont [2/8] 0, 128
        %1101 = vxpose.xlu0.c.b16.cont [3/8] 0, 128
        %1102 = vxpose.xlu0.c.b16.cont [4/8] 0, 128
        %1103 = vxpose.xlu0.c.b16.cont [5/8] 0, 128
        %1104 = vxpose.xlu0.c.b16.cont [6/8] 0, 128
        %1105 = vxpose.xlu0.c.b16.cont [7/8] 0, 128
        %1106 = vxpose.xlu0.c.b16.end [8/8] 0, 128
        %v1107 = vpop.trf.xlu0
        %v1108 = vpop.trf.xlu0
        %v1109 = vpop.trf.xlu0
        %v1110 = vpop.trf.xlu0
        %v1111 = vpop.trf.xlu0
        %v1112 = vpop.trf.xlu0
        %v1113 = vpop.trf.xlu0
        %v1114 = vpop.trf.xlu0
        %1115 = vxpose.xlu0.c.b16.start [1/8] %v897, 128
        %1116 = vxpose.xlu0.c.b16.cont [2/8] 0, 128
        %1117 = vxpose.xlu0.c.b16.cont [3/8] 0, 128
        %1118 = vxpose.xlu0.c.b16.cont [4/8] 0, 128
        %1119 = vxpose.xlu0.c.b16.cont [5/8] 0, 128
        %1120 = vxpose.xlu0.c.b16.cont [6/8] 0, 128
        %1121 = vxpose.xlu0.c.b16.cont [7/8] 0, 128
        %1122 = vxpose.xlu0.c.b16.end [8/8] 0, 128
        %v1123 = vpop.trf.xlu0
        %v1124 = vpop.trf.xlu0
        %v1125 = vpop.trf.xlu0
        %v1126 = vpop.trf.xlu0
        %v1127 = vpop.trf.xlu0
        %v1128 = vpop.trf.xlu0
        %v1129 = vpop.trf.xlu0
        %v1130 = vpop.trf.xlu0
        %1131 = vxpose.xlu0.c.b16.start [1/8] %v898, 128
        %1132 = vxpose.xlu0.c.b16.cont [2/8] 0, 128
        %1133 = vxpose.xlu0.c.b16.cont [3/8] 0, 128
        %1134 = vxpose.xlu0.c.b16.cont [4/8] 0, 128
        %1135 = vxpose.xlu0.c.b16.cont [5/8] 0, 128
        %1136 = vxpose.xlu0.c.b16.cont [6/8] 0, 128
        %1137 = vxpose.xlu0.c.b16.cont [7/8] 0, 128
        %1138 = vxpose.xlu0.c.b16.end [8/8] 0, 128
        %v1139 = vpop.trf.xlu0
        %v1140 = vpop.trf.xlu0
        %v1141 = vpop.trf.xlu0
        %v1142 = vpop.trf.xlu0
        %v1143 = vpop.trf.xlu0
        %v1144 = vpop.trf.xlu0
        %v1145 = vpop.trf.xlu0
        %v1146 = vpop.trf.xlu0
        %1147 = vxpose.xlu0.c.b16.start [1/8] %v899, 128
        %1148 = vxpose.xlu0.c.b16.cont [2/8] 0, 128
        %1149 = vxpose.xlu0.c.b16.cont [3/8] 0, 128
        %1150 = vxpose.xlu0.c.b16.cont [4/8] 0, 128
        %1151 = vxpose.xlu0.c.b16.cont [5/8] 0, 128
        %1152 = vxpose.xlu0.c.b16.cont [6/8] 0, 128
        %1153 = vxpose.xlu0.c.b16.cont [7/8] 0, 128
        %1154 = vxpose.xlu0.c.b16.end [8/8] 0, 128
        %v1155 = vpop.trf.xlu0
        %v1156 = vpop.trf.xlu0
        %v1157 = vpop.trf.xlu0
        %v1158 = vpop.trf.xlu0
        %v1159 = vpop.trf.xlu0
        %v1160 = vpop.trf.xlu0
        %v1161 = vpop.trf.xlu0
        %v1162 = vpop.trf.xlu0
        %1163 = vxpose.xlu0.c.b16.start [1/8] %v900, 128
        %1164 = vxpose.xlu0.c.b16.cont [2/8] 0, 128
        %1165 = vxpose.xlu0.c.b16.cont [3/8] 0, 128
        %1166 = vxpose.xlu0.c.b16.cont [4/8] 0, 128
        %1167 = vxpose.xlu0.c.b16.cont [5/8] 0, 128
        %1168 = vxpose.xlu0.c.b16.cont [6/8] 0, 128
        %1169 = vxpose.xlu0.c.b16.cont [7/8] 0, 128
        %1170 = vxpose.xlu0.c.b16.end [8/8] 0, 128
        %v1171 = vpop.trf.xlu0
        %v1172 = vpop.trf.xlu0
        %v1173 = vpop.trf.xlu0
        %v1174 = vpop.trf.xlu0
        %v1175 = vpop.trf.xlu0
        %v1176 = vpop.trf.xlu0
        %v1177 = vpop.trf.xlu0
        %v1178 = vpop.trf.xlu0
        %v1179 = vcombine.low %v1059, %v1123
        %v1181 = vunpack.c.l.s4 1983009808
        %v1182 = vunpack.c.0.s8 %v1181
        %v1183 = vlaneseq
        %v1184 = vshrl.u32 %v1183, 7
        %v1185 = vsub.s32 %v1182, %v1184
        %v1186 = vrot.slane %v1179, %v1185
        %v1187 = vcombine.low %v1091, %v1155
        %v1189 = vunpack.c.l.s4 1983009808
        %v1190 = vunpack.c.0.s8 %v1189
        %v1191 = vlaneseq
        %v1192 = vshrl.u32 %v1191, 7
        %v1193 = vsub.s32 %v1190, %v1192
        %v1194 = vrot.slane %v1187, %v1193
        %v1195 = vcombine.low %v1186, %v1194
        %v1196 = vcombine.high %v1186, %v1194
        %v1198 = vunpack.c.l.s4 1934713408
        %v1199 = vunpack.c.0.s8 %v1198
        %v1200 = vlaneseq
        %v1201 = vshrl.u32 %v1200, 7
        %v1202 = vsub.s32 %v1199, %v1201
        %v1203 = vrot.slane %v1195, %v1202
        %v1205 = vunpack.c.l.s4 1934713408
        %v1206 = vunpack.c.0.s8 %v1205
        %v1207 = vlaneseq
        %v1208 = vshrl.u32 %v1207, 7
        %v1209 = vsub.s32 %v1206, %v1208
        %v1210 = vrot.slane %v1196, %v1209
        %v1211 = vcombine.high %v1203, 0
        %v1212 = vcombine.high %v1210, 0
        %v1213 = vcombine.low %v1075, %v1139
        %v1215 = vunpack.c.l.s4 1983009808
        %v1216 = vunpack.c.0.s8 %v1215
        %v1217 = vlaneseq
        %v1218 = vshrl.u32 %v1217, 7
        %v1219 = vsub.s32 %v1216, %v1218
        %v1220 = vrot.slane %v1213, %v1219
        %v1221 = vcombine.low %v1107, %v1171
        %v1223 = vunpack.c.l.s4 1983009808
        %v1224 = vunpack.c.0.s8 %v1223
        %v1225 = vlaneseq
        %v1226 = vshrl.u32 %v1225, 7
        %v1227 = vsub.s32 %v1224, %v1226
        %v1228 = vrot.slane %v1221, %v1227
        %v1229 = vcombine.low %v1220, %v1228
        %v1230 = vcombine.high %v1220, %v1228
        %v1232 = vunpack.c.l.s4 1934713408
        %v1233 = vunpack.c.0.s8 %v1232
        %v1234 = vlaneseq
        %v1235 = vshrl.u32 %v1234, 7
        %v1236 = vsub.s32 %v1233, %v1235
        %v1237 = vrot.slane %v1229, %v1236
        %v1239 = vunpack.c.l.s4 1934713408
        %v1240 = vunpack.c.0.s8 %v1239
        %v1241 = vlaneseq
        %v1242 = vshrl.u32 %v1241, 7
        %v1243 = vsub.s32 %v1240, %v1242
        %v1244 = vrot.slane %v1230, %v1243
        %v1245 = vcombine.high %v1237, 0
        %v1246 = vcombine.high %v1244, 0
        %v1249 = vpack.i.b16 %v1237, %v1203
        %v1251 = vshrl.u32 %v1203, 16
        %v1252 = vshrl.u32 %v1237, 16
        %v1253 = vpack.i.b16 %v1252, %v1251
        %v1257 = vpack.i.b16 %v1245, %v1211
        %v1259 = vshrl.u32 %v1211, 16
        %v1260 = vshrl.u32 %v1245, 16
        %v1261 = vpack.i.b16 %v1260, %v1259
        %v1265 = vpack.i.b16 %v1244, %v1210
        %v1267 = vshrl.u32 %v1210, 16
        %v1268 = vshrl.u32 %v1244, 16
        %v1269 = vpack.i.b16 %v1268, %v1267
        %v1273 = vpack.i.b16 %v1246, %v1212
        %v1275 = vshrl.u32 %v1212, 16
        %v1276 = vshrl.u32 %v1246, 16
        %v1277 = vpack.i.b16 %v1276, %v1275
        %1279 = vxpose.xlu0.c.b16.start [1/8] %v1249, 128
        %1280 = vxpose.xlu0.c.b16.cont [2/8] 0, 128
        %1281 = vxpose.xlu0.c.b16.cont [3/8] 0, 128
        %1282 = vxpose.xlu0.c.b16.cont [4/8] 0, 128
        %1283 = vxpose.xlu0.c.b16.cont [5/8] 0, 128
        %1284 = vxpose.xlu0.c.b16.cont [6/8] 0, 128
        %1285 = vxpose.xlu0.c.b16.cont [7/8] 0, 128
        %1286 = vxpose.xlu0.c.b16.end [8/8] 0, 128
        %v1287 = vpop.trf.xlu0
        %v1288 = vpop.trf.xlu0
        %v1289 = vpop.trf.xlu0
        %v1290 = vpop.trf.xlu0
        %v1291 = vpop.trf.xlu0
        %v1292 = vpop.trf.xlu0
        %v1293 = vpop.trf.xlu0
        %v1294 = vpop.trf.xlu0
        %1295 = vxpose.xlu0.c.b16.start [1/8] %v1253, 128
        %1296 = vxpose.xlu0.c.b16.cont [2/8] 0, 128
        %1297 = vxpose.xlu0.c.b16.cont [3/8] 0, 128
        %1298 = vxpose.xlu0.c.b16.cont [4/8] 0, 128
        %1299 = vxpose.xlu0.c.b16.cont [5/8] 0, 128
        %1300 = vxpose.xlu0.c.b16.cont [6/8] 0, 128
        %1301 = vxpose.xlu0.c.b16.cont [7/8] 0, 128
        %1302 = vxpose.xlu0.c.b16.end [8/8] 0, 128
        %v1303 = vpop.trf.xlu0
        %v1304 = vpop.trf.xlu0
        %v1305 = vpop.trf.xlu0
        %v1306 = vpop.trf.xlu0
        %v1307 = vpop.trf.xlu0
        %v1308 = vpop.trf.xlu0
        %v1309 = vpop.trf.xlu0
        %v1310 = vpop.trf.xlu0
        %1311 = vxpose.xlu0.c.b16.start [1/8] %v1257, 128
        %1312 = vxpose.xlu0.c.b16.cont [2/8] 0, 128
        %1313 = vxpose.xlu0.c.b16.cont [3/8] 0, 128
        %1314 = vxpose.xlu0.c.b16.cont [4/8] 0, 128
        %1315 = vxpose.xlu0.c.b16.cont [5/8] 0, 128
        %1316 = vxpose.xlu0.c.b16.cont [6/8] 0, 128
        %1317 = vxpose.xlu0.c.b16.cont [7/8] 0, 128
        %1318 = vxpose.xlu0.c.b16.end [8/8] 0, 128
        %v1319 = vpop.trf.xlu0
        %v1320 = vpop.trf.xlu0
        %v1321 = vpop.trf.xlu0
        %v1322 = vpop.trf.xlu0
        %v1323 = vpop.trf.xlu0
        %v1324 = vpop.trf.xlu0
        %v1325 = vpop.trf.xlu0
        %v1326 = vpop.trf.xlu0
        %1327 = vxpose.xlu0.c.b16.start [1/8] %v1261, 128
        %1328 = vxpose.xlu0.c.b16.cont [2/8] 0, 128
        %1329 = vxpose.xlu0.c.b16.cont [3/8] 0, 128
        %1330 = vxpose.xlu0.c.b16.cont [4/8] 0, 128
        %1331 = vxpose.xlu0.c.b16.cont [5/8] 0, 128
        %1332 = vxpose.xlu0.c.b16.cont [6/8] 0, 128
        %1333 = vxpose.xlu0.c.b16.cont [7/8] 0, 128
        %1334 = vxpose.xlu0.c.b16.end [8/8] 0, 128
        %v1335 = vpop.trf.xlu0
        %v1336 = vpop.trf.xlu0
        %v1337 = vpop.trf.xlu0
        %v1338 = vpop.trf.xlu0
        %v1339 = vpop.trf.xlu0
        %v1340 = vpop.trf.xlu0
        %v1341 = vpop.trf.xlu0
        %v1342 = vpop.trf.xlu0
        %1343 = vxpose.xlu0.c.b16.start [1/8] %v1265, 128
        %1344 = vxpose.xlu0.c.b16.cont [2/8] 0, 128
        %1345 = vxpose.xlu0.c.b16.cont [3/8] 0, 128
        %1346 = vxpose.xlu0.c.b16.cont [4/8] 0, 128
        %1347 = vxpose.xlu0.c.b16.cont [5/8] 0, 128
        %1348 = vxpose.xlu0.c.b16.cont [6/8] 0, 128
        %1349 = vxpose.xlu0.c.b16.cont [7/8] 0, 128
        %1350 = vxpose.xlu0.c.b16.end [8/8] 0, 128
        %v1351 = vpop.trf.xlu0
        %v1352 = vpop.trf.xlu0
        %v1353 = vpop.trf.xlu0
        %v1354 = vpop.trf.xlu0
        %v1355 = vpop.trf.xlu0
        %v1356 = vpop.trf.xlu0
        %v1357 = vpop.trf.xlu0
        %v1358 = vpop.trf.xlu0
        %1359 = vxpose.xlu0.c.b16.start [1/8] %v1269, 128
        %1360 = vxpose.xlu0.c.b16.cont [2/8] 0, 128
        %1361 = vxpose.xlu0.c.b16.cont [3/8] 0, 128
        %1362 = vxpose.xlu0.c.b16.cont [4/8] 0, 128
        %1363 = vxpose.xlu0.c.b16.cont [5/8] 0, 128
        %1364 = vxpose.xlu0.c.b16.cont [6/8] 0, 128
        %1365 = vxpose.xlu0.c.b16.cont [7/8] 0, 128
        %1366 = vxpose.xlu0.c.b16.end [8/8] 0, 128
        %v1367 = vpop.trf.xlu0
        %v1368 = vpop.trf.xlu0
        %v1369 = vpop.trf.xlu0
        %v1370 = vpop.trf.xlu0
        %v1371 = vpop.trf.xlu0
        %v1372 = vpop.trf.xlu0
        %v1373 = vpop.trf.xlu0
        %v1374 = vpop.trf.xlu0
        %1375 = vxpose.xlu0.c.b16.start [1/8] %v1273, 128
        %1376 = vxpose.xlu0.c.b16.cont [2/8] 0, 128
        %1377 = vxpose.xlu0.c.b16.cont [3/8] 0, 128
        %1378 = vxpose.xlu0.c.b16.cont [4/8] 0, 128
        %1379 = vxpose.xlu0.c.b16.cont [5/8] 0, 128
        %1380 = vxpose.xlu0.c.b16.cont [6/8] 0, 128
        %1381 = vxpose.xlu0.c.b16.cont [7/8] 0, 128
        %1382 = vxpose.xlu0.c.b16.end [8/8] 0, 128
        %v1383 = vpop.trf.xlu0
        %v1384 = vpop.trf.xlu0
        %v1385 = vpop.trf.xlu0
        %v1386 = vpop.trf.xlu0
        %v1387 = vpop.trf.xlu0
        %v1388 = vpop.trf.xlu0
        %v1389 = vpop.trf.xlu0
        %v1390 = vpop.trf.xlu0
        %1391 = vxpose.xlu0.c.b16.start [1/8] %v1277, 128
        %1392 = vxpose.xlu0.c.b16.cont [2/8] 0, 128
        %1393 = vxpose.xlu0.c.b16.cont [3/8] 0, 128
        %1394 = vxpose.xlu0.c.b16.cont [4/8] 0, 128
        %1395 = vxpose.xlu0.c.b16.cont [5/8] 0, 128
        %1396 = vxpose.xlu0.c.b16.cont [6/8] 0, 128
        %1397 = vxpose.xlu0.c.b16.cont [7/8] 0, 128
        %1398 = vxpose.xlu0.c.b16.end [8/8] 0, 128
        %v1399 = vpop.trf.xlu0
        %v1400 = vpop.trf.xlu0
        %v1401 = vpop.trf.xlu0
        %v1402 = vpop.trf.xlu0
        %v1403 = vpop.trf.xlu0
        %v1404 = vpop.trf.xlu0
        %v1405 = vpop.trf.xlu0
        %v1406 = vpop.trf.xlu0
        %v1407 = vcombine.low %v1287, %v1351
        %v1409 = vunpack.c.l.s4 1983009808
        %v1410 = vunpack.c.0.s8 %v1409
        %v1411 = vlaneseq
        %v1412 = vshrl.u32 %v1411, 7
        %v1413 = vsub.s32 %v1410, %v1412
        %v1414 = vrot.slane %v1407, %v1413
        %v1415 = vcombine.low %v1319, %v1383
        %v1417 = vunpack.c.l.s4 1983009808
        %v1418 = vunpack.c.0.s8 %v1417
        %v1419 = vlaneseq
        %v1420 = vshrl.u32 %v1419, 7
        %v1421 = vsub.s32 %v1418, %v1420
        %v1422 = vrot.slane %v1415, %v1421
        %v1423 = vcombine.low %v1414, %v1422
        %v1425 = vunpack.c.l.s4 1934713408
        %v1426 = vunpack.c.0.s8 %v1425
        %v1427 = vlaneseq
        %v1428 = vshrl.u32 %v1427, 7
        %v1429 = vsub.s32 %v1426, %v1428
        %v1430 = vrot.slane %v1423, %v1429
        %v1431 = vcombine.high %v1430, 0
        %v1432 = vcombine.low %v1303, %v1367
        %v1434 = vunpack.c.l.s4 1983009808
        %v1435 = vunpack.c.0.s8 %v1434
        %v1436 = vlaneseq
        %v1437 = vshrl.u32 %v1436, 7
        %v1438 = vsub.s32 %v1435, %v1437
        %v1439 = vrot.slane %v1432, %v1438
        %v1440 = vcombine.low %v1335, %v1399
        %v1442 = vunpack.c.l.s4 1983009808
        %v1443 = vunpack.c.0.s8 %v1442
        %v1444 = vlaneseq
        %v1445 = vshrl.u32 %v1444, 7
        %v1446 = vsub.s32 %v1443, %v1445
        %v1447 = vrot.slane %v1440, %v1446
        %v1448 = vcombine.low %v1439, %v1447
        %v1450 = vunpack.c.l.s4 1934713408
        %v1451 = vunpack.c.0.s8 %v1450
        %v1452 = vlaneseq
        %v1453 = vshrl.u32 %v1452, 7
        %v1454 = vsub.s32 %v1451, %v1453
        %v1455 = vrot.slane %v1448, %v1454
        %v1456 = vcombine.high %v1455, 0
        %v1459 = vpack.i.b16 %v1455, %v1430
        %v1460 = vshrl.u32 %v1430, 16
        %v1461 = vshrl.u32 %v1455, 16
        %v1462 = vpack.i.b16 %v1461, %v1460
        %v1465 = vpack.i.b16 %v1456, %v1431
        %v1466 = vshrl.u32 %v1431, 16
        %v1467 = vshrl.u32 %v1456, 16
        %v1468 = vpack.i.b16 %v1467, %v1466
        %vm1469 = vcmask 64512
        %v1471 = vsel %vm1469, %v1041, 0
        %vm1473 = vcmask 1043456
        %v1475 = vsel %vm1473, %v1459, 0
        %1477 = vmatprep.subr.bf16.mxu0 0
        %1478 = vmatpush1.bf16.msra.mxu0 %v1475
        %1479 = vmatprep.subr.bf16.mxu0 0
        %1480 = vmatpush1.bf16.msra.mxu0 0
        %1481 = vmatprep.subr.bf16.mxu0 0
        %1482 = vmatpush1.bf16.msra.mxu0 0
        %1483 = vmatprep.subr.bf16.mxu0 0
        %1484 = vmatpush1.bf16.msra.mxu0 0
        %1485 = vmatprep.subr.bf16.mxu0 0
        %1486 = vmatpush1.bf16.msra.mxu0 0
        %1487 = vmatprep.subr.bf16.mxu0 0
        %1488 = vmatpush1.bf16.msra.mxu0 0
        %1489 = vmatprep.subr.bf16.mxu0 0
        %1490 = vmatpush1.bf16.msra.mxu0 0
        %1491 = vmatprep.subr.bf16.mxu0 0
        %1492 = vmatpush1.bf16.msra.mxu0 0
        %1493 = vmatprep.subr.bf16.mxu0 0
        %1494 = vmatpush1.bf16.msra.mxu0 0
        %1495 = vmatprep.subr.bf16.mxu0 0
        %1496 = vmatpush1.bf16.msra.mxu0 0
        %1497 = vmatprep.subr.bf16.mxu0 0
        %1498 = vmatpush1.bf16.msra.mxu0 0
        %1499 = vmatprep.subr.bf16.mxu0 0
        %1500 = vmatpush1.bf16.msra.mxu0 0
        %1501 = vmatprep.subr.bf16.mxu0 0
        %1502 = vmatpush1.bf16.msra.mxu0 0
        %1503 = vmatprep.subr.bf16.mxu0 0
        %1504 = vmatpush1.bf16.msra.mxu0 0
        %1505 = vmatprep.subr.bf16.mxu0 0
        %1506 = vmatpush1.bf16.msra.mxu0 0
        %1507 = vmatprep.subr.bf16.mxu0 0
        %1508 = vmatpush1.bf16.msra.mxu0 0
        %1509 = vmatprep.mubr.bf16.mxu0 0
        %1510 = vmatmul.mubr.bf16.gmra.mrb[0].mxu0 %v1471
        %v1511 = vpop.f32.mrb[0].mxu0
        %v1512 = vadd.f32 0.0, %v1511
        %v1513 = vpop.f32.mrb[0].mxu0
        %v1514 = vpop.f32.mrb[0].mxu0
        %v1515 = vpop.f32.mrb[0].mxu0
        %1516 = vdwg.mxu0
        %v1518 = vsel %vm1469, %v1044, 0
        %v1521 = vsel %vm1473, %v1462, 0
        %1523 = vmatprep.subr.bf16.mxu0 0
        %1524 = vmatpush1.bf16.msra.mxu0 %v1521
        %1525 = vmatprep.subr.bf16.mxu0 0
        %1526 = vmatpush1.bf16.msra.mxu0 0
        %1527 = vmatprep.subr.bf16.mxu0 0
        %1528 = vmatpush1.bf16.msra.mxu0 0
        %1529 = vmatprep.subr.bf16.mxu0 0
        %1530 = vmatpush1.bf16.msra.mxu0 0
        %1531 = vmatprep.subr.bf16.mxu0 0
        %1532 = vmatpush1.bf16.msra.mxu0 0
        %1533 = vmatprep.subr.bf16.mxu0 0
        %1534 = vmatpush1.bf16.msra.mxu0 0
        %1535 = vmatprep.subr.bf16.mxu0 0
        %1536 = vmatpush1.bf16.msra.mxu0 0
        %1537 = vmatprep.subr.bf16.mxu0 0
        %1538 = vmatpush1.bf16.msra.mxu0 0
        %1539 = vmatprep.subr.bf16.mxu0 0
        %1540 = vmatpush1.bf16.msra.mxu0 0
        %1541 = vmatprep.subr.bf16.mxu0 0
        %1542 = vmatpush1.bf16.msra.mxu0 0
        %1543 = vmatprep.subr.bf16.mxu0 0
        %1544 = vmatpush1.bf16.msra.mxu0 0
        %1545 = vmatprep.subr.bf16.mxu0 0
        %1546 = vmatpush1.bf16.msra.mxu0 0
        %1547 = vmatprep.subr.bf16.mxu0 0
        %1548 = vmatpush1.bf16.msra.mxu0 0
        %1549 = vmatprep.subr.bf16.mxu0 0
        %1550 = vmatpush1.bf16.msra.mxu0 0
        %1551 = vmatprep.subr.bf16.mxu0 0
        %1552 = vmatpush1.bf16.msra.mxu0 0
        %1553 = vmatprep.subr.bf16.mxu0 0
        %1554 = vmatpush1.bf16.msra.mxu0 0
        %1555 = vmatprep.mubr.bf16.mxu0 0
        %1556 = vmatmul.mubr.bf16.gmra.mrb[0].mxu0 %v1518
        %v1557 = vpop.f32.mrb[0].mxu0
        %v1558 = vadd.f32 0.0, %v1557
        %v1559 = vpop.f32.mrb[0].mxu0
        %v1560 = vpop.f32.mrb[0].mxu0
        %v1561 = vpop.f32.mrb[0].mxu0
        %1562 = vdwg.mxu0
        %v1564 = vsel %vm1469, %v1047, 0
        %v1567 = vsel %vm1473, %v1465, 0
        %1569 = vmatprep.subr.bf16.mxu0 0
        %1570 = vmatpush1.bf16.msra.mxu0 %v1567
        %1571 = vmatprep.subr.bf16.mxu0 0
        %1572 = vmatpush1.bf16.msra.mxu0 0
        %1573 = vmatprep.subr.bf16.mxu0 0
        %1574 = vmatpush1.bf16.msra.mxu0 0
        %1575 = vmatprep.subr.bf16.mxu0 0
        %1576 = vmatpush1.bf16.msra.mxu0 0
        %1577 = vmatprep.subr.bf16.mxu0 0
        %1578 = vmatpush1.bf16.msra.mxu0 0
        %1579 = vmatprep.subr.bf16.mxu0 0
        %1580 = vmatpush1.bf16.msra.mxu0 0
        %1581 = vmatprep.subr.bf16.mxu0 0
        %1582 = vmatpush1.bf16.msra.mxu0 0
        %1583 = vmatprep.subr.bf16.mxu0 0
        %1584 = vmatpush1.bf16.msra.mxu0 0
        %1585 = vmatprep.subr.bf16.mxu0 0
        %1586 = vmatpush1.bf16.msra.mxu0 0
        %1587 = vmatprep.subr.bf16.mxu0 0
        %1588 = vmatpush1.bf16.msra.mxu0 0
        %1589 = vmatprep.subr.bf16.mxu0 0
        %1590 = vmatpush1.bf16.msra.mxu0 0
        %1591 = vmatprep.subr.bf16.mxu0 0
        %1592 = vmatpush1.bf16.msra.mxu0 0
        %1593 = vmatprep.subr.bf16.mxu0 0
        %1594 = vmatpush1.bf16.msra.mxu0 0
        %1595 = vmatprep.subr.bf16.mxu0 0
        %1596 = vmatpush1.bf16.msra.mxu0 0
        %1597 = vmatprep.subr.bf16.mxu0 0
        %1598 = vmatpush1.bf16.msra.mxu0 0
        %1599 = vmatprep.subr.bf16.mxu0 0
        %1600 = vmatpush1.bf16.msra.mxu0 0
        %1601 = vmatprep.mubr.bf16.mxu0 0
        %1602 = vmatmul.mubr.bf16.gmra.mrb[0].mxu0 %v1564
        %v1603 = vpop.f32.mrb[0].mxu0
        %v1604 = vadd.f32 0.0, %v1603
        %v1605 = vpop.f32.mrb[0].mxu0
        %v1606 = vpop.f32.mrb[0].mxu0
        %v1607 = vpop.f32.mrb[0].mxu0
        %1608 = vdwg.mxu0
        %v1610 = vsel %vm1469, %v1050, 0
        %v1613 = vsel %vm1473, %v1468, 0
        %1615 = vmatprep.subr.bf16.mxu0 0
        %1616 = vmatpush1.bf16.msra.mxu0 %v1613
        %1617 = vmatprep.subr.bf16.mxu0 0
        %1618 = vmatpush1.bf16.msra.mxu0 0
        %1619 = vmatprep.subr.bf16.mxu0 0
        %1620 = vmatpush1.bf16.msra.mxu0 0
        %1621 = vmatprep.subr.bf16.mxu0 0
        %1622 = vmatpush1.bf16.msra.mxu0 0
        %1623 = vmatprep.subr.bf16.mxu0 0
        %1624 = vmatpush1.bf16.msra.mxu0 0
        %1625 = vmatprep.subr.bf16.mxu0 0
        %1626 = vmatpush1.bf16.msra.mxu0 0
        %1627 = vmatprep.subr.bf16.mxu0 0
        %1628 = vmatpush1.bf16.msra.mxu0 0
        %1629 = vmatprep.subr.bf16.mxu0 0
        %1630 = vmatpush1.bf16.msra.mxu0 0
        %1631 = vmatprep.subr.bf16.mxu0 0
        %1632 = vmatpush1.bf16.msra.mxu0 0
        %1633 = vmatprep.subr.bf16.mxu0 0
        %1634 = vmatpush1.bf16.msra.mxu0 0
        %1635 = vmatprep.subr.bf16.mxu0 0
        %1636 = vmatpush1.bf16.msra.mxu0 0
        %1637 = vmatprep.subr.bf16.mxu0 0
        %1638 = vmatpush1.bf16.msra.mxu0 0
        %1639 = vmatprep.subr.bf16.mxu0 0
        %1640 = vmatpush1.bf16.msra.mxu0 0
        %1641 = vmatprep.subr.bf16.mxu0 0
        %1642 = vmatpush1.bf16.msra.mxu0 0
        %1643 = vmatprep.subr.bf16.mxu0 0
        %1644 = vmatpush1.bf16.msra.mxu0 0
        %1645 = vmatprep.subr.bf16.mxu0 0
        %1646 = vmatpush1.bf16.msra.mxu0 0
        %1647 = vmatprep.mubr.bf16.mxu0 0
        %1648 = vmatmul.mubr.bf16.gmra.mrb[0].mxu0 %v1610
        %v1649 = vpop.f32.mrb[0].mxu0
        %v1650 = vadd.f32 0.0, %v1649
        %v1651 = vpop.f32.mrb[0].mxu0
        %v1652 = vpop.f32.mrb[0].mxu0
        %v1653 = vpop.f32.mrb[0].mxu0
        %1654 = vdwg.mxu0
        %v1655 = vsel %vm1469, %v1512, -inf
        %1656 = vmax.xlane.f32.xlu0 %v1655
        %v1657 = vpop.xlane.xlu0 %1656
        %v1658 = vsel %vm1469, %v1558, -inf
        %1659 = vmax.xlane.f32.xlu0 %v1658
        %v1660 = vpop.xlane.xlu0 %1659
        %v1661 = vsel %vm1469, %v1604, -inf
        %1662 = vmax.xlane.f32.xlu0 %v1661
        %v1663 = vpop.xlane.xlu0 %1662
        %v1664 = vsel %vm1469, %v1650, -inf
        %1665 = vmax.xlane.f32.xlu0 %v1664
        %v1666 = vpop.xlane.xlu0 %1665
        %v1667 = vsub.f32 %v1512, %v1657
        %v1668 = vsub.f32 %v1558, %v1660
        %v1669 = vsub.f32 %v1604, %v1663
        %v1670 = vsub.f32 %v1650, %v1666
        %v1671 = vmul.f32 %v1667, 1.442695
        %v1672 = vpow.pop %v1671
        %v1673 = vmul.f32 %v1668, 1.442695
        %v1674 = vpow.pop %v1673
        %v1675 = vmul.f32 %v1669, 1.442695
        %v1676 = vpow.pop %v1675
        %v1677 = vmul.f32 %v1670, 1.442695
        %v1678 = vpow.pop %v1677
        %v1679 = vsel %vm1469, %v1672, 0.0
        %1680 = vadd.xlane.f32.xlu0 %v1679
        %v1681 = vpop.xlane.xlu0 %1680
        %v1682 = vsel %vm1469, %v1674, 0.0
        %1683 = vadd.xlane.f32.xlu0 %v1682
        %v1684 = vpop.xlane.xlu0 %1683
        %v1685 = vsel %vm1469, %v1676, 0.0
        %1686 = vadd.xlane.f32.xlu0 %v1685
        %v1687 = vpop.xlane.xlu0 %1686
        %v1688 = vsel %vm1469, %v1678, 0.0
        %1689 = vadd.xlane.f32.xlu0 %v1688
        %v1690 = vpop.xlane.xlu0 %1689
        %v1691 = vrcp.pop %v1681
        %v1692 = vrcp.pop %v1684
        %v1693 = vrcp.pop %v1687
        %v1694 = vrcp.pop %v1690
        %v1695 = vmul.f32 %v1672, %v1691
        %v1696 = vmul.f32 %v1674, %v1692
        %v1697 = vmul.f32 %v1676, %v1693
        %v1698 = vmul.f32 %v1678, %v1694
        %v1699 = vpack.c.bf16 %v1695, %v1695
        %v1700 = vpack.c.bf16 %v1696, %v1696
        %v1701 = vpack.c.bf16 %v1697, %v1697
        %v1702 = vpack.c.bf16 %v1698, %v1698
        %1703 = vxpose.xlu0.c.b16.start [1/8] %v981, 128
        %1704 = vxpose.xlu0.c.b16.cont [2/8] 0, 128
        %1705 = vxpose.xlu0.c.b16.cont [3/8] 0, 128
        %1706 = vxpose.xlu0.c.b16.cont [4/8] 0, 128
        %1707 = vxpose.xlu0.c.b16.cont [5/8] 0, 128
        %1708 = vxpose.xlu0.c.b16.cont [6/8] 0, 128
        %1709 = vxpose.xlu0.c.b16.cont [7/8] 0, 128
        %1710 = vxpose.xlu0.c.b16.end [8/8] 0, 128
        %v1711 = vpop.trf.xlu0
        %v1712 = vpop.trf.xlu0
        %v1713 = vpop.trf.xlu0
        %v1714 = vpop.trf.xlu0
        %v1715 = vpop.trf.xlu0
        %v1716 = vpop.trf.xlu0
        %v1717 = vpop.trf.xlu0
        %v1718 = vpop.trf.xlu0
        %1719 = vxpose.xlu0.c.b16.start [1/8] %v982, 128
        %1720 = vxpose.xlu0.c.b16.cont [2/8] 0, 128
        %1721 = vxpose.xlu0.c.b16.cont [3/8] 0, 128
        %1722 = vxpose.xlu0.c.b16.cont [4/8] 0, 128
        %1723 = vxpose.xlu0.c.b16.cont [5/8] 0, 128
        %1724 = vxpose.xlu0.c.b16.cont [6/8] 0, 128
        %1725 = vxpose.xlu0.c.b16.cont [7/8] 0, 128
        %1726 = vxpose.xlu0.c.b16.end [8/8] 0, 128
        %v1727 = vpop.trf.xlu0
        %v1728 = vpop.trf.xlu0
        %v1729 = vpop.trf.xlu0
        %v1730 = vpop.trf.xlu0
        %v1731 = vpop.trf.xlu0
        %v1732 = vpop.trf.xlu0
        %v1733 = vpop.trf.xlu0
        %v1734 = vpop.trf.xlu0
        %1735 = vxpose.xlu0.c.b16.start [1/8] %v983, 128
        %1736 = vxpose.xlu0.c.b16.cont [2/8] 0, 128
        %1737 = vxpose.xlu0.c.b16.cont [3/8] 0, 128
        %1738 = vxpose.xlu0.c.b16.cont [4/8] 0, 128
        %1739 = vxpose.xlu0.c.b16.cont [5/8] 0, 128
        %1740 = vxpose.xlu0.c.b16.cont [6/8] 0, 128
        %1741 = vxpose.xlu0.c.b16.cont [7/8] 0, 128
        %1742 = vxpose.xlu0.c.b16.end [8/8] 0, 128
        %v1743 = vpop.trf.xlu0
        %v1744 = vpop.trf.xlu0
        %v1745 = vpop.trf.xlu0
        %v1746 = vpop.trf.xlu0
        %v1747 = vpop.trf.xlu0
        %v1748 = vpop.trf.xlu0
        %v1749 = vpop.trf.xlu0
        %v1750 = vpop.trf.xlu0
        %1751 = vxpose.xlu0.c.b16.start [1/8] %v984, 128
        %1752 = vxpose.xlu0.c.b16.cont [2/8] 0, 128
        %1753 = vxpose.xlu0.c.b16.cont [3/8] 0, 128
        %1754 = vxpose.xlu0.c.b16.cont [4/8] 0, 128
        %1755 = vxpose.xlu0.c.b16.cont [5/8] 0, 128
        %1756 = vxpose.xlu0.c.b16.cont [6/8] 0, 128
        %1757 = vxpose.xlu0.c.b16.cont [7/8] 0, 128
        %1758 = vxpose.xlu0.c.b16.end [8/8] 0, 128
        %v1759 = vpop.trf.xlu0
        %v1760 = vpop.trf.xlu0
        %v1761 = vpop.trf.xlu0
        %v1762 = vpop.trf.xlu0
        %v1763 = vpop.trf.xlu0
        %v1764 = vpop.trf.xlu0
        %v1765 = vpop.trf.xlu0
        %v1766 = vpop.trf.xlu0
        %1767 = vxpose.xlu0.c.b16.start [1/8] %v985, 128
        %1768 = vxpose.xlu0.c.b16.cont [2/8] 0, 128
        %1769 = vxpose.xlu0.c.b16.cont [3/8] 0, 128
        %1770 = vxpose.xlu0.c.b16.cont [4/8] 0, 128
        %1771 = vxpose.xlu0.c.b16.cont [5/8] 0, 128
        %1772 = vxpose.xlu0.c.b16.cont [6/8] 0, 128
        %1773 = vxpose.xlu0.c.b16.cont [7/8] 0, 128
        %1774 = vxpose.xlu0.c.b16.end [8/8] 0, 128
        %v1775 = vpop.trf.xlu0
        %v1776 = vpop.trf.xlu0
        %v1777 = vpop.trf.xlu0
        %v1778 = vpop.trf.xlu0
        %v1779 = vpop.trf.xlu0
        %v1780 = vpop.trf.xlu0
        %v1781 = vpop.trf.xlu0
        %v1782 = vpop.trf.xlu0
        %1783 = vxpose.xlu0.c.b16.start [1/8] %v986, 128
        %1784 = vxpose.xlu0.c.b16.cont [2/8] 0, 128
        %1785 = vxpose.xlu0.c.b16.cont [3/8] 0, 128
        %1786 = vxpose.xlu0.c.b16.cont [4/8] 0, 128
        %1787 = vxpose.xlu0.c.b16.cont [5/8] 0, 128
        %1788 = vxpose.xlu0.c.b16.cont [6/8] 0, 128
        %1789 = vxpose.xlu0.c.b16.cont [7/8] 0, 128
        %1790 = vxpose.xlu0.c.b16.end [8/8] 0, 128
        %v1791 = vpop.trf.xlu0
        %v1792 = vpop.trf.xlu0
        %v1793 = vpop.trf.xlu0
        %v1794 = vpop.trf.xlu0
        %v1795 = vpop.trf.xlu0
        %v1796 = vpop.trf.xlu0
        %v1797 = vpop.trf.xlu0
        %v1798 = vpop.trf.xlu0
        %1799 = vxpose.xlu0.c.b16.start [1/8] %v987, 128
        %1800 = vxpose.xlu0.c.b16.cont [2/8] 0, 128
        %1801 = vxpose.xlu0.c.b16.cont [3/8] 0, 128
        %1802 = vxpose.xlu0.c.b16.cont [4/8] 0, 128
        %1803 = vxpose.xlu0.c.b16.cont [5/8] 0, 128
        %1804 = vxpose.xlu0.c.b16.cont [6/8] 0, 128
        %1805 = vxpose.xlu0.c.b16.cont [7/8] 0, 128
        %1806 = vxpose.xlu0.c.b16.end [8/8] 0, 128
        %v1807 = vpop.trf.xlu0
        %v1808 = vpop.trf.xlu0
        %v1809 = vpop.trf.xlu0
        %v1810 = vpop.trf.xlu0
        %v1811 = vpop.trf.xlu0
        %v1812 = vpop.trf.xlu0
        %v1813 = vpop.trf.xlu0
        %v1814 = vpop.trf.xlu0
        %1815 = vxpose.xlu0.c.b16.start [1/8] %v988, 128
        %1816 = vxpose.xlu0.c.b16.cont [2/8] 0, 128
        %1817 = vxpose.xlu0.c.b16.cont [3/8] 0, 128
        %1818 = vxpose.xlu0.c.b16.cont [4/8] 0, 128
        %1819 = vxpose.xlu0.c.b16.cont [5/8] 0, 128
        %1820 = vxpose.xlu0.c.b16.cont [6/8] 0, 128
        %1821 = vxpose.xlu0.c.b16.cont [7/8] 0, 128
        %1822 = vxpose.xlu0.c.b16.end [8/8] 0, 128
        %v1823 = vpop.trf.xlu0
        %v1824 = vpop.trf.xlu0
        %v1825 = vpop.trf.xlu0
        %v1826 = vpop.trf.xlu0
        %v1827 = vpop.trf.xlu0
        %v1828 = vpop.trf.xlu0
        %v1829 = vpop.trf.xlu0
        %v1830 = vpop.trf.xlu0
        %v1831 = vcombine.low %v1711, %v1775
        %v1833 = vunpack.c.l.s4 1983009808
        %v1834 = vunpack.c.0.s8 %v1833
        %v1835 = vlaneseq
        %v1836 = vshrl.u32 %v1835, 7
        %v1837 = vsub.s32 %v1834, %v1836
        %v1838 = vrot.slane %v1831, %v1837
        %v1839 = vcombine.low %v1743, %v1807
        %v1841 = vunpack.c.l.s4 1983009808
        %v1842 = vunpack.c.0.s8 %v1841
        %v1843 = vlaneseq
        %v1844 = vshrl.u32 %v1843, 7
        %v1845 = vsub.s32 %v1842, %v1844
        %v1846 = vrot.slane %v1839, %v1845
        %v1847 = vcombine.low %v1838, %v1846
        %v1848 = vcombine.high %v1838, %v1846
        %v1850 = vunpack.c.l.s4 1934713408
        %v1851 = vunpack.c.0.s8 %v1850
        %v1852 = vlaneseq
        %v1853 = vshrl.u32 %v1852, 7
        %v1854 = vsub.s32 %v1851, %v1853
        %v1855 = vrot.slane %v1847, %v1854
        %v1857 = vunpack.c.l.s4 1934713408
        %v1858 = vunpack.c.0.s8 %v1857
        %v1859 = vlaneseq
        %v1860 = vshrl.u32 %v1859, 7
        %v1861 = vsub.s32 %v1858, %v1860
        %v1862 = vrot.slane %v1848, %v1861
        %v1863 = vcombine.high %v1855, 0
        %v1864 = vcombine.high %v1862, 0
        %v1865 = vcombine.low %v1727, %v1791
        %v1867 = vunpack.c.l.s4 1983009808
        %v1868 = vunpack.c.0.s8 %v1867
        %v1869 = vlaneseq
        %v1870 = vshrl.u32 %v1869, 7
        %v1871 = vsub.s32 %v1868, %v1870
        %v1872 = vrot.slane %v1865, %v1871
        %v1873 = vcombine.low %v1759, %v1823
        %v1875 = vunpack.c.l.s4 1983009808
        %v1876 = vunpack.c.0.s8 %v1875
        %v1877 = vlaneseq
        %v1878 = vshrl.u32 %v1877, 7
        %v1879 = vsub.s32 %v1876, %v1878
        %v1880 = vrot.slane %v1873, %v1879
        %v1881 = vcombine.low %v1872, %v1880
        %v1882 = vcombine.high %v1872, %v1880
        %v1884 = vunpack.c.l.s4 1934713408
        %v1885 = vunpack.c.0.s8 %v1884
        %v1886 = vlaneseq
        %v1887 = vshrl.u32 %v1886, 7
        %v1888 = vsub.s32 %v1885, %v1887
        %v1889 = vrot.slane %v1881, %v1888
        %v1891 = vunpack.c.l.s4 1934713408
        %v1892 = vunpack.c.0.s8 %v1891
        %v1893 = vlaneseq
        %v1894 = vshrl.u32 %v1893, 7
        %v1895 = vsub.s32 %v1892, %v1894
        %v1896 = vrot.slane %v1882, %v1895
        %v1897 = vcombine.high %v1889, 0
        %v1898 = vcombine.high %v1896, 0
        %v1901 = vpack.i.b16 %v1889, %v1855
        %v1903 = vshrl.u32 %v1855, 16
        %v1904 = vshrl.u32 %v1889, 16
        %v1905 = vpack.i.b16 %v1904, %v1903
        %v1909 = vpack.i.b16 %v1897, %v1863
        %v1911 = vshrl.u32 %v1863, 16
        %v1912 = vshrl.u32 %v1897, 16
        %v1913 = vpack.i.b16 %v1912, %v1911
        %v1917 = vpack.i.b16 %v1896, %v1862
        %v1919 = vshrl.u32 %v1862, 16
        %v1920 = vshrl.u32 %v1896, 16
        %v1921 = vpack.i.b16 %v1920, %v1919
        %v1925 = vpack.i.b16 %v1898, %v1864
        %v1927 = vshrl.u32 %v1864, 16
        %v1928 = vshrl.u32 %v1898, 16
        %v1929 = vpack.i.b16 %v1928, %v1927
        %1931 = vxpose.xlu0.c.b16.start [1/8] %v1901, 128
        %1932 = vxpose.xlu0.c.b16.cont [2/8] 0, 128
        %1933 = vxpose.xlu0.c.b16.cont [3/8] 0, 128
        %1934 = vxpose.xlu0.c.b16.cont [4/8] 0, 128
        %1935 = vxpose.xlu0.c.b16.cont [5/8] 0, 128
        %1936 = vxpose.xlu0.c.b16.cont [6/8] 0, 128
        %1937 = vxpose.xlu0.c.b16.cont [7/8] 0, 128
        %1938 = vxpose.xlu0.c.b16.end [8/8] 0, 128
        %v1939 = vpop.trf.xlu0
        %v1940 = vpop.trf.xlu0
        %v1941 = vpop.trf.xlu0
        %v1942 = vpop.trf.xlu0
        %v1943 = vpop.trf.xlu0
        %v1944 = vpop.trf.xlu0
        %v1945 = vpop.trf.xlu0
        %v1946 = vpop.trf.xlu0
        %1947 = vxpose.xlu0.c.b16.start [1/8] %v1905, 128
        %1948 = vxpose.xlu0.c.b16.cont [2/8] 0, 128
        %1949 = vxpose.xlu0.c.b16.cont [3/8] 0, 128
        %1950 = vxpose.xlu0.c.b16.cont [4/8] 0, 128
        %1951 = vxpose.xlu0.c.b16.cont [5/8] 0, 128
        %1952 = vxpose.xlu0.c.b16.cont [6/8] 0, 128
        %1953 = vxpose.xlu0.c.b16.cont [7/8] 0, 128
        %1954 = vxpose.xlu0.c.b16.end [8/8] 0, 128
        %v1955 = vpop.trf.xlu0
        %v1956 = vpop.trf.xlu0
        %v1957 = vpop.trf.xlu0
        %v1958 = vpop.trf.xlu0
        %v1959 = vpop.trf.xlu0
        %v1960 = vpop.trf.xlu0
        %v1961 = vpop.trf.xlu0
        %v1962 = vpop.trf.xlu0
        %1963 = vxpose.xlu0.c.b16.start [1/8] %v1909, 128
        %1964 = vxpose.xlu0.c.b16.cont [2/8] 0, 128
        %1965 = vxpose.xlu0.c.b16.cont [3/8] 0, 128
        %1966 = vxpose.xlu0.c.b16.cont [4/8] 0, 128
        %1967 = vxpose.xlu0.c.b16.cont [5/8] 0, 128
        %1968 = vxpose.xlu0.c.b16.cont [6/8] 0, 128
        %1969 = vxpose.xlu0.c.b16.cont [7/8] 0, 128
        %1970 = vxpose.xlu0.c.b16.end [8/8] 0, 128
        %v1971 = vpop.trf.xlu0
        %v1972 = vpop.trf.xlu0
        %v1973 = vpop.trf.xlu0
        %v1974 = vpop.trf.xlu0
        %v1975 = vpop.trf.xlu0
        %v1976 = vpop.trf.xlu0
        %v1977 = vpop.trf.xlu0
        %v1978 = vpop.trf.xlu0
        %1979 = vxpose.xlu0.c.b16.start [1/8] %v1913, 128
        %1980 = vxpose.xlu0.c.b16.cont [2/8] 0, 128
        %1981 = vxpose.xlu0.c.b16.cont [3/8] 0, 128
        %1982 = vxpose.xlu0.c.b16.cont [4/8] 0, 128
        %1983 = vxpose.xlu0.c.b16.cont [5/8] 0, 128
        %1984 = vxpose.xlu0.c.b16.cont [6/8] 0, 128
        %1985 = vxpose.xlu0.c.b16.cont [7/8] 0, 128
        %1986 = vxpose.xlu0.c.b16.end [8/8] 0, 128
        %v1987 = vpop.trf.xlu0
        %v1988 = vpop.trf.xlu0
        %v1989 = vpop.trf.xlu0
        %v1990 = vpop.trf.xlu0
        %v1991 = vpop.trf.xlu0
        %v1992 = vpop.trf.xlu0
        %v1993 = vpop.trf.xlu0
        %v1994 = vpop.trf.xlu0
        %1995 = vxpose.xlu0.c.b16.start [1/8] %v1917, 128
        %1996 = vxpose.xlu0.c.b16.cont [2/8] 0, 128
        %1997 = vxpose.xlu0.c.b16.cont [3/8] 0, 128
        %1998 = vxpose.xlu0.c.b16.cont [4/8] 0, 128
        %1999 = vxpose.xlu0.c.b16.cont [5/8] 0, 128
        %2000 = vxpose.xlu0.c.b16.cont [6/8] 0, 128
        %2001 = vxpose.xlu0.c.b16.cont [7/8] 0, 128
        %2002 = vxpose.xlu0.c.b16.end [8/8] 0, 128
        %v2003 = vpop.trf.xlu0
        %v2004 = vpop.trf.xlu0
        %v2005 = vpop.trf.xlu0
        %v2006 = vpop.trf.xlu0
        %v2007 = vpop.trf.xlu0
        %v2008 = vpop.trf.xlu0
        %v2009 = vpop.trf.xlu0
        %v2010 = vpop.trf.xlu0
        %2011 = vxpose.xlu0.c.b16.start [1/8] %v1921, 128
        %2012 = vxpose.xlu0.c.b16.cont [2/8] 0, 128
        %2013 = vxpose.xlu0.c.b16.cont [3/8] 0, 128
        %2014 = vxpose.xlu0.c.b16.cont [4/8] 0, 128
        %2015 = vxpose.xlu0.c.b16.cont [5/8] 0, 128
        %2016 = vxpose.xlu0.c.b16.cont [6/8] 0, 128
        %2017 = vxpose.xlu0.c.b16.cont [7/8] 0, 128
        %2018 = vxpose.xlu0.c.b16.end [8/8] 0, 128
        %v2019 = vpop.trf.xlu0
        %v2020 = vpop.trf.xlu0
        %v2021 = vpop.trf.xlu0
        %v2022 = vpop.trf.xlu0
        %v2023 = vpop.trf.xlu0
        %v2024 = vpop.trf.xlu0
        %v2025 = vpop.trf.xlu0
        %v2026 = vpop.trf.xlu0
        %2027 = vxpose.xlu0.c.b16.start [1/8] %v1925, 128
        %2028 = vxpose.xlu0.c.b16.cont [2/8] 0, 128
        %2029 = vxpose.xlu0.c.b16.cont [3/8] 0, 128
        %2030 = vxpose.xlu0.c.b16.cont [4/8] 0, 128
        %2031 = vxpose.xlu0.c.b16.cont [5/8] 0, 128
        %2032 = vxpose.xlu0.c.b16.cont [6/8] 0, 128
        %2033 = vxpose.xlu0.c.b16.cont [7/8] 0, 128
        %2034 = vxpose.xlu0.c.b16.end [8/8] 0, 128
        %v2035 = vpop.trf.xlu0
        %v2036 = vpop.trf.xlu0
        %v2037 = vpop.trf.xlu0
        %v2038 = vpop.trf.xlu0
        %v2039 = vpop.trf.xlu0
        %v2040 = vpop.trf.xlu0
        %v2041 = vpop.trf.xlu0
        %v2042 = vpop.trf.xlu0
        %2043 = vxpose.xlu0.c.b16.start [1/8] %v1929, 128
        %2044 = vxpose.xlu0.c.b16.cont [2/8] 0, 128
        %2045 = vxpose.xlu0.c.b16.cont [3/8] 0, 128
        %2046 = vxpose.xlu0.c.b16.cont [4/8] 0, 128
        %2047 = vxpose.xlu0.c.b16.cont [5/8] 0, 128
        %2048 = vxpose.xlu0.c.b16.cont [6/8] 0, 128
        %2049 = vxpose.xlu0.c.b16.cont [7/8] 0, 128
        %2050 = vxpose.xlu0.c.b16.end [8/8] 0, 128
        %v2051 = vpop.trf.xlu0
        %v2052 = vpop.trf.xlu0
        %v2053 = vpop.trf.xlu0
        %v2054 = vpop.trf.xlu0
        %v2055 = vpop.trf.xlu0
        %v2056 = vpop.trf.xlu0
        %v2057 = vpop.trf.xlu0
        %v2058 = vpop.trf.xlu0
        %v2059 = vcombine.low %v1939, %v2003
        %v2061 = vunpack.c.l.s4 1983009808
        %v2062 = vunpack.c.0.s8 %v2061
        %v2063 = vlaneseq
        %v2064 = vshrl.u32 %v2063, 7
        %v2065 = vsub.s32 %v2062, %v2064
        %v2066 = vrot.slane %v2059, %v2065
        %v2067 = vcombine.low %v1971, %v2035
        %v2069 = vunpack.c.l.s4 1983009808
        %v2070 = vunpack.c.0.s8 %v2069
        %v2071 = vlaneseq
        %v2072 = vshrl.u32 %v2071, 7
        %v2073 = vsub.s32 %v2070, %v2072
        %v2074 = vrot.slane %v2067, %v2073
        %v2075 = vcombine.low %v2066, %v2074
        %v2077 = vunpack.c.l.s4 1934713408
        %v2078 = vunpack.c.0.s8 %v2077
        %v2079 = vlaneseq
        %v2080 = vshrl.u32 %v2079, 7
        %v2081 = vsub.s32 %v2078, %v2080
        %v2082 = vrot.slane %v2075, %v2081
        %v2083 = vcombine.high %v2082, 0
        %v2084 = vcombine.low %v1955, %v2019
        %v2086 = vunpack.c.l.s4 1983009808
        %v2087 = vunpack.c.0.s8 %v2086
        %v2088 = vlaneseq
        %v2089 = vshrl.u32 %v2088, 7
        %v2090 = vsub.s32 %v2087, %v2089
        %v2091 = vrot.slane %v2084, %v2090
        %v2092 = vcombine.low %v1987, %v2051
        %v2094 = vunpack.c.l.s4 1983009808
        %v2095 = vunpack.c.0.s8 %v2094
        %v2096 = vlaneseq
        %v2097 = vshrl.u32 %v2096, 7
        %v2098 = vsub.s32 %v2095, %v2097
        %v2099 = vrot.slane %v2092, %v2098
        %v2100 = vcombine.low %v2091, %v2099
        %v2102 = vunpack.c.l.s4 1934713408
        %v2103 = vunpack.c.0.s8 %v2102
        %v2104 = vlaneseq
        %v2105 = vshrl.u32 %v2104, 7
        %v2106 = vsub.s32 %v2103, %v2105
        %v2107 = vrot.slane %v2100, %v2106
        %v2108 = vcombine.high %v2107, 0
        %v2111 = vpack.i.b16 %v2107, %v2082
        %v2112 = vshrl.u32 %v2082, 16
        %v2113 = vshrl.u32 %v2107, 16
        %v2114 = vpack.i.b16 %v2113, %v2112
        %v2117 = vpack.i.b16 %v2108, %v2083
        %v2118 = vshrl.u32 %v2083, 16
        %v2119 = vshrl.u32 %v2108, 16
        %v2120 = vpack.i.b16 %v2119, %v2118
        %v2122 = vsel %vm1469, %v2111, 0
        %v2125 = vsel %vm1469, %v1699, 0
        %2127 = vmatprep.subr.bf16.mxu0 0
        %2128 = vmatpush1.bf16.xpose.msra.mxu0 %v2125
        %2129 = vmatprep.subr.bf16.mxu0 0
        %2130 = vmatpush1.bf16.xpose.msra.mxu0 0
        %2131 = vmatprep.subr.bf16.mxu0 0
        %2132 = vmatpush1.bf16.xpose.msra.mxu0 0
        %2133 = vmatprep.subr.bf16.mxu0 0
        %2134 = vmatpush1.bf16.xpose.msra.mxu0 0
        %2135 = vmatprep.subr.bf16.mxu0 0
        %2136 = vmatpush1.bf16.xpose.msra.mxu0 0
        %2137 = vmatprep.subr.bf16.mxu0 0
        %2138 = vmatpush1.bf16.xpose.msra.mxu0 0
        %2139 = vmatprep.subr.bf16.mxu0 0
        %2140 = vmatpush1.bf16.xpose.msra.mxu0 0
        %2141 = vmatprep.subr.bf16.mxu0 0
        %2142 = vmatpush1.bf16.xpose.msra.mxu0 0
        %2143 = vmatprep.subr.bf16.mxu0 0
        %2144 = vmatpush1.bf16.xpose.msra.mxu0 0
        %2145 = vmatprep.subr.bf16.mxu0 0
        %2146 = vmatpush1.bf16.xpose.msra.mxu0 0
        %2147 = vmatprep.subr.bf16.mxu0 0
        %2148 = vmatpush1.bf16.xpose.msra.mxu0 0
        %2149 = vmatprep.subr.bf16.mxu0 0
        %2150 = vmatpush1.bf16.xpose.msra.mxu0 0
        %2151 = vmatprep.subr.bf16.mxu0 0
        %2152 = vmatpush1.bf16.xpose.msra.mxu0 0
        %2153 = vmatprep.subr.bf16.mxu0 0
        %2154 = vmatpush1.bf16.xpose.msra.mxu0 0
        %2155 = vmatprep.subr.bf16.mxu0 0
        %2156 = vmatpush1.bf16.xpose.msra.mxu0 0
        %2157 = vmatprep.subr.bf16.mxu0 0
        %2158 = vmatpush1.bf16.xpose.msra.mxu0 0
        %2159 = vmatprep.mubr.bf16.mxu0 0
        %2160 = vmatmul.mubr.bf16.gmra.mrb[0].mxu0 %v2122
        %v2161 = vpop.f32.mrb[0].mxu0
        %v2162 = vadd.f32 0.0, %v2161
        %v2163 = vpop.f32.mrb[0].mxu0
        %v2164 = vpop.f32.mrb[0].mxu0
        %v2165 = vpop.f32.mrb[0].mxu0
        %2166 = vdwg.mxu0
        %v2168 = vsel %vm1469, %v2114, 0
        %v2171 = vsel %vm1469, %v1700, 0
        %2173 = vmatprep.subr.bf16.mxu0 0
        %2174 = vmatpush1.bf16.xpose.msra.mxu0 %v2171
        %2175 = vmatprep.subr.bf16.mxu0 0
        %2176 = vmatpush1.bf16.xpose.msra.mxu0 0
        %2177 = vmatprep.subr.bf16.mxu0 0
        %2178 = vmatpush1.bf16.xpose.msra.mxu0 0
        %2179 = vmatprep.subr.bf16.mxu0 0
        %2180 = vmatpush1.bf16.xpose.msra.mxu0 0
        %2181 = vmatprep.subr.bf16.mxu0 0
        %2182 = vmatpush1.bf16.xpose.msra.mxu0 0
        %2183 = vmatprep.subr.bf16.mxu0 0
        %2184 = vmatpush1.bf16.xpose.msra.mxu0 0
        %2185 = vmatprep.subr.bf16.mxu0 0
        %2186 = vmatpush1.bf16.xpose.msra.mxu0 0
        %2187 = vmatprep.subr.bf16.mxu0 0
        %2188 = vmatpush1.bf16.xpose.msra.mxu0 0
        %2189 = vmatprep.subr.bf16.mxu0 0
        %2190 = vmatpush1.bf16.xpose.msra.mxu0 0
        %2191 = vmatprep.subr.bf16.mxu0 0
        %2192 = vmatpush1.bf16.xpose.msra.mxu0 0
        %2193 = vmatprep.subr.bf16.mxu0 0
        %2194 = vmatpush1.bf16.xpose.msra.mxu0 0
        %2195 = vmatprep.subr.bf16.mxu0 0
        %2196 = vmatpush1.bf16.xpose.msra.mxu0 0
        %2197 = vmatprep.subr.bf16.mxu0 0
        %2198 = vmatpush1.bf16.xpose.msra.mxu0 0
        %2199 = vmatprep.subr.bf16.mxu0 0
        %2200 = vmatpush1.bf16.xpose.msra.mxu0 0
        %2201 = vmatprep.subr.bf16.mxu0 0
        %2202 = vmatpush1.bf16.xpose.msra.mxu0 0
        %2203 = vmatprep.subr.bf16.mxu0 0
        %2204 = vmatpush1.bf16.xpose.msra.mxu0 0
        %2205 = vmatprep.mubr.bf16.mxu0 0
        %2206 = vmatmul.mubr.bf16.gmra.mrb[0].mxu0 %v2168
        %v2207 = vpop.f32.mrb[0].mxu0
        %v2208 = vadd.f32 0.0, %v2207
        %v2209 = vpop.f32.mrb[0].mxu0
        %v2210 = vpop.f32.mrb[0].mxu0
        %v2211 = vpop.f32.mrb[0].mxu0
        %2212 = vdwg.mxu0
        %v2214 = vsel %vm1469, %v2117, 0
        %v2217 = vsel %vm1469, %v1701, 0
        %2219 = vmatprep.subr.bf16.mxu0 0
        %2220 = vmatpush1.bf16.xpose.msra.mxu0 %v2217
        %2221 = vmatprep.subr.bf16.mxu0 0
        %2222 = vmatpush1.bf16.xpose.msra.mxu0 0
        %2223 = vmatprep.subr.bf16.mxu0 0
        %2224 = vmatpush1.bf16.xpose.msra.mxu0 0
        %2225 = vmatprep.subr.bf16.mxu0 0
        %2226 = vmatpush1.bf16.xpose.msra.mxu0 0
        %2227 = vmatprep.subr.bf16.mxu0 0
        %2228 = vmatpush1.bf16.xpose.msra.mxu0 0
        %2229 = vmatprep.subr.bf16.mxu0 0
        %2230 = vmatpush1.bf16.xpose.msra.mxu0 0
        %2231 = vmatprep.subr.bf16.mxu0 0
        %2232 = vmatpush1.bf16.xpose.msra.mxu0 0
        %2233 = vmatprep.subr.bf16.mxu0 0
        %2234 = vmatpush1.bf16.xpose.msra.mxu0 0
        %2235 = vmatprep.subr.bf16.mxu0 0
        %2236 = vmatpush1.bf16.xpose.msra.mxu0 0
        %2237 = vmatprep.subr.bf16.mxu0 0
        %2238 = vmatpush1.bf16.xpose.msra.mxu0 0
        %2239 = vmatprep.subr.bf16.mxu0 0
        %2240 = vmatpush1.bf16.xpose.msra.mxu0 0
        %2241 = vmatprep.subr.bf16.mxu0 0
        %2242 = vmatpush1.bf16.xpose.msra.mxu0 0
        %2243 = vmatprep.subr.bf16.mxu0 0
        %2244 = vmatpush1.bf16.xpose.msra.mxu0 0
        %2245 = vmatprep.subr.bf16.mxu0 0
        %2246 = vmatpush1.bf16.xpose.msra.mxu0 0
        %2247 = vmatprep.subr.bf16.mxu0 0
        %2248 = vmatpush1.bf16.xpose.msra.mxu0 0
        %2249 = vmatprep.subr.bf16.mxu0 0
        %2250 = vmatpush1.bf16.xpose.msra.mxu0 0
        %2251 = vmatprep.mubr.bf16.mxu0 0
        %2252 = vmatmul.mubr.bf16.gmra.mrb[0].mxu0 %v2214
        %v2253 = vpop.f32.mrb[0].mxu0
        %v2254 = vadd.f32 0.0, %v2253
        %v2255 = vpop.f32.mrb[0].mxu0
        %v2256 = vpop.f32.mrb[0].mxu0
        %v2257 = vpop.f32.mrb[0].mxu0
        %2258 = vdwg.mxu0
        %v2260 = vsel %vm1469, %v2120, 0
        %v2263 = vsel %vm1469, %v1702, 0
        %2265 = vmatprep.subr.bf16.mxu0 0
        %2266 = vmatpush1.bf16.xpose.msra.mxu0 %v2263
        %2267 = vmatprep.subr.bf16.mxu0 0
        %2268 = vmatpush1.bf16.xpose.msra.mxu0 0
        %2269 = vmatprep.subr.bf16.mxu0 0
        %2270 = vmatpush1.bf16.xpose.msra.mxu0 0
        %2271 = vmatprep.subr.bf16.mxu0 0
        %2272 = vmatpush1.bf16.xpose.msra.mxu0 0
        %2273 = vmatprep.subr.bf16.mxu0 0
        %2274 = vmatpush1.bf16.xpose.msra.mxu0 0
        %2275 = vmatprep.subr.bf16.mxu0 0
        %2276 = vmatpush1.bf16.xpose.msra.mxu0 0
        %2277 = vmatprep.subr.bf16.mxu0 0
        %2278 = vmatpush1.bf16.xpose.msra.mxu0 0
        %2279 = vmatprep.subr.bf16.mxu0 0
        %2280 = vmatpush1.bf16.xpose.msra.mxu0 0
        %2281 = vmatprep.subr.bf16.mxu0 0
        %2282 = vmatpush1.bf16.xpose.msra.mxu0 0
        %2283 = vmatprep.subr.bf16.mxu0 0
        %2284 = vmatpush1.bf16.xpose.msra.mxu0 0
        %2285 = vmatprep.subr.bf16.mxu0 0
        %2286 = vmatpush1.bf16.xpose.msra.mxu0 0
        %2287 = vmatprep.subr.bf16.mxu0 0
        %2288 = vmatpush1.bf16.xpose.msra.mxu0 0
        %2289 = vmatprep.subr.bf16.mxu0 0
        %2290 = vmatpush1.bf16.xpose.msra.mxu0 0
        %2291 = vmatprep.subr.bf16.mxu0 0
        %2292 = vmatpush1.bf16.xpose.msra.mxu0 0
        %2293 = vmatprep.subr.bf16.mxu0 0
        %2294 = vmatpush1.bf16.xpose.msra.mxu0 0
        %2295 = vmatprep.subr.bf16.mxu0 0
        %2296 = vmatpush1.bf16.xpose.msra.mxu0 0
        %2297 = vmatprep.mubr.bf16.mxu0 0
        %2298 = vmatmul.mubr.bf16.gmra.mrb[0].mxu0 %v2260
        %v2299 = vpop.f32.mrb[0].mxu0
        %v2300 = vadd.f32 0.0, %v2299
        %v2301 = vpop.f32.mrb[0].mxu0
        %v2302 = vpop.f32.mrb[0].mxu0
        %v2303 = vpop.f32.mrb[0].mxu0
        %2304 = vdwg.mxu0
        %2305 = vxpose.xlu0.b32.start [1/16] %v2162, 128
        %2306 = vxpose.xlu0.b32.cont [2/16] 0.0, 128
        %2307 = vxpose.xlu0.b32.cont [3/16] 0.0, 128
        %2308 = vxpose.xlu0.b32.cont [4/16] 0.0, 128
        %2309 = vxpose.xlu0.b32.cont [5/16] 0.0, 128
        %2310 = vxpose.xlu0.b32.cont [6/16] 0.0, 128
        %2311 = vxpose.xlu0.b32.cont [7/16] 0.0, 128
        %2312 = vxpose.xlu0.b32.cont [8/16] 0.0, 128
        %2313 = vxpose.xlu0.b32.cont [9/16] 0.0, 128
        %2314 = vxpose.xlu0.b32.cont [10/16] 0.0, 128
        %2315 = vxpose.xlu0.b32.cont [11/16] 0.0, 128
        %2316 = vxpose.xlu0.b32.cont [12/16] 0.0, 128
        %2317 = vxpose.xlu0.b32.cont [13/16] 0.0, 128
        %2318 = vxpose.xlu0.b32.cont [14/16] 0.0, 128
        %2319 = vxpose.xlu0.b32.cont [15/16] 0.0, 128
        %2320 = vxpose.xlu0.b32.end [16/16] 0.0, 128
        %v2321 = vpop.trf.xlu0
        %v2322 = vpop.trf.xlu0
        %v2323 = vpop.trf.xlu0
        %v2324 = vpop.trf.xlu0
        %v2325 = vpop.trf.xlu0
        %v2326 = vpop.trf.xlu0
        %v2327 = vpop.trf.xlu0
        %v2328 = vpop.trf.xlu0
        %v2329 = vpop.trf.xlu0
        %v2330 = vpop.trf.xlu0
        %v2331 = vpop.trf.xlu0
        %v2332 = vpop.trf.xlu0
        %v2333 = vpop.trf.xlu0
        %v2334 = vpop.trf.xlu0
        %v2335 = vpop.trf.xlu0
        %v2336 = vpop.trf.xlu0
        %2337 = vxpose.xlu0.b32.start [1/16] %v2208, 128
        %2338 = vxpose.xlu0.b32.cont [2/16] 0.0, 128
        %2339 = vxpose.xlu0.b32.cont [3/16] 0.0, 128
        %2340 = vxpose.xlu0.b32.cont [4/16] 0.0, 128
        %2341 = vxpose.xlu0.b32.cont [5/16] 0.0, 128
        %2342 = vxpose.xlu0.b32.cont [6/16] 0.0, 128
        %2343 = vxpose.xlu0.b32.cont [7/16] 0.0, 128
        %2344 = vxpose.xlu0.b32.cont [8/16] 0.0, 128
        %2345 = vxpose.xlu0.b32.cont [9/16] 0.0, 128
        %2346 = vxpose.xlu0.b32.cont [10/16] 0.0, 128
        %2347 = vxpose.xlu0.b32.cont [11/16] 0.0, 128
        %2348 = vxpose.xlu0.b32.cont [12/16] 0.0, 128
        %2349 = vxpose.xlu0.b32.cont [13/16] 0.0, 128
        %2350 = vxpose.xlu0.b32.cont [14/16] 0.0, 128
        %2351 = vxpose.xlu0.b32.cont [15/16] 0.0, 128
        %2352 = vxpose.xlu0.b32.end [16/16] 0.0, 128
        %v2353 = vpop.trf.xlu0
        %v2354 = vpop.trf.xlu0
        %v2355 = vpop.trf.xlu0
        %v2356 = vpop.trf.xlu0
        %v2357 = vpop.trf.xlu0
        %v2358 = vpop.trf.xlu0
        %v2359 = vpop.trf.xlu0
        %v2360 = vpop.trf.xlu0
        %v2361 = vpop.trf.xlu0
        %v2362 = vpop.trf.xlu0
        %v2363 = vpop.trf.xlu0
        %v2364 = vpop.trf.xlu0
        %v2365 = vpop.trf.xlu0
        %v2366 = vpop.trf.xlu0
        %v2367 = vpop.trf.xlu0
        %v2368 = vpop.trf.xlu0
        %2369 = vxpose.xlu0.b32.start [1/16] %v2254, 128
        %2370 = vxpose.xlu0.b32.cont [2/16] 0.0, 128
        %2371 = vxpose.xlu0.b32.cont [3/16] 0.0, 128
        %2372 = vxpose.xlu0.b32.cont [4/16] 0.0, 128
        %2373 = vxpose.xlu0.b32.cont [5/16] 0.0, 128
        %2374 = vxpose.xlu0.b32.cont [6/16] 0.0, 128
        %2375 = vxpose.xlu0.b32.cont [7/16] 0.0, 128
        %2376 = vxpose.xlu0.b32.cont [8/16] 0.0, 128
        %2377 = vxpose.xlu0.b32.cont [9/16] 0.0, 128
        %2378 = vxpose.xlu0.b32.cont [10/16] 0.0, 128
        %2379 = vxpose.xlu0.b32.cont [11/16] 0.0, 128
        %2380 = vxpose.xlu0.b32.cont [12/16] 0.0, 128
        %2381 = vxpose.xlu0.b32.cont [13/16] 0.0, 128
        %2382 = vxpose.xlu0.b32.cont [14/16] 0.0, 128
        %2383 = vxpose.xlu0.b32.cont [15/16] 0.0, 128
        %2384 = vxpose.xlu0.b32.end [16/16] 0.0, 128
        %v2385 = vpop.trf.xlu0
        %v2386 = vpop.trf.xlu0
        %v2387 = vpop.trf.xlu0
        %v2388 = vpop.trf.xlu0
        %v2389 = vpop.trf.xlu0
        %v2390 = vpop.trf.xlu0
        %v2391 = vpop.trf.xlu0
        %v2392 = vpop.trf.xlu0
        %v2393 = vpop.trf.xlu0
        %v2394 = vpop.trf.xlu0
        %v2395 = vpop.trf.xlu0
        %v2396 = vpop.trf.xlu0
        %v2397 = vpop.trf.xlu0
        %v2398 = vpop.trf.xlu0
        %v2399 = vpop.trf.xlu0
        %v2400 = vpop.trf.xlu0
        %2401 = vxpose.xlu0.b32.start [1/16] %v2300, 128
        %2402 = vxpose.xlu0.b32.cont [2/16] 0.0, 128
        %2403 = vxpose.xlu0.b32.cont [3/16] 0.0, 128
        %2404 = vxpose.xlu0.b32.cont [4/16] 0.0, 128
        %2405 = vxpose.xlu0.b32.cont [5/16] 0.0, 128
        %2406 = vxpose.xlu0.b32.cont [6/16] 0.0, 128
        %2407 = vxpose.xlu0.b32.cont [7/16] 0.0, 128
        %2408 = vxpose.xlu0.b32.cont [8/16] 0.0, 128
        %2409 = vxpose.xlu0.b32.cont [9/16] 0.0, 128
        %2410 = vxpose.xlu0.b32.cont [10/16] 0.0, 128
        %2411 = vxpose.xlu0.b32.cont [11/16] 0.0, 128
        %2412 = vxpose.xlu0.b32.cont [12/16] 0.0, 128
        %2413 = vxpose.xlu0.b32.cont [13/16] 0.0, 128
        %2414 = vxpose.xlu0.b32.cont [14/16] 0.0, 128
        %2415 = vxpose.xlu0.b32.cont [15/16] 0.0, 128
        %2416 = vxpose.xlu0.b32.end [16/16] 0.0, 128
        %v2417 = vpop.trf.xlu0
        %v2418 = vpop.trf.xlu0
        %v2419 = vpop.trf.xlu0
        %v2420 = vpop.trf.xlu0
        %v2421 = vpop.trf.xlu0
        %v2422 = vpop.trf.xlu0
        %v2423 = vpop.trf.xlu0
        %v2424 = vpop.trf.xlu0
        %v2425 = vpop.trf.xlu0
        %v2426 = vpop.trf.xlu0
        %v2427 = vpop.trf.xlu0
        %v2428 = vpop.trf.xlu0
        %v2429 = vpop.trf.xlu0
        %v2430 = vpop.trf.xlu0
        %v2431 = vpop.trf.xlu0
        %v2432 = vpop.trf.xlu0
        %v2433 = vcombine.low %v2321, %v2385
        %v2434 = vcombine.high %v2321, %v2385
        %v2436 = vunpack.c.l.s4 1983009808
        %v2437 = vunpack.c.0.s8 %v2436
        %v2438 = vlaneseq
        %v2439 = vshrl.u32 %v2438, 7
        %v2440 = vsub.s32 %v2437, %v2439
        %v2441 = vrot.slane %v2433, %v2440
        %v2443 = vunpack.c.l.s4 1983009808
        %v2444 = vunpack.c.0.s8 %v2443
        %v2445 = vlaneseq
        %v2446 = vshrl.u32 %v2445, 7
        %v2447 = vsub.s32 %v2444, %v2446
        %v2448 = vrot.slane %v2434, %v2447
        %v2449 = vcombine.low %v2353, %v2417
        %v2450 = vcombine.high %v2353, %v2417
        %v2452 = vunpack.c.l.s4 1983009808
        %v2453 = vunpack.c.0.s8 %v2452
        %v2454 = vlaneseq
        %v2455 = vshrl.u32 %v2454, 7
        %v2456 = vsub.s32 %v2453, %v2455
        %v2457 = vrot.slane %v2449, %v2456
        %v2459 = vunpack.c.l.s4 1983009808
        %v2460 = vunpack.c.0.s8 %v2459
        %v2461 = vlaneseq
        %v2462 = vshrl.u32 %v2461, 7
        %v2463 = vsub.s32 %v2460, %v2462
        %v2464 = vrot.slane %v2450, %v2463
        %v2465 = vcombine.low %v2441, %v2457
        %v2466 = vcombine.high %v2441, %v2457
        %v2468 = vunpack.c.l.s4 1934713408
        %v2469 = vunpack.c.0.s8 %v2468
        %v2470 = vlaneseq
        %v2471 = vshrl.u32 %v2470, 7
        %v2472 = vsub.s32 %v2469, %v2471
        %v2473 = vrot.slane %v2465, %v2472
        %v2475 = vunpack.c.l.s4 1934713408
        %v2476 = vunpack.c.0.s8 %v2475
        %v2477 = vlaneseq
        %v2478 = vshrl.u32 %v2477, 7
        %v2479 = vsub.s32 %v2476, %v2478
        %v2480 = vrot.slane %v2466, %v2479
        %v2481 = vcombine.low %v2448, %v2464
        %v2482 = vcombine.high %v2448, %v2464
        %v2484 = vunpack.c.l.s4 1934713408
        %v2485 = vunpack.c.0.s8 %v2484
        %v2486 = vlaneseq
        %v2487 = vshrl.u32 %v2486, 7
        %v2488 = vsub.s32 %v2485, %v2487
        %v2489 = vrot.slane %v2481, %v2488
        %v2491 = vunpack.c.l.s4 1934713408
        %v2492 = vunpack.c.0.s8 %v2491
        %v2493 = vlaneseq
        %v2494 = vshrl.u32 %v2493, 7
        %v2495 = vsub.s32 %v2492, %v2494
        %v2496 = vrot.slane %v2482, %v2495
        %v2497 = vcombine.high %v2473, 0.0
        %v2498 = vcombine.high %v2480, 0.0
        %v2499 = vcombine.high %v2489, 0.0
        %v2500 = vcombine.high %v2496, 0.0
        %v2501 = vcombine.low %v2473, %v2480
        %v2503 = vunpack.c.l.s4 1983009808
        %v2504 = vunpack.c.0.s8 %v2503
        %v2505 = vlaneseq
        %v2506 = vshrl.u32 %v2505, 7
        %v2507 = vsub.s32 %v2504, %v2506
        %v2508 = vrot.slane %v2501, %v2507
        %v2509 = vcombine.low %v2497, %v2498
        %v2511 = vunpack.c.l.s4 1983009808
        %v2512 = vunpack.c.0.s8 %v2511
        %v2513 = vlaneseq
        %v2514 = vshrl.u32 %v2513, 7
        %v2515 = vsub.s32 %v2512, %v2514
        %v2516 = vrot.slane %v2509, %v2515
        %v2517 = vcombine.low %v2489, %v2496
        %v2519 = vunpack.c.l.s4 1983009808
        %v2520 = vunpack.c.0.s8 %v2519
        %v2521 = vlaneseq
        %v2522 = vshrl.u32 %v2521, 7
        %v2523 = vsub.s32 %v2520, %v2522
        %v2524 = vrot.slane %v2517, %v2523
        %v2525 = vcombine.low %v2499, %v2500
        %v2527 = vunpack.c.l.s4 1983009808
        %v2528 = vunpack.c.0.s8 %v2527
        %v2529 = vlaneseq
        %v2530 = vshrl.u32 %v2529, 7
        %v2531 = vsub.s32 %v2528, %v2530
        %v2532 = vrot.slane %v2525, %v2531
        %v2533 = vcombine.low %v2508, %v2516
        %v2534 = vcombine.high %v2508, %v2516
        %v2536 = vunpack.c.l.s4 1934713408
        %v2537 = vunpack.c.0.s8 %v2536
        %v2538 = vlaneseq
        %v2539 = vshrl.u32 %v2538, 7
        %v2540 = vsub.s32 %v2537, %v2539
        %v2541 = vrot.slane %v2533, %v2540
        %v2543 = vunpack.c.l.s4 1934713408
        %v2544 = vunpack.c.0.s8 %v2543
        %v2545 = vlaneseq
        %v2546 = vshrl.u32 %v2545, 7
        %v2547 = vsub.s32 %v2544, %v2546
        %v2548 = vrot.slane %v2534, %v2547
        %v2549 = vcombine.low %v2524, %v2532
        %v2550 = vcombine.high %v2524, %v2532
        %v2552 = vunpack.c.l.s4 1934713408
        %v2553 = vunpack.c.0.s8 %v2552
        %v2554 = vlaneseq
        %v2555 = vshrl.u32 %v2554, 7
        %v2556 = vsub.s32 %v2553, %v2555
        %v2557 = vrot.slane %v2549, %v2556
        %v2559 = vunpack.c.l.s4 1934713408
        %v2560 = vunpack.c.0.s8 %v2559
        %v2561 = vlaneseq
        %v2562 = vshrl.u32 %v2561, 7
        %v2563 = vsub.s32 %v2560, %v2562
        %v2564 = vrot.slane %v2550, %v2563
        %v2565 = vcombine.low %v2541, %v2557
        %v2566 = vcombine.high %v2541, %v2557
        %v2567 = vcombine.low %v2548, %v2564
        %v2568 = vcombine.high %v2548, %v2564
        %2570 = vrot.lane.b32.xlu0 %v2566, 8
        %v2571 = vpop.permute.xlu0 %2570
        %2574 = vrot.lane.b32.xlu0 %v2567, 16
        %v2575 = vpop.permute.xlu0 %2574
        %2578 = vrot.lane.b32.xlu0 %v2568, 24
        %v2579 = vpop.permute.xlu0 %2578
        %v2581 = vsel %vm1469, %v2565, %v2571
        %vm2582 = vcmask 130048
        %v2583 = vsel %vm2582, %v2581, %v2575
        %vm2584 = vcmask 195584
        %v2585 = vsel %vm2584, %v2583, %v2579
        %v2586 = vpack.c.bf16 %v2585, %v2585
        %v2587 = vld [vmem:[#allocation10] sm:$0xf]
        %v2588 = vld [vmem:[#allocation10 + $0x4] sm:$0xf]
        %v2589 = vld [vmem:[#allocation10 + $0x8] sm:$0xf]
        %v2590 = vld [vmem:[#allocation10 + $0xc] sm:$0xf]
        %v2591 = vld [vmem:[#allocation11] sm:$0x1]
        %v2593 = vlaneseq
        %v2594 = vshrl.u32 %v2593, 7
        %v2595 = vsub.s32 0, %v2594
        %v2596 = vrot.slane %v2591, %v2595
        %v2602 = vunpack.c.l.b16 %v2587
        %v2603 = vunpack.c.l.b16 %v2588
        %v2604 = vunpack.c.l.b16 %v2589
        %v2605 = vunpack.c.l.b16 %v2590
        %v2606 = vpack.c.b16 %v2603, %v2602
        %v2607 = vpack.c.b16 %v2605, %v2604
        %v2611 = vsel %vm683, %v2586, 0
        %2613 = vmatprep.subr.bf16.mxu0 0
        %2614 = vmatpush1.bf16.msra.mxu0 %v2606
        %2615 = vmatprep.subr.bf16.mxu0 0
        %2616 = vmatpush1.bf16.msra.mxu0 %v2607
        %2617 = vmatprep.subr.bf16.mxu0 0
        %2618 = vmatpush1.bf16.msra.mxu0 0
        %2619 = vmatprep.subr.bf16.mxu0 0
        %2620 = vmatpush1.bf16.msra.mxu0 0
        %2621 = vmatprep.subr.bf16.mxu0 0
        %2622 = vmatpush1.bf16.msra.mxu0 0
        %2623 = vmatprep.subr.bf16.mxu0 0
        %2624 = vmatpush1.bf16.msra.mxu0 0
        %2625 = vmatprep.subr.bf16.mxu0 0
        %2626 = vmatpush1.bf16.msra.mxu0 0
        %2627 = vmatprep.subr.bf16.mxu0 0
        %2628 = vmatpush1.bf16.msra.mxu0 0
        %2629 = vmatprep.subr.bf16.mxu0 0
        %2630 = vmatpush1.bf16.msra.mxu0 0
        %2631 = vmatprep.subr.bf16.mxu0 0
        %2632 = vmatpush1.bf16.msra.mxu0 0
        %2633 = vmatprep.subr.bf16.mxu0 0
        %2634 = vmatpush1.bf16.msra.mxu0 0
        %2635 = vmatprep.subr.bf16.mxu0 0
        %2636 = vmatpush1.bf16.msra.mxu0 0
        %2637 = vmatprep.subr.bf16.mxu0 0
        %2638 = vmatpush1.bf16.msra.mxu0 0
        %2639 = vmatprep.subr.bf16.mxu0 0
        %2640 = vmatpush1.bf16.msra.mxu0 0
        %2641 = vmatprep.subr.bf16.mxu0 0
        %2642 = vmatpush1.bf16.msra.mxu0 0
        %2643 = vmatprep.subr.bf16.mxu0 0
        %2644 = vmatpush1.bf16.msra.mxu0 0
        %2645 = vmatprep.mubr.bf16.mxu0 0
        %2646 = vmatmul.mubr.bf16.gmra.mrb[0].mxu0 %v2611
        %v2647 = vpop.f32.mrb[0].mxu0
        %v2648 = vadd.f32 %v2596, %v2647
        %v2649 = vpop.f32.mrb[0].mxu0
        %v2650 = vpop.f32.mrb[0].mxu0
        %v2651 = vpop.f32.mrb[0].mxu0
        %2652 = vdwg.mxu0
        %v2653 = vadd.f32 %v658, %v2648
        %v2654 = vsel %vm683, %v2653, 0.0
        %2655 = vadd.xlane.f32.xlu0 %v2654
        %v2656 = vpop.xlane.xlu0 %2655
        %v2657 = vrcp.pop 32.0
        %v2658 = vmul.f32 %v2656, %v2657
        %v2659 = vsub.f32 %v2653, %v2658
        %v2660 = vmul.f32 %v2659, %v2659
        %v2661 = vsel %vm683, %v2660, 0.0
        %2662 = vadd.xlane.f32.xlu0 %v2661
        %v2663 = vpop.xlane.xlu0 %2662
        %v2664 = vmul.f32 %v2663, %v2657
        %v2665 = vadd.f32 %v2664, 1e-05
        %v2666 = vrsqrt.pop %v2665
        %v2667 = vmul.f32 %v2659, %v2666
        %v2668 = vld [vmem:[#allocation19] sm:$0x1]
        %v2670 = vlaneseq
        %v2671 = vshrl.u32 %v2670, 7
        %v2672 = vsub.s32 0, %v2671
        %v2673 = vrot.slane %v2668, %v2672
        %v2675 = vmul.f32 %v2667, %v2673
        %v2676 = vld [vmem:[#allocation20] sm:$0x1]
        %v2678 = vlaneseq
        %v2679 = vshrl.u32 %v2678, 7
        %v2680 = vsub.s32 0, %v2679
        %v2681 = vrot.slane %v2676, %v2680
        %v2683 = vadd.f32 %v2675, %v2681
        %v2684 = vpack.c.bf16 %v2683, %v2683
        %v2685 = vld [vmem:[#allocation13] sm:$0xf]
        %v2686 = vld [vmem:[#allocation13 + $0x4] sm:$0xf]
        %v2687 = vld [vmem:[#allocation13 + $0x8] sm:$0xf]
        %v2688 = vld [vmem:[#allocation13 + $0xc] sm:$0xf]
        %v2689 = vld [vmem:[#allocation14] sm:$0x1]
        %v2691 = vlaneseq
        %v2692 = vshrl.u32 %v2691, 7
        %v2693 = vsub.s32 0, %v2692
        %v2694 = vrot.slane %v2689, %v2693
        %v2700 = vunpack.c.l.b16 %v2685
        %v2701 = vunpack.c.l.b16 %v2686
        %v2702 = vunpack.c.l.b16 %v2687
        %v2703 = vunpack.c.l.b16 %v2688
        %v2704 = vpack.c.b16 %v2701, %v2700
        %v2705 = vpack.c.b16 %v2703, %v2702
        %v2709 = vsel %vm683, %v2684, 0
        %2711 = vmatprep.subr.bf16.mxu0 0
        %2712 = vmatpush1.bf16.msra.mxu0 %v2704
        %2713 = vmatprep.subr.bf16.mxu0 0
        %2714 = vmatpush1.bf16.msra.mxu0 %v2705
        %2715 = vmatprep.subr.bf16.mxu0 0
        %2716 = vmatpush1.bf16.msra.mxu0 0
        %2717 = vmatprep.subr.bf16.mxu0 0
        %2718 = vmatpush1.bf16.msra.mxu0 0
        %2719 = vmatprep.subr.bf16.mxu0 0
        %2720 = vmatpush1.bf16.msra.mxu0 0
        %2721 = vmatprep.subr.bf16.mxu0 0
        %2722 = vmatpush1.bf16.msra.mxu0 0
        %2723 = vmatprep.subr.bf16.mxu0 0
        %2724 = vmatpush1.bf16.msra.mxu0 0
        %2725 = vmatprep.subr.bf16.mxu0 0
        %2726 = vmatpush1.bf16.msra.mxu0 0
        %2727 = vmatprep.subr.bf16.mxu0 0
        %2728 = vmatpush1.bf16.msra.mxu0 0
        %2729 = vmatprep.subr.bf16.mxu0 0
        %2730 = vmatpush1.bf16.msra.mxu0 0
        %2731 = vmatprep.subr.bf16.mxu0 0
        %2732 = vmatpush1.bf16.msra.mxu0 0
        %2733 = vmatprep.subr.bf16.mxu0 0
        %2734 = vmatpush1.bf16.msra.mxu0 0
        %2735 = vmatprep.subr.bf16.mxu0 0
        %2736 = vmatpush1.bf16.msra.mxu0 0
        %2737 = vmatprep.subr.bf16.mxu0 0
        %2738 = vmatpush1.bf16.msra.mxu0 0
        %2739 = vmatprep.subr.bf16.mxu0 0
        %2740 = vmatpush1.bf16.msra.mxu0 0
        %2741 = vmatprep.subr.bf16.mxu0 0
        %2742 = vmatpush1.bf16.msra.mxu0 0
        %2743 = vmatprep.mubr.bf16.mxu0 0
        %2744 = vmatmul.mubr.bf16.gmra.mrb[0].mxu0 %v2709
        %v2745 = vpop.f32.mrb[0].mxu0
        %v2746 = vadd.f32 %v2694, %v2745
        %v2747 = vpop.f32.mrb[0].mxu0
        %v2748 = vpop.f32.mrb[0].mxu0
        %v2749 = vpop.f32.mrb[0].mxu0
        %2750 = vdwg.mxu0
        %v2751 = vmax.f32 %v2746, 0.0
        %v2752 = vpack.c.bf16 %v2751, %v2751
        %v2753 = vld [vmem:[#allocation16] sm:$0xf]
        %v2754 = vld [vmem:[#allocation16 + $0x4] sm:$0xf]
        %v2755 = vld [vmem:[#allocation16 + $0x8] sm:$0xf]
        %v2756 = vld [vmem:[#allocation16 + $0xc] sm:$0xf]
        %v2757 = vld [vmem:[#allocation16 + $0x10] sm:$0xf]
        %v2758 = vld [vmem:[#allocation16 + $0x14] sm:$0xf]
        %v2759 = vld [vmem:[#allocation16 + $0x18] sm:$0xf]
        %v2760 = vld [vmem:[#allocation16 + $0x1c] sm:$0xf]
        %v2761 = vld [vmem:[#allocation17] sm:$0x1]
        %v2763 = vlaneseq
        %v2764 = vshrl.u32 %v2763, 7
        %v2765 = vsub.s32 0, %v2764
        %v2766 = vrot.slane %v2761, %v2765
        %v2776 = vunpack.c.l.b16 %v2753
        %v2777 = vunpack.c.l.b16 %v2754
        %v2778 = vunpack.c.l.b16 %v2755
        %v2779 = vunpack.c.l.b16 %v2756
        %v2780 = vunpack.c.l.b16 %v2757
        %v2781 = vunpack.c.l.b16 %v2758
        %v2782 = vunpack.c.l.b16 %v2759
        %v2783 = vunpack.c.l.b16 %v2760
        %v2784 = vpack.c.b16 %v2777, %v2776
        %v2785 = vpack.c.b16 %v2779, %v2778
        %v2786 = vpack.c.b16 %v2781, %v2780
        %v2787 = vpack.c.b16 %v2783, %v2782
        %vm2792 = vcmask 523264
        %v2794 = vsel %vm2792, %v2752, 0
        %2796 = vmatprep.subr.bf16.mxu0 0
        %2797 = vmatpush1.bf16.msra.mxu0 %v2784
        %2798 = vmatprep.subr.bf16.mxu0 0
        %2799 = vmatpush1.bf16.msra.mxu0 %v2785
        %2800 = vmatprep.subr.bf16.mxu0 0
        %2801 = vmatpush1.bf16.msra.mxu0 %v2786
        %2802 = vmatprep.subr.bf16.mxu0 0
        %2803 = vmatpush1.bf16.msra.mxu0 %v2787
        %2804 = vmatprep.subr.bf16.mxu0 0
        %2805 = vmatpush1.bf16.msra.mxu0 0
        %2806 = vmatprep.subr.bf16.mxu0 0
        %2807 = vmatpush1.bf16.msra.mxu0 0
        %2808 = vmatprep.subr.bf16.mxu0 0
        %2809 = vmatpush1.bf16.msra.mxu0 0
        %2810 = vmatprep.subr.bf16.mxu0 0
        %2811 = vmatpush1.bf16.msra.mxu0 0
        %2812 = vmatprep.subr.bf16.mxu0 0
        %2813 = vmatpush1.bf16.msra.mxu0 0
        %2814 = vmatprep.subr.bf16.mxu0 0
        %2815 = vmatpush1.bf16.msra.mxu0 0
        %2816 = vmatprep.subr.bf16.mxu0 0
        %2817 = vmatpush1.bf16.msra.mxu0 0
        %2818 = vmatprep.subr.bf16.mxu0 0
        %2819 = vmatpush1.bf16.msra.mxu0 0
        %2820 = vmatprep.subr.bf16.mxu0 0
        %2821 = vmatpush1.bf16.msra.mxu0 0
        %2822 = vmatprep.subr.bf16.mxu0 0
        %2823 = vmatpush1.bf16.msra.mxu0 0
        %2824 = vmatprep.subr.bf16.mxu0 0
        %2825 = vmatpush1.bf16.msra.mxu0 0
        %2826 = vmatprep.subr.bf16.mxu0 0
        %2827 = vmatpush1.bf16.msra.mxu0 0
        %2828 = vmatprep.mubr.bf16.mxu0 0
        %2829 = vmatmul.mubr.bf16.gmra.mrb[0].mxu0 %v2794
        %v2830 = vpop.f32.mrb[0].mxu0
        %v2831 = vadd.f32 %v2766, %v2830
        %v2832 = vpop.f32.mrb[0].mxu0
        %v2833 = vpop.f32.mrb[0].mxu0
        %v2834 = vpop.f32.mrb[0].mxu0
        %2835 = vdwg.mxu0
        %v2836 = vadd.f32 %v2683, %v2831
        %v2837 = vsel %vm683, %v2836, 0.0
        %2838 = vadd.xlane.f32.xlu0 %v2837
        %v2839 = vpop.xlane.xlu0 %2838
        %v2840 = vmul.f32 %v2839, %v2657
        %v2841 = vsub.f32 %v2836, %v2840
        %v2842 = vmul.f32 %v2841, %v2841
        %v2843 = vsel %vm683, %v2842, 0.0
        %2844 = vadd.xlane.f32.xlu0 %v2843
        %v2845 = vpop.xlane.xlu0 %2844
        %v2846 = vmul.f32 %v2845, %v2657
        %v2847 = vadd.f32 %v2846, 1e-05
        %v2848 = vrsqrt.pop %v2847
        %v2849 = vmul.f32 %v2841, %v2848
        %v2850 = vld [vmem:[#allocation22] sm:$0x1]
        %v2852 = vlaneseq
        %v2853 = vshrl.u32 %v2852, 7
        %v2854 = vsub.s32 0, %v2853
        %v2855 = vrot.slane %v2850, %v2854
        %v2857 = vmul.f32 %v2849, %v2855
        %v2858 = vld [vmem:[#allocation23] sm:$0x1]
        %v2860 = vlaneseq
        %v2861 = vshrl.u32 %v2860, 7
        %v2862 = vsub.s32 0, %v2861
        %v2863 = vrot.slane %v2858, %v2862
        %v2865 = vadd.f32 %v2857, %v2863
        %v2866 = vpack.c.bf16 %v2865, %v2865
        %vm2867 = vcmask 257024
        %2868 = vst.msk [vmem:[%s653] sm:$0xf] %vm2867, %v2866
        %s2869 = sand.u32 %s345, 1
        %s2870 = scalar_lea.sflag [#allocation4], %s2869
        %s2871 = sand.u32 %s345, 1
        %s2872 = smul.addr %s2871, 4
        %s2873 = scalar_lea.vmem [#allocation25], %s2872
        // Predicated region
        $region133: #{tpu_custom_call.1} parent=75 // pred_check
          %p2874 = pneg %p355
        $region134: #{tpu_custom_call.1} parent=75 // pred_check_branch
          %2876 = sbr.rel (%p2874) target = $region136
        $region135: #{tpu_custom_call.1} parent=75 // pred_region
          %s2878 = ssub.s32 64, 64
          %2879 = vsyncadd %s2870, %s2878
          %s2880 = smul.addr %s38, 64
          %s2881 = scalar_lea.hbm %s14, %s2880
          %s2883 = sshll.u32 %s2873, 4
          %s2884 = int_to_ptr.vmem [resolvable:$true] %s2883
          %2886 = dma.vmem_to_hbm [thread:$0]  %s2884, 64, %s2881, %s2870
        $region136: #{tpu_custom_call.1} parent=75 // pred_fallthru
          _
      $region76: #{tpu_custom_call.1} parent=5 // pred_fallthru
        _
      %p2887 = scmp.le.s32.totalorder 2, %s33
      // Predicated region
      $region137: #{tpu_custom_call.1} parent=5 // pred_check
        %p2888 = pneg %p2887
      $region138: #{tpu_custom_call.1} parent=5 // pred_check_branch
        %2890 = sbr.rel (%p2888) target = $region140
      $region139: #{tpu_custom_call.1} parent=5 // pred_region
        %s2891 = ssub.s32 %s33, 2
        // Predicated region
        $region141: #{tpu_custom_call.1} parent=139 // pred_check
          %p2892 = pneg %p361
        $region142: #{tpu_custom_call.1} parent=139 // pred_check_branch
          %2894 = sbr.rel (%p2892) target = $region144
        $region143: #{tpu_custom_call.1} parent=139 // pred_region
          %s2895 = sand.u32 %s346, 1
          %s2896 = scalar_lea.sflag [#allocation4], %s2895
          %s2897 = sand.u32 %s346, 1
          %s2898 = smul.addr %s2897, 4
          %s2899 = scalar_lea.vmem [#allocation25], %s2898
          %2900 = dma.done %s2896, 64
        $region144: #{tpu_custom_call.1} parent=139 // pred_fallthru
          _
      $region140: #{tpu_custom_call.1} parent=5 // pred_fallthru
        _
    $region6: #{tpu_custom_call.1} parent=1 // loop_footer
      %s37 = sadd.s32 1, %s33
    $region7: #{tpu_custom_call.1} parent=1 // loop_footer_branch
      %32 = sbr.rel target = $region3
    $region8: #{tpu_custom_call.1} parent=1 // loop_exit
      _
    %2901 = vsyncpa [#allocation3], 1
    %s2902 = scalar_lea.sflag [#allocation3], 1
    %2903 = vsyncpa %s2902, 1
    %2904 = vsyncpa [#allocation6], 1
    %2905 = vsyncpa [#allocation9], 1
    %2906 = vsyncpa [#allocation12], 1
    %2907 = vsyncpa [#allocation15], 1
    %2908 = vsyncpa [#allocation18], 1
    %2909 = vsyncpa [#allocation21], 1
    %2910 = vsyncpa [#allocation24], 1
    %2911 = vsyncpa [#allocation4], 1
    %s2912 = scalar_lea.sflag [#allocation4], 1
    %2913 = vsyncpa %s2912, 1

</llo_original>
